<compile_context>
chip_gen: v7x
topology: tpu7x:2x2x1
jax: 0.10.0
libtpu: 0.0.40
codegen_flags: <defaults>
</compile_context>

<pallas_src>
import jax
import jax.numpy as jnp
from jax.experimental import pallas as pl
from jax.experimental.pallas import tpu as pltpu


def make_stoich_kernel(dims, n_heads, num_reactions):
    """Build the multi-head gate_nn + segment-softmax kernel.

    dims is the static list of gate-network layer widths (including input),
    so residual-identity layers are resolved at build time.
    """
    n_layers = len(dims) - 1
    has_proj = [dims[i] != dims[i + 1] for i in range(n_layers)]
    per_head = sum(2 + int(hp) for hp in has_proj) + 2  # (W,b[,R])*layers + Wo,bo

    def kernel(idx_ref, x_ref, *rest):
        o_ref = rest[-1]
        p = rest[:-1]                      # n_heads * per_head 2-D param refs
        C = num_reactions
        N = x_ref.shape[1]

        x0 = x_ref[...]                    # (F, N)  features on sublanes, elems on lanes
        idx = idx_ref[...]                 # (1, N)  int32 reaction id per element
        # one-hot segment mask, lane-dense: mask[c, n] = (idx[n] == c)
        mask = jax.lax.broadcasted_iota(jnp.int32, (C, N), 0) == idx   # (C, N)
        neg_inf = jnp.float32(-jnp.inf)

        acc = jnp.zeros((1, N), jnp.float32)
        for h in range(n_heads):
            k = h * per_head
            # ---- ResidualNetwork (gate_nn) ----
            x = x0
            for i in range(n_layers):
                W = p[k][...]              # (dout, din)
                b = p[k + 1][...]          # (dout, 1)
                k += 2
                y = jnp.dot(W, x, preferred_element_type=jnp.float32) + b
                if has_proj[i]:
                    R = p[k][...]          # (dout, din), bias-free projection
                    k += 1
                    res = jnp.dot(R, x, preferred_element_type=jnp.float32)
                else:
                    res = x                # nn.Identity()
                x = jnp.maximum(y, 0.0) + res
            Wo = p[k][...]                 # (1, d_last)
            bo = p[k + 1][...]             # (1, 1)
            gate = jnp.dot(Wo, x, preferred_element_type=jnp.float32) + bo  # (1, N)

            # ---- NormStoich: segment softmax over reaction index ----
            # scatter_max(gate, index)[index]
            seg_max = jnp.max(jnp.where(mask, gate, neg_inf), axis=1, keepdims=True)       # (C, 1)
            per_elem_max = jnp.max(jnp.where(mask, seg_max, neg_inf), axis=0, keepdims=True)  # (1, N)
            e = jnp.exp(gate - per_elem_max)                                               # (1, N)
            # scatter_add(exp, index)[index]
            seg_sum = jnp.sum(jnp.where(mask, e, 0.0), axis=1, keepdims=True)              # (C, 1)
            per_elem_sum = jnp.sum(jnp.where(mask, seg_sum, 0.0), axis=0, keepdims=True)   # (1, N)

            acc = acc + e / (per_elem_sum + 1e-13)

        # mean over heads, single lane-dense store
        o_ref[...] = acc * (1.0 / n_heads)

    return kernel


def init_params(key, n_heads, dims):
    """Deterministic synthetic parameters for the n_heads gate networks.

    Per head, per layer: W (dout, din), b (dout, 1), and R (dout, din) only
    when din != dout (the PyTorch residual is nn.Identity otherwise), then
    fc_out Wo (1, d_last), bo (1, 1).
    """
    n_layers = len(dims) - 1
    params = []
    for _ in range(n_heads):
        head = []
        for i in range(n_layers):
            din, dout = dims[i], dims[i + 1]
            s = din ** -0.5
            key, k1, k2, k3 = jax.random.split(key, 4)
            head.append(jax.random.uniform(k1, (dout, din), jnp.float32, -s, s))
            head.append(jax.random.uniform(k2, (dout, 1), jnp.float32, -s, s))
            if din != dout:
                head.append(jax.random.uniform(k3, (dout, din), jnp.float32, -s, s))
        so = dims[-1] ** -0.5
        key, k1, k2 = jax.random.split(key, 3)
        head.append(jax.random.uniform(k1, (1, dims[-1]), jnp.float32, -so, so))
        head.append(jax.random.uniform(k2, (1, 1), jnp.float32, -so, so))
        params.append(head)
    return params


def stoich_net_forward(elem_fea, reaction_elem_idx, reaction_embed, params, dims, n_heads):
    """StoichNet.forward: returns (N,) normalized stoichiometries."""
    N = elem_fea.shape[0]
    C = reaction_embed.shape[0]

    # Glue (gather + concat) in plain JAX; present features transposed so the
    # kernel is lane-dense in N.
    x = jnp.concatenate(
        [elem_fea, reaction_embed[reaction_elem_idx]], axis=1
    ).astype(jnp.float32)                                  # (N, F)
    xT = x.T                                               # (F, N)
    idx2d = reaction_elem_idx.astype(jnp.int32).reshape(1, N)

    flat_params = [prm for head in params for prm in head]

    kernel = make_stoich_kernel(dims=dims, n_heads=n_heads, num_reactions=C)

    vmem = pl.BlockSpec(memory_space=pltpu.MemorySpace.VMEM)
    out = pl.pallas_call(
        kernel,
        out_shape=jax.ShapeDtypeStruct((1, N), jnp.float32),
        in_specs=[vmem] * (2 + len(flat_params)),
        out_specs=vmem,
    )(idx2d, xT, *flat_params)

    return out.reshape(-1)


def reference_forward(elem_fea, idx, reaction_embed, params, dims, n_heads):
    """Pure-JAX reference (mirrors the PyTorch forward)."""
    C = reaction_embed.shape[0]
    x0 = jnp.concatenate([elem_fea, reaction_embed[idx]], axis=1).astype(jnp.float32)
    n_layers = len(dims) - 1
    hp = jax.lax.Precision.HIGHEST
    heads = []
    for h in range(n_heads):
        plist = params[h]
        x = x0
        k = 0
        for i in range(n_layers):
            W = plist[k]              # (dout, din)
            b = plist[k + 1]          # (dout, 1)
            k += 2
            y = jnp.dot(x, W.T, precision=hp) + b.reshape(1, -1)
            if dims[i] != dims[i + 1]:
                R = plist[k]
                k += 1
                res = jnp.dot(x, R.T, precision=hp)
            else:
                res = x
            x = jnp.maximum(y, 0.0) + res
        Wo = plist[k]                 # (1, d_last)
        bo = plist[k + 1]             # (1, 1)
        gate = jnp.dot(x, Wo.T, precision=hp) + bo           # (N, 1)
        seg_max = jax.ops.segment_max(gate, idx, num_segments=C)
        e = jnp.exp(gate - seg_max[idx])
        seg_sum = jax.ops.segment_sum(e, idx, num_segments=C)
        heads.append(e / (seg_sum[idx] + 1e-13))
    return jnp.mean(jnp.stack(heads), axis=0).reshape(-1)


if __name__ == "__main__":
    key = jax.random.PRNGKey(0)
    k_elem, k_react, k_param = jax.random.split(key, 3)

    # Small shapes consistent with the module's forward.
    elem_fea_len = 16
    reaction_fea_len = 16
    intermediate_dim = 32
    n_heads = 2
    N = 8   # total elements in batch
    C = 3   # total reactions in batch

    # embed_dims from StoichNet.__init__ (prepend the input width)
    dims = [
        elem_fea_len + reaction_fea_len,
        intermediate_dim, intermediate_dim, intermediate_dim, intermediate_dim,
        128, 128, 64,
    ]

    orig_elem_fea = jax.random.normal(k_elem, (N, elem_fea_len), jnp.float32)
    reaction_embed = jax.random.normal(k_react, (C, reaction_fea_len), jnp.float32)
    reaction_elem_idx = jnp.array([0, 0, 0, 1, 1, 2, 2, 2], dtype=jnp.int32)

    params = init_params(k_param, n_heads, dims)

    out = stoich_net_forward(
        orig_elem_fea, reaction_elem_idx, reaction_embed, params, dims, n_heads
    )
    out = jax.block_until_ready(out)

    ref = reference_forward(
        orig_elem_fea, reaction_elem_idx, reaction_embed, params, dims, n_heads
    )

    assert out.shape == (N,)
    assert bool(jnp.all(jnp.isfinite(out)))
    assert bool(jnp.allclose(out, ref, atol=1e-3, rtol=1e-3)), (out, ref)

    print("KERNEL_OK")
</pallas_src>

<mosaic_0001>
module attributes {stable_mosaic.version = 11 : i64} {
  func.func @kernel(%arg0: memref<1x8xi32, #tpu.memory_space<vmem>>, %arg1: memref<32x8xf32, #tpu.memory_space<vmem>>, %arg2: memref<32x32xf32, #tpu.memory_space<vmem>>, %arg3: memref<32x1xf32, #tpu.memory_space<vmem>>, %arg4: memref<32x32xf32, #tpu.memory_space<vmem>>, %arg5: memref<32x1xf32, #tpu.memory_space<vmem>>, %arg6: memref<32x32xf32, #tpu.memory_space<vmem>>, %arg7: memref<32x1xf32, #tpu.memory_space<vmem>>, %arg8: memref<32x32xf32, #tpu.memory_space<vmem>>, %arg9: memref<32x1xf32, #tpu.memory_space<vmem>>, %arg10: memref<128x32xf32, #tpu.memory_space<vmem>>, %arg11: memref<128x1xf32, #tpu.memory_space<vmem>>, %arg12: memref<128x32xf32, #tpu.memory_space<vmem>>, %arg13: memref<128x128xf32, #tpu.memory_space<vmem>>, %arg14: memref<128x1xf32, #tpu.memory_space<vmem>>, %arg15: memref<64x128xf32, #tpu.memory_space<vmem>>, %arg16: memref<64x1xf32, #tpu.memory_space<vmem>>, %arg17: memref<64x128xf32, #tpu.memory_space<vmem>>, %arg18: memref<1x64xf32, #tpu.memory_space<vmem>>, %arg19: memref<1x1xf32, #tpu.memory_space<vmem>>, %arg20: memref<32x32xf32, #tpu.memory_space<vmem>>, %arg21: memref<32x1xf32, #tpu.memory_space<vmem>>, %arg22: memref<32x32xf32, #tpu.memory_space<vmem>>, %arg23: memref<32x1xf32, #tpu.memory_space<vmem>>, %arg24: memref<32x32xf32, #tpu.memory_space<vmem>>, %arg25: memref<32x1xf32, #tpu.memory_space<vmem>>, %arg26: memref<32x32xf32, #tpu.memory_space<vmem>>, %arg27: memref<32x1xf32, #tpu.memory_space<vmem>>, %arg28: memref<128x32xf32, #tpu.memory_space<vmem>>, %arg29: memref<128x1xf32, #tpu.memory_space<vmem>>, %arg30: memref<128x32xf32, #tpu.memory_space<vmem>>, %arg31: memref<128x128xf32, #tpu.memory_space<vmem>>, %arg32: memref<128x1xf32, #tpu.memory_space<vmem>>, %arg33: memref<64x128xf32, #tpu.memory_space<vmem>>, %arg34: memref<64x1xf32, #tpu.memory_space<vmem>>, %arg35: memref<64x128xf32, #tpu.memory_space<vmem>>, %arg36: memref<1x64xf32, #tpu.memory_space<vmem>>, %arg37: memref<1x1xf32, #tpu.memory_space<vmem>>, %arg38: memref<1x8xf32, #tpu.memory_space<vmem>>) attributes {dimension_semantics = [], scalar_prefetch = 0 : i64, scratch_operands = 0 : i64, tpu.core_type = #tpu.core_type<tc>} {
    %c0 = arith.constant 0 : index
    %c0_0 = arith.constant 0 : index
    %0 = vector.load %arg1[%c0, %c0_0] : memref<32x8xf32, #tpu.memory_space<vmem>>, vector<32x8xf32>
    %c0_1 = arith.constant 0 : index
    %c0_2 = arith.constant 0 : index
    %1 = vector.load %arg0[%c0_1, %c0_2] : memref<1x8xi32, #tpu.memory_space<vmem>>, vector<1x8xi32>
    %2 = tpu.iota {dimensions = array<i32: 0>} : vector<3x8xi32>
    %3 = vector.broadcast %1 : vector<1x8xi32> to vector<3x8xi32>
    %4 = arith.cmpi eq, %2, %3 : vector<3x8xi32>
    %cst = arith.constant 0.000000e+00 : f32
    %5 = vector.broadcast %cst : f32 to vector<1x8xf32>
    %c0_3 = arith.constant 0 : index
    %c0_4 = arith.constant 0 : index
    %6 = vector.load %arg2[%c0_3, %c0_4] : memref<32x32xf32, #tpu.memory_space<vmem>>, vector<32x32xf32>
    %c0_5 = arith.constant 0 : index
    %c0_6 = arith.constant 0 : index
    %7 = vector.load %arg3[%c0_5, %c0_6] : memref<32x1xf32, #tpu.memory_space<vmem>>, vector<32x1xf32>
    %cst_7 = arith.constant dense<0.000000e+00> : vector<32x8xf32>
    %8 = tpu.matmul %6, %0, %cst_7 {dimension_numbers = #tpu.dot_dimension_numbers<[1], [0], [0], [1], [0, 0, 1, 1], [], []>} : vector<32x32xf32>, vector<32x8xf32>, vector<32x8xf32> -> vector<32x8xf32>
    %9 = vector.broadcast %7 : vector<32x1xf32> to vector<32x8xf32>
    %10 = arith.addf %8, %9 : vector<32x8xf32>
    %cst_8 = arith.constant 0.000000e+00 : f32
    %11 = vector.broadcast %cst_8 : f32 to vector<32x8xf32>
    %12 = arith.maximumf %10, %11 : vector<32x8xf32>
    %13 = arith.addf %12, %0 : vector<32x8xf32>
    %c0_9 = arith.constant 0 : index
    %c0_10 = arith.constant 0 : index
    %14 = vector.load %arg4[%c0_9, %c0_10] : memref<32x32xf32, #tpu.memory_space<vmem>>, vector<32x32xf32>
    %c0_11 = arith.constant 0 : index
    %c0_12 = arith.constant 0 : index
    %15 = vector.load %arg5[%c0_11, %c0_12] : memref<32x1xf32, #tpu.memory_space<vmem>>, vector<32x1xf32>
    %cst_13 = arith.constant dense<0.000000e+00> : vector<32x8xf32>
    %16 = tpu.matmul %14, %13, %cst_13 {dimension_numbers = #tpu.dot_dimension_numbers<[1], [0], [0], [1], [0, 0, 1, 1], [], []>} : vector<32x32xf32>, vector<32x8xf32>, vector<32x8xf32> -> vector<32x8xf32>
    %17 = vector.broadcast %15 : vector<32x1xf32> to vector<32x8xf32>
    %18 = arith.addf %16, %17 : vector<32x8xf32>
    %cst_14 = arith.constant 0.000000e+00 : f32
    %19 = vector.broadcast %cst_14 : f32 to vector<32x8xf32>
    %20 = arith.maximumf %18, %19 : vector<32x8xf32>
    %21 = arith.addf %20, %13 : vector<32x8xf32>
    %c0_15 = arith.constant 0 : index
    %c0_16 = arith.constant 0 : index
    %22 = vector.load %arg6[%c0_15, %c0_16] : memref<32x32xf32, #tpu.memory_space<vmem>>, vector<32x32xf32>
    %c0_17 = arith.constant 0 : index
    %c0_18 = arith.constant 0 : index
    %23 = vector.load %arg7[%c0_17, %c0_18] : memref<32x1xf32, #tpu.memory_space<vmem>>, vector<32x1xf32>
    %cst_19 = arith.constant dense<0.000000e+00> : vector<32x8xf32>
    %24 = tpu.matmul %22, %21, %cst_19 {dimension_numbers = #tpu.dot_dimension_numbers<[1], [0], [0], [1], [0, 0, 1, 1], [], []>} : vector<32x32xf32>, vector<32x8xf32>, vector<32x8xf32> -> vector<32x8xf32>
    %25 = vector.broadcast %23 : vector<32x1xf32> to vector<32x8xf32>
    %26 = arith.addf %24, %25 : vector<32x8xf32>
    %cst_20 = arith.constant 0.000000e+00 : f32
    %27 = vector.broadcast %cst_20 : f32 to vector<32x8xf32>
    %28 = arith.maximumf %26, %27 : vector<32x8xf32>
    %29 = arith.addf %28, %21 : vector<32x8xf32>
    %c0_21 = arith.constant 0 : index
    %c0_22 = arith.constant 0 : index
    %30 = vector.load %arg8[%c0_21, %c0_22] : memref<32x32xf32, #tpu.memory_space<vmem>>, vector<32x32xf32>
    %c0_23 = arith.constant 0 : index
    %c0_24 = arith.constant 0 : index
    %31 = vector.load %arg9[%c0_23, %c0_24] : memref<32x1xf32, #tpu.memory_space<vmem>>, vector<32x1xf32>
    %cst_25 = arith.constant dense<0.000000e+00> : vector<32x8xf32>
    %32 = tpu.matmul %30, %29, %cst_25 {dimension_numbers = #tpu.dot_dimension_numbers<[1], [0], [0], [1], [0, 0, 1, 1], [], []>} : vector<32x32xf32>, vector<32x8xf32>, vector<32x8xf32> -> vector<32x8xf32>
    %33 = vector.broadcast %31 : vector<32x1xf32> to vector<32x8xf32>
    %34 = arith.addf %32, %33 : vector<32x8xf32>
    %cst_26 = arith.constant 0.000000e+00 : f32
    %35 = vector.broadcast %cst_26 : f32 to vector<32x8xf32>
    %36 = arith.maximumf %34, %35 : vector<32x8xf32>
    %37 = arith.addf %36, %29 : vector<32x8xf32>
    %c0_27 = arith.constant 0 : index
    %c0_28 = arith.constant 0 : index
    %38 = vector.load %arg10[%c0_27, %c0_28] : memref<128x32xf32, #tpu.memory_space<vmem>>, vector<128x32xf32>
    %c0_29 = arith.constant 0 : index
    %c0_30 = arith.constant 0 : index
    %39 = vector.load %arg11[%c0_29, %c0_30] : memref<128x1xf32, #tpu.memory_space<vmem>>, vector<128x1xf32>
    %cst_31 = arith.constant dense<0.000000e+00> : vector<128x8xf32>
    %40 = tpu.matmul %38, %37, %cst_31 {dimension_numbers = #tpu.dot_dimension_numbers<[1], [0], [0], [1], [0, 0, 1, 1], [], []>} : vector<128x32xf32>, vector<32x8xf32>, vector<128x8xf32> -> vector<128x8xf32>
    %41 = vector.broadcast %39 : vector<128x1xf32> to vector<128x8xf32>
    %42 = arith.addf %40, %41 : vector<128x8xf32>
    %c0_32 = arith.constant 0 : index
    %c0_33 = arith.constant 0 : index
    %43 = vector.load %arg12[%c0_32, %c0_33] : memref<128x32xf32, #tpu.memory_space<vmem>>, vector<128x32xf32>
    %cst_34 = arith.constant dense<0.000000e+00> : vector<128x8xf32>
    %44 = tpu.matmul %43, %37, %cst_34 {dimension_numbers = #tpu.dot_dimension_numbers<[1], [0], [0], [1], [0, 0, 1, 1], [], []>} : vector<128x32xf32>, vector<32x8xf32>, vector<128x8xf32> -> vector<128x8xf32>
    %cst_35 = arith.constant 0.000000e+00 : f32
    %45 = vector.broadcast %cst_35 : f32 to vector<128x8xf32>
    %46 = arith.maximumf %42, %45 : vector<128x8xf32>
    %47 = arith.addf %46, %44 : vector<128x8xf32>
    %c0_36 = arith.constant 0 : index
    %c0_37 = arith.constant 0 : index
    %48 = vector.load %arg13[%c0_36, %c0_37] : memref<128x128xf32, #tpu.memory_space<vmem>>, vector<128x128xf32>
    %c0_38 = arith.constant 0 : index
    %c0_39 = arith.constant 0 : index
    %49 = vector.load %arg14[%c0_38, %c0_39] : memref<128x1xf32, #tpu.memory_space<vmem>>, vector<128x1xf32>
    %cst_40 = arith.constant dense<0.000000e+00> : vector<128x8xf32>
    %50 = tpu.matmul %48, %47, %cst_40 {dimension_numbers = #tpu.dot_dimension_numbers<[1], [0], [0], [1], [0, 0, 1, 1], [], []>} : vector<128x128xf32>, vector<128x8xf32>, vector<128x8xf32> -> vector<128x8xf32>
    %51 = vector.broadcast %49 : vector<128x1xf32> to vector<128x8xf32>
    %52 = arith.addf %50, %51 : vector<128x8xf32>
    %cst_41 = arith.constant 0.000000e+00 : f32
    %53 = vector.broadcast %cst_41 : f32 to vector<128x8xf32>
    %54 = arith.maximumf %52, %53 : vector<128x8xf32>
    %55 = arith.addf %54, %47 : vector<128x8xf32>
    %c0_42 = arith.constant 0 : index
    %c0_43 = arith.constant 0 : index
    %56 = vector.load %arg15[%c0_42, %c0_43] : memref<64x128xf32, #tpu.memory_space<vmem>>, vector<64x128xf32>
    %c0_44 = arith.constant 0 : index
    %c0_45 = arith.constant 0 : index
    %57 = vector.load %arg16[%c0_44, %c0_45] : memref<64x1xf32, #tpu.memory_space<vmem>>, vector<64x1xf32>
    %cst_46 = arith.constant dense<0.000000e+00> : vector<64x8xf32>
    %58 = tpu.matmul %56, %55, %cst_46 {dimension_numbers = #tpu.dot_dimension_numbers<[1], [0], [0], [1], [0, 0, 1, 1], [], []>} : vector<64x128xf32>, vector<128x8xf32>, vector<64x8xf32> -> vector<64x8xf32>
    %59 = vector.broadcast %57 : vector<64x1xf32> to vector<64x8xf32>
    %60 = arith.addf %58, %59 : vector<64x8xf32>
    %c0_47 = arith.constant 0 : index
    %c0_48 = arith.constant 0 : index
    %61 = vector.load %arg17[%c0_47, %c0_48] : memref<64x128xf32, #tpu.memory_space<vmem>>, vector<64x128xf32>
    %cst_49 = arith.constant dense<0.000000e+00> : vector<64x8xf32>
    %62 = tpu.matmul %61, %55, %cst_49 {dimension_numbers = #tpu.dot_dimension_numbers<[1], [0], [0], [1], [0, 0, 1, 1], [], []>} : vector<64x128xf32>, vector<128x8xf32>, vector<64x8xf32> -> vector<64x8xf32>
    %cst_50 = arith.constant 0.000000e+00 : f32
    %63 = vector.broadcast %cst_50 : f32 to vector<64x8xf32>
    %64 = arith.maximumf %60, %63 : vector<64x8xf32>
    %65 = arith.addf %64, %62 : vector<64x8xf32>
    %c0_51 = arith.constant 0 : index
    %c0_52 = arith.constant 0 : index
    %66 = vector.load %arg18[%c0_51, %c0_52] : memref<1x64xf32, #tpu.memory_space<vmem>>, vector<1x64xf32>
    %c0_53 = arith.constant 0 : index
    %c0_54 = arith.constant 0 : index
    %67 = vector.load %arg19[%c0_53, %c0_54] : memref<1x1xf32, #tpu.memory_space<vmem>>, vector<1x1xf32>
    %cst_55 = arith.constant dense<0.000000e+00> : vector<1x8xf32>
    %68 = tpu.matmul %66, %65, %cst_55 {dimension_numbers = #tpu.dot_dimension_numbers<[1], [0], [0], [1], [0, 0, 1, 1], [], []>} : vector<1x64xf32>, vector<64x8xf32>, vector<1x8xf32> -> vector<1x8xf32>
    %69 = vector.broadcast %67 : vector<1x1xf32> to vector<1x8xf32>
    %70 = arith.addf %68, %69 : vector<1x8xf32>
    %cst_56 = arith.constant 0xFF800000 : f32
    %71 = vector.shape_cast %70 : vector<1x8xf32> to vector<1x8xf32>
    %72 = vector.broadcast %71 : vector<1x8xf32> to vector<3x8xf32>
    %73 = vector.broadcast %cst_56 : f32 to vector<3x8xf32>
    %74 = arith.select %4, %72, %73 : vector<3x8xi1>, vector<3x8xf32>
    %cst_57 = arith.constant dense<0xFF800000> : vector<3xf32>
    %75 = vector.multi_reduction <maximumf>, %74, %cst_57 [1] : vector<3x8xf32> to vector<3xf32>
    %76 = vector.shape_cast %75 : vector<3xf32> to vector<3x1xf32>
    %cst_58 = arith.constant 0xFF800000 : f32
    %77 = vector.shape_cast %76 : vector<3x1xf32> to vector<3x1xf32>
    %78 = vector.broadcast %77 : vector<3x1xf32> to vector<3x8xf32>
    %79 = vector.broadcast %cst_58 : f32 to vector<3x8xf32>
    %80 = arith.select %4, %78, %79 : vector<3x8xi1>, vector<3x8xf32>
    %cst_59 = arith.constant dense<0xFF800000> : vector<8xf32>
    %81 = vector.multi_reduction <maximumf>, %80, %cst_59 [0] : vector<3x8xf32> to vector<8xf32>
    %82 = vector.shape_cast %81 : vector<8xf32> to vector<1x8xf32>
    %83 = arith.subf %70, %82 : vector<1x8xf32>
    %84 = math.exp %83 : vector<1x8xf32>
    %cst_60 = arith.constant 0.000000e+00 : f32
    %85 = vector.shape_cast %84 : vector<1x8xf32> to vector<1x8xf32>
    %86 = vector.broadcast %85 : vector<1x8xf32> to vector<3x8xf32>
    %87 = vector.broadcast %cst_60 : f32 to vector<3x8xf32>
    %88 = arith.select %4, %86, %87 : vector<3x8xi1>, vector<3x8xf32>
    %cst_61 = arith.constant dense<0.000000e+00> : vector<3xf32>
    %89 = vector.multi_reduction <add>, %88, %cst_61 [1] : vector<3x8xf32> to vector<3xf32>
    %90 = vector.shape_cast %89 : vector<3xf32> to vector<3x1xf32>
    %cst_62 = arith.constant 0.000000e+00 : f32
    %91 = vector.shape_cast %90 : vector<3x1xf32> to vector<3x1xf32>
    %92 = vector.broadcast %91 : vector<3x1xf32> to vector<3x8xf32>
    %93 = vector.broadcast %cst_62 : f32 to vector<3x8xf32>
    %94 = arith.select %4, %92, %93 : vector<3x8xi1>, vector<3x8xf32>
    %cst_63 = arith.constant dense<0.000000e+00> : vector<8xf32>
    %95 = vector.multi_reduction <add>, %94, %cst_63 [0] : vector<3x8xf32> to vector<8xf32>
    %96 = vector.shape_cast %95 : vector<8xf32> to vector<1x8xf32>
    %cst_64 = arith.constant 9.99999982E-14 : f32
    %97 = vector.broadcast %cst_64 : f32 to vector<1x8xf32>
    %98 = arith.addf %96, %97 : vector<1x8xf32>
    %99 = arith.divf %84, %98 : vector<1x8xf32>
    %100 = arith.addf %5, %99 : vector<1x8xf32>
    %c0_65 = arith.constant 0 : index
    %c0_66 = arith.constant 0 : index
    %101 = vector.load %arg20[%c0_65, %c0_66] : memref<32x32xf32, #tpu.memory_space<vmem>>, vector<32x32xf32>
    %c0_67 = arith.constant 0 : index
    %c0_68 = arith.constant 0 : index
    %102 = vector.load %arg21[%c0_67, %c0_68] : memref<32x1xf32, #tpu.memory_space<vmem>>, vector<32x1xf32>
    %cst_69 = arith.constant dense<0.000000e+00> : vector<32x8xf32>
    %103 = tpu.matmul %101, %0, %cst_69 {dimension_numbers = #tpu.dot_dimension_numbers<[1], [0], [0], [1], [0, 0, 1, 1], [], []>} : vector<32x32xf32>, vector<32x8xf32>, vector<32x8xf32> -> vector<32x8xf32>
    %104 = vector.broadcast %102 : vector<32x1xf32> to vector<32x8xf32>
    %105 = arith.addf %103, %104 : vector<32x8xf32>
    %cst_70 = arith.constant 0.000000e+00 : f32
    %106 = vector.broadcast %cst_70 : f32 to vector<32x8xf32>
    %107 = arith.maximumf %105, %106 : vector<32x8xf32>
    %108 = arith.addf %107, %0 : vector<32x8xf32>
    %c0_71 = arith.constant 0 : index
    %c0_72 = arith.constant 0 : index
    %109 = vector.load %arg22[%c0_71, %c0_72] : memref<32x32xf32, #tpu.memory_space<vmem>>, vector<32x32xf32>
    %c0_73 = arith.constant 0 : index
    %c0_74 = arith.constant 0 : index
    %110 = vector.load %arg23[%c0_73, %c0_74] : memref<32x1xf32, #tpu.memory_space<vmem>>, vector<32x1xf32>
    %cst_75 = arith.constant dense<0.000000e+00> : vector<32x8xf32>
    %111 = tpu.matmul %109, %108, %cst_75 {dimension_numbers = #tpu.dot_dimension_numbers<[1], [0], [0], [1], [0, 0, 1, 1], [], []>} : vector<32x32xf32>, vector<32x8xf32>, vector<32x8xf32> -> vector<32x8xf32>
    %112 = vector.broadcast %110 : vector<32x1xf32> to vector<32x8xf32>
    %113 = arith.addf %111, %112 : vector<32x8xf32>
    %cst_76 = arith.constant 0.000000e+00 : f32
    %114 = vector.broadcast %cst_76 : f32 to vector<32x8xf32>
    %115 = arith.maximumf %113, %114 : vector<32x8xf32>
    %116 = arith.addf %115, %108 : vector<32x8xf32>
    %c0_77 = arith.constant 0 : index
    %c0_78 = arith.constant 0 : index
    %117 = vector.load %arg24[%c0_77, %c0_78] : memref<32x32xf32, #tpu.memory_space<vmem>>, vector<32x32xf32>
    %c0_79 = arith.constant 0 : index
    %c0_80 = arith.constant 0 : index
    %118 = vector.load %arg25[%c0_79, %c0_80] : memref<32x1xf32, #tpu.memory_space<vmem>>, vector<32x1xf32>
    %cst_81 = arith.constant dense<0.000000e+00> : vector<32x8xf32>
    %119 = tpu.matmul %117, %116, %cst_81 {dimension_numbers = #tpu.dot_dimension_numbers<[1], [0], [0], [1], [0, 0, 1, 1], [], []>} : vector<32x32xf32>, vector<32x8xf32>, vector<32x8xf32> -> vector<32x8xf32>
    %120 = vector.broadcast %118 : vector<32x1xf32> to vector<32x8xf32>
    %121 = arith.addf %119, %120 : vector<32x8xf32>
    %cst_82 = arith.constant 0.000000e+00 : f32
    %122 = vector.broadcast %cst_82 : f32 to vector<32x8xf32>
    %123 = arith.maximumf %121, %122 : vector<32x8xf32>
    %124 = arith.addf %123, %116 : vector<32x8xf32>
    %c0_83 = arith.constant 0 : index
    %c0_84 = arith.constant 0 : index
    %125 = vector.load %arg26[%c0_83, %c0_84] : memref<32x32xf32, #tpu.memory_space<vmem>>, vector<32x32xf32>
    %c0_85 = arith.constant 0 : index
    %c0_86 = arith.constant 0 : index
    %126 = vector.load %arg27[%c0_85, %c0_86] : memref<32x1xf32, #tpu.memory_space<vmem>>, vector<32x1xf32>
    %cst_87 = arith.constant dense<0.000000e+00> : vector<32x8xf32>
    %127 = tpu.matmul %125, %124, %cst_87 {dimension_numbers = #tpu.dot_dimension_numbers<[1], [0], [0], [1], [0, 0, 1, 1], [], []>} : vector<32x32xf32>, vector<32x8xf32>, vector<32x8xf32> -> vector<32x8xf32>
    %128 = vector.broadcast %126 : vector<32x1xf32> to vector<32x8xf32>
    %129 = arith.addf %127, %128 : vector<32x8xf32>
    %cst_88 = arith.constant 0.000000e+00 : f32
    %130 = vector.broadcast %cst_88 : f32 to vector<32x8xf32>
    %131 = arith.maximumf %129, %130 : vector<32x8xf32>
    %132 = arith.addf %131, %124 : vector<32x8xf32>
    %c0_89 = arith.constant 0 : index
    %c0_90 = arith.constant 0 : index
    %133 = vector.load %arg28[%c0_89, %c0_90] : memref<128x32xf32, #tpu.memory_space<vmem>>, vector<128x32xf32>
    %c0_91 = arith.constant 0 : index
    %c0_92 = arith.constant 0 : index
    %134 = vector.load %arg29[%c0_91, %c0_92] : memref<128x1xf32, #tpu.memory_space<vmem>>, vector<128x1xf32>
    %cst_93 = arith.constant dense<0.000000e+00> : vector<128x8xf32>
    %135 = tpu.matmul %133, %132, %cst_93 {dimension_numbers = #tpu.dot_dimension_numbers<[1], [0], [0], [1], [0, 0, 1, 1], [], []>} : vector<128x32xf32>, vector<32x8xf32>, vector<128x8xf32> -> vector<128x8xf32>
    %136 = vector.broadcast %134 : vector<128x1xf32> to vector<128x8xf32>
    %137 = arith.addf %135, %136 : vector<128x8xf32>
    %c0_94 = arith.constant 0 : index
    %c0_95 = arith.constant 0 : index
    %138 = vector.load %arg30[%c0_94, %c0_95] : memref<128x32xf32, #tpu.memory_space<vmem>>, vector<128x32xf32>
    %cst_96 = arith.constant dense<0.000000e+00> : vector<128x8xf32>
    %139 = tpu.matmul %138, %132, %cst_96 {dimension_numbers = #tpu.dot_dimension_numbers<[1], [0], [0], [1], [0, 0, 1, 1], [], []>} : vector<128x32xf32>, vector<32x8xf32>, vector<128x8xf32> -> vector<128x8xf32>
    %cst_97 = arith.constant 0.000000e+00 : f32
    %140 = vector.broadcast %cst_97 : f32 to vector<128x8xf32>
    %141 = arith.maximumf %137, %140 : vector<128x8xf32>
    %142 = arith.addf %141, %139 : vector<128x8xf32>
    %c0_98 = arith.constant 0 : index
    %c0_99 = arith.constant 0 : index
    %143 = vector.load %arg31[%c0_98, %c0_99] : memref<128x128xf32, #tpu.memory_space<vmem>>, vector<128x128xf32>
    %c0_100 = arith.constant 0 : index
    %c0_101 = arith.constant 0 : index
    %144 = vector.load %arg32[%c0_100, %c0_101] : memref<128x1xf32, #tpu.memory_space<vmem>>, vector<128x1xf32>
    %cst_102 = arith.constant dense<0.000000e+00> : vector<128x8xf32>
    %145 = tpu.matmul %143, %142, %cst_102 {dimension_numbers = #tpu.dot_dimension_numbers<[1], [0], [0], [1], [0, 0, 1, 1], [], []>} : vector<128x128xf32>, vector<128x8xf32>, vector<128x8xf32> -> vector<128x8xf32>
    %146 = vector.broadcast %144 : vector<128x1xf32> to vector<128x8xf32>
    %147 = arith.addf %145, %146 : vector<128x8xf32>
    %cst_103 = arith.constant 0.000000e+00 : f32
    %148 = vector.broadcast %cst_103 : f32 to vector<128x8xf32>
    %149 = arith.maximumf %147, %148 : vector<128x8xf32>
    %150 = arith.addf %149, %142 : vector<128x8xf32>
    %c0_104 = arith.constant 0 : index
    %c0_105 = arith.constant 0 : index
    %151 = vector.load %arg33[%c0_104, %c0_105] : memref<64x128xf32, #tpu.memory_space<vmem>>, vector<64x128xf32>
    %c0_106 = arith.constant 0 : index
    %c0_107 = arith.constant 0 : index
    %152 = vector.load %arg34[%c0_106, %c0_107] : memref<64x1xf32, #tpu.memory_space<vmem>>, vector<64x1xf32>
    %cst_108 = arith.constant dense<0.000000e+00> : vector<64x8xf32>
    %153 = tpu.matmul %151, %150, %cst_108 {dimension_numbers = #tpu.dot_dimension_numbers<[1], [0], [0], [1], [0, 0, 1, 1], [], []>} : vector<64x128xf32>, vector<128x8xf32>, vector<64x8xf32> -> vector<64x8xf32>
    %154 = vector.broadcast %152 : vector<64x1xf32> to vector<64x8xf32>
    %155 = arith.addf %153, %154 : vector<64x8xf32>
    %c0_109 = arith.constant 0 : index
    %c0_110 = arith.constant 0 : index
    %156 = vector.load %arg35[%c0_109, %c0_110] : memref<64x128xf32, #tpu.memory_space<vmem>>, vector<64x128xf32>
    %cst_111 = arith.constant dense<0.000000e+00> : vector<64x8xf32>
    %157 = tpu.matmul %156, %150, %cst_111 {dimension_numbers = #tpu.dot_dimension_numbers<[1], [0], [0], [1], [0, 0, 1, 1], [], []>} : vector<64x128xf32>, vector<128x8xf32>, vector<64x8xf32> -> vector<64x8xf32>
    %cst_112 = arith.constant 0.000000e+00 : f32
    %158 = vector.broadcast %cst_112 : f32 to vector<64x8xf32>
    %159 = arith.maximumf %155, %158 : vector<64x8xf32>
    %160 = arith.addf %159, %157 : vector<64x8xf32>
    %c0_113 = arith.constant 0 : index
    %c0_114 = arith.constant 0 : index
    %161 = vector.load %arg36[%c0_113, %c0_114] : memref<1x64xf32, #tpu.memory_space<vmem>>, vector<1x64xf32>
    %c0_115 = arith.constant 0 : index
    %c0_116 = arith.constant 0 : index
    %162 = vector.load %arg37[%c0_115, %c0_116] : memref<1x1xf32, #tpu.memory_space<vmem>>, vector<1x1xf32>
    %cst_117 = arith.constant dense<0.000000e+00> : vector<1x8xf32>
    %163 = tpu.matmul %161, %160, %cst_117 {dimension_numbers = #tpu.dot_dimension_numbers<[1], [0], [0], [1], [0, 0, 1, 1], [], []>} : vector<1x64xf32>, vector<64x8xf32>, vector<1x8xf32> -> vector<1x8xf32>
    %164 = vector.broadcast %162 : vector<1x1xf32> to vector<1x8xf32>
    %165 = arith.addf %163, %164 : vector<1x8xf32>
    %cst_118 = arith.constant 0xFF800000 : f32
    %166 = vector.shape_cast %165 : vector<1x8xf32> to vector<1x8xf32>
    %167 = vector.broadcast %166 : vector<1x8xf32> to vector<3x8xf32>
    %168 = vector.broadcast %cst_118 : f32 to vector<3x8xf32>
    %169 = arith.select %4, %167, %168 : vector<3x8xi1>, vector<3x8xf32>
    %cst_119 = arith.constant dense<0xFF800000> : vector<3xf32>
    %170 = vector.multi_reduction <maximumf>, %169, %cst_119 [1] : vector<3x8xf32> to vector<3xf32>
    %171 = vector.shape_cast %170 : vector<3xf32> to vector<3x1xf32>
    %cst_120 = arith.constant 0xFF800000 : f32
    %172 = vector.shape_cast %171 : vector<3x1xf32> to vector<3x1xf32>
    %173 = vector.broadcast %172 : vector<3x1xf32> to vector<3x8xf32>
    %174 = vector.broadcast %cst_120 : f32 to vector<3x8xf32>
    %175 = arith.select %4, %173, %174 : vector<3x8xi1>, vector<3x8xf32>
    %cst_121 = arith.constant dense<0xFF800000> : vector<8xf32>
    %176 = vector.multi_reduction <maximumf>, %175, %cst_121 [0] : vector<3x8xf32> to vector<8xf32>
    %177 = vector.shape_cast %176 : vector<8xf32> to vector<1x8xf32>
    %178 = arith.subf %165, %177 : vector<1x8xf32>
    %179 = math.exp %178 : vector<1x8xf32>
    %cst_122 = arith.constant 0.000000e+00 : f32
    %180 = vector.shape_cast %179 : vector<1x8xf32> to vector<1x8xf32>
    %181 = vector.broadcast %180 : vector<1x8xf32> to vector<3x8xf32>
    %182 = vector.broadcast %cst_122 : f32 to vector<3x8xf32>
    %183 = arith.select %4, %181, %182 : vector<3x8xi1>, vector<3x8xf32>
    %cst_123 = arith.constant dense<0.000000e+00> : vector<3xf32>
    %184 = vector.multi_reduction <add>, %183, %cst_123 [1] : vector<3x8xf32> to vector<3xf32>
    %185 = vector.shape_cast %184 : vector<3xf32> to vector<3x1xf32>
    %cst_124 = arith.constant 0.000000e+00 : f32
    %186 = vector.shape_cast %185 : vector<3x1xf32> to vector<3x1xf32>
    %187 = vector.broadcast %186 : vector<3x1xf32> to vector<3x8xf32>
    %188 = vector.broadcast %cst_124 : f32 to vector<3x8xf32>
    %189 = arith.select %4, %187, %188 : vector<3x8xi1>, vector<3x8xf32>
    %cst_125 = arith.constant dense<0.000000e+00> : vector<8xf32>
    %190 = vector.multi_reduction <add>, %189, %cst_125 [0] : vector<3x8xf32> to vector<8xf32>
    %191 = vector.shape_cast %190 : vector<8xf32> to vector<1x8xf32>
    %cst_126 = arith.constant 9.99999982E-14 : f32
    %192 = vector.broadcast %cst_126 : f32 to vector<1x8xf32>
    %193 = arith.addf %191, %192 : vector<1x8xf32>
    %194 = arith.divf %179, %193 : vector<1x8xf32>
    %195 = arith.addf %100, %194 : vector<1x8xf32>
    %cst_127 = arith.constant 5.000000e-01 : f32
    %196 = vector.broadcast %cst_127 : f32 to vector<1x8xf32>
    %197 = arith.mulf %195, %196 : vector<1x8xf32>
    %c0_128 = arith.constant 0 : index
    %c0_129 = arith.constant 0 : index
    %198 = vector.load %arg38[%c0_128, %c0_129] : memref<1x8xf32, #tpu.memory_space<vmem>>, vector<1x8xf32>
    tpu.vector_store %arg38[%c0_128, %c0_129], %197 {strides = array<i32>} : memref<1x8xf32, #tpu.memory_space<vmem>>, vector<1x8xf32>,
    return
  }
}

</mosaic_0001>

<llo_original>
// kernel: tpu_custom_call.1
$region0: #{tpu_custom_call.1}
  #allocation0 [shape = 'u32[]', space=smem, size = 0x4, offset = 0x4, fixed_abs, tag = 'smem constant byte address 0x4 - core index']
  #allocation1 [shape = 'u32[144,128]{1,0:T(1,128)}', space=vmem, size = 0x12000, scoped, tag = 'internal scratch']
  #allocation2 [shape = 'f32[1,1]{1,0:T(1,128)S(1)}', space=vmem, size = 0x200, scoped, tag = 'scoped memory for tpu_custom_call.1']
  #allocation3 [shape = 'f32[1,1]{1,0:T(1,128)S(1)}', space=vmem, size = 0x200, scoped, tag = 'scoped memory for tpu_custom_call.1']
  %s0 = inlined_call_operand.smem [shape: u32[39], index: -1, kind: input, shape index: {}]
  %s1 = sld [smem:[%s0]]
  %s2 = scalar_lea.smem %s0, 1
  %s3 = sld [smem:[%s2]]
  %s4 = scalar_lea.smem %s0, 2
  %s5 = sld [smem:[%s4]]
  %s6 = scalar_lea.smem %s0, 3
  %s7 = sld [smem:[%s6]]
  %s8 = scalar_lea.smem %s0, 4
  %s9 = sld [smem:[%s8]]
  %s10 = scalar_lea.smem %s0, 5
  %s11 = sld [smem:[%s10]]
  %s12 = scalar_lea.smem %s0, 6
  %s13 = sld [smem:[%s12]]
  %s14 = scalar_lea.smem %s0, 7
  %s15 = sld [smem:[%s14]]
  %s16 = scalar_lea.smem %s0, 8
  %s17 = sld [smem:[%s16]]
  %s18 = scalar_lea.smem %s0, 9
  %s19 = sld [smem:[%s18]]
  %s20 = scalar_lea.smem %s0, 10
  %s21 = sld [smem:[%s20]]
  %s22 = scalar_lea.smem %s0, 11
  %s23 = sld [smem:[%s22]]
  %s24 = scalar_lea.smem %s0, 12
  %s25 = sld [smem:[%s24]]
  %s26 = scalar_lea.smem %s0, 13
  %s27 = sld [smem:[%s26]]
  %s28 = scalar_lea.smem %s0, 14
  %s29 = sld [smem:[%s28]]
  %s30 = scalar_lea.smem %s0, 15
  %s31 = sld [smem:[%s30]]
  %s32 = scalar_lea.smem %s0, 16
  %s33 = sld [smem:[%s32]]
  %s34 = scalar_lea.smem %s0, 17
  %s35 = sld [smem:[%s34]]
  %s36 = scalar_lea.smem %s0, 18
  %s37 = sld [smem:[%s36]]
  %s38 = scalar_lea.smem %s0, 19
  %s39 = sld [smem:[%s38]]
  %s40 = scalar_lea.smem %s0, 20
  %s41 = sld [smem:[%s40]]
  %s42 = scalar_lea.smem %s0, 21
  %s43 = sld [smem:[%s42]]
  %s44 = scalar_lea.smem %s0, 22
  %s45 = sld [smem:[%s44]]
  %s46 = scalar_lea.smem %s0, 23
  %s47 = sld [smem:[%s46]]
  %s48 = scalar_lea.smem %s0, 24
  %s49 = sld [smem:[%s48]]
  %s50 = scalar_lea.smem %s0, 25
  %s51 = sld [smem:[%s50]]
  %s52 = scalar_lea.smem %s0, 26
  %s53 = sld [smem:[%s52]]
  %s54 = scalar_lea.smem %s0, 27
  %s55 = sld [smem:[%s54]]
  %s56 = scalar_lea.smem %s0, 28
  %s57 = sld [smem:[%s56]]
  %s58 = scalar_lea.smem %s0, 29
  %s59 = sld [smem:[%s58]]
  %s60 = scalar_lea.smem %s0, 30
  %s61 = sld [smem:[%s60]]
  %s62 = scalar_lea.smem %s0, 31
  %s63 = sld [smem:[%s62]]
  %s64 = scalar_lea.smem %s0, 32
  %s65 = sld [smem:[%s64]]
  %s66 = scalar_lea.smem %s0, 33
  %s67 = sld [smem:[%s66]]
  %s68 = scalar_lea.smem %s0, 34
  %s69 = sld [smem:[%s68]]
  %s70 = scalar_lea.smem %s0, 35
  %s71 = sld [smem:[%s70]]
  %s72 = scalar_lea.smem %s0, 36
  %s73 = sld [smem:[%s72]]
  %s74 = scalar_lea.smem %s0, 37
  %s75 = sld [smem:[%s74]]
  %s76 = scalar_lea.smem %s0, 38
  %s77 = sld [smem:[%s76]]
  %s78 = sld [smem:[#allocation0]]
  $region162: #{tpu_custom_call.1} parent=0
    _
  %s80 = ssub.s32 1, %s78
  %s81 = scalar_select 0, %s80, %s78
  %v82 = vstv %s39
  %83 = vst [vmem:[#allocation2] sm:$0x1] %v82
  %v84 = vstv %s75
  %85 = vst [vmem:[#allocation3] sm:$0x1] %v84
  $region1: #{tpu_custom_call.1} parent=0
    #allocation4 [shape = 'u8[512]{0}', space=vmem, size = 0x400, scoped, tag = 'output window, operand 0, single buffered']
    #allocation5 [shape = 's32[1]{0}', space=sflag, size = 0x4, scoped, tag = 'scoped memory for tpu_custom_call.1']
    %86 = vsyncpa [#allocation5], 0
    // Predicated region
    $region2: #{tpu_custom_call.1} parent=1 // pred_check
      _
    $region3: #{tpu_custom_call.1} parent=1 // pred_check_branch
      %88 = sbr.rel (0) target = $region5
    $region4: #{tpu_custom_call.1} parent=1 // pred_region
      _
    $region5: #{tpu_custom_call.1} parent=1 // pred_fallthru
      _
    // Predicated region
    $region6: #{tpu_custom_call.1} parent=1 // pred_check
      _
    $region7: #{tpu_custom_call.1} parent=1 // pred_check_branch
      %90 = sbr.rel (0) target = $region9
    $region8: #{tpu_custom_call.1} parent=1 // pred_region
      _
    $region9: #{tpu_custom_call.1} parent=1 // pred_fallthru
      _
    // Predicated region
    $region10: #{tpu_custom_call.1} parent=1 // pred_check
      _
    $region11: #{tpu_custom_call.1} parent=1 // pred_check_branch
      %92 = sbr.rel (0) target = $region13
    $region12: #{tpu_custom_call.1} parent=1 // pred_region
      _
    $region13: #{tpu_custom_call.1} parent=1 // pred_fallthru
      _
    // Predicated region
    $region14: #{tpu_custom_call.1} parent=1 // pred_check
      _
    $region15: #{tpu_custom_call.1} parent=1 // pred_check_branch
      %94 = sbr.rel (0) target = $region17
    $region16: #{tpu_custom_call.1} parent=1 // pred_region
      _
    $region17: #{tpu_custom_call.1} parent=1 // pred_fallthru
      _
    // Predicated region
    $region18: #{tpu_custom_call.1} parent=1 // pred_check
      _
    $region19: #{tpu_custom_call.1} parent=1 // pred_check_branch
      %96 = sbr.rel (0) target = $region21
    $region20: #{tpu_custom_call.1} parent=1 // pred_region
      _
    $region21: #{tpu_custom_call.1} parent=1 // pred_fallthru
      _
    // Predicated region
    $region22: #{tpu_custom_call.1} parent=1 // pred_check
      _
    $region23: #{tpu_custom_call.1} parent=1 // pred_check_branch
      %98 = sbr.rel (0) target = $region25
    $region24: #{tpu_custom_call.1} parent=1 // pred_region
      _
    $region25: #{tpu_custom_call.1} parent=1 // pred_fallthru
      _
    // Predicated region
    $region26: #{tpu_custom_call.1} parent=1 // pred_check
      _
    $region27: #{tpu_custom_call.1} parent=1 // pred_check_branch
      %100 = sbr.rel (0) target = $region29
    $region28: #{tpu_custom_call.1} parent=1 // pred_region
      _
    $region29: #{tpu_custom_call.1} parent=1 // pred_fallthru
      _
    // Predicated region
    $region30: #{tpu_custom_call.1} parent=1 // pred_check
      _
    $region31: #{tpu_custom_call.1} parent=1 // pred_check_branch
      %102 = sbr.rel (0) target = $region33
    $region32: #{tpu_custom_call.1} parent=1 // pred_region
      _
    $region33: #{tpu_custom_call.1} parent=1 // pred_fallthru
      _
    // Predicated region
    $region34: #{tpu_custom_call.1} parent=1 // pred_check
      _
    $region35: #{tpu_custom_call.1} parent=1 // pred_check_branch
      %104 = sbr.rel (0) target = $region37
    $region36: #{tpu_custom_call.1} parent=1 // pred_region
      _
    $region37: #{tpu_custom_call.1} parent=1 // pred_fallthru
      _
    // Predicated region
    $region38: #{tpu_custom_call.1} parent=1 // pred_check
      _
    $region39: #{tpu_custom_call.1} parent=1 // pred_check_branch
      %106 = sbr.rel (0) target = $region41
    $region40: #{tpu_custom_call.1} parent=1 // pred_region
      _
    $region41: #{tpu_custom_call.1} parent=1 // pred_fallthru
      _
    // Predicated region
    $region42: #{tpu_custom_call.1} parent=1 // pred_check
      _
    $region43: #{tpu_custom_call.1} parent=1 // pred_check_branch
      %108 = sbr.rel (0) target = $region45
    $region44: #{tpu_custom_call.1} parent=1 // pred_region
      _
    $region45: #{tpu_custom_call.1} parent=1 // pred_fallthru
      _
    // Predicated region
    $region46: #{tpu_custom_call.1} parent=1 // pred_check
      _
    $region47: #{tpu_custom_call.1} parent=1 // pred_check_branch
      %110 = sbr.rel (0) target = $region49
    $region48: #{tpu_custom_call.1} parent=1 // pred_region
      _
    $region49: #{tpu_custom_call.1} parent=1 // pred_fallthru
      _
    // Predicated region
    $region50: #{tpu_custom_call.1} parent=1 // pred_check
      _
    $region51: #{tpu_custom_call.1} parent=1 // pred_check_branch
      %112 = sbr.rel (0) target = $region53
    $region52: #{tpu_custom_call.1} parent=1 // pred_region
      _
    $region53: #{tpu_custom_call.1} parent=1 // pred_fallthru
      _
    // Predicated region
    $region54: #{tpu_custom_call.1} parent=1 // pred_check
      _
    $region55: #{tpu_custom_call.1} parent=1 // pred_check_branch
      %114 = sbr.rel (0) target = $region57
    $region56: #{tpu_custom_call.1} parent=1 // pred_region
      _
    $region57: #{tpu_custom_call.1} parent=1 // pred_fallthru
      _
    // Predicated region
    $region58: #{tpu_custom_call.1} parent=1 // pred_check
      _
    $region59: #{tpu_custom_call.1} parent=1 // pred_check_branch
      %116 = sbr.rel (0) target = $region61
    $region60: #{tpu_custom_call.1} parent=1 // pred_region
      _
    $region61: #{tpu_custom_call.1} parent=1 // pred_fallthru
      _
    // Predicated region
    $region62: #{tpu_custom_call.1} parent=1 // pred_check
      _
    $region63: #{tpu_custom_call.1} parent=1 // pred_check_branch
      %118 = sbr.rel (0) target = $region65
    $region64: #{tpu_custom_call.1} parent=1 // pred_region
      _
    $region65: #{tpu_custom_call.1} parent=1 // pred_fallthru
      _
    // Predicated region
    $region66: #{tpu_custom_call.1} parent=1 // pred_check
      _
    $region67: #{tpu_custom_call.1} parent=1 // pred_check_branch
      %120 = sbr.rel (0) target = $region69
    $region68: #{tpu_custom_call.1} parent=1 // pred_region
      _
    $region69: #{tpu_custom_call.1} parent=1 // pred_fallthru
      _
    // Predicated region
    $region70: #{tpu_custom_call.1} parent=1 // pred_check
      _
    $region71: #{tpu_custom_call.1} parent=1 // pred_check_branch
      %122 = sbr.rel (0) target = $region73
    $region72: #{tpu_custom_call.1} parent=1 // pred_region
      _
    $region73: #{tpu_custom_call.1} parent=1 // pred_fallthru
      _
    // Predicated region
    $region74: #{tpu_custom_call.1} parent=1 // pred_check
      _
    $region75: #{tpu_custom_call.1} parent=1 // pred_check_branch
      %124 = sbr.rel (0) target = $region77
    $region76: #{tpu_custom_call.1} parent=1 // pred_region
      _
    $region77: #{tpu_custom_call.1} parent=1 // pred_fallthru
      _
    // Predicated region
    $region78: #{tpu_custom_call.1} parent=1 // pred_check
      _
    $region79: #{tpu_custom_call.1} parent=1 // pred_check_branch
      %126 = sbr.rel (0) target = $region81
    $region80: #{tpu_custom_call.1} parent=1 // pred_region
      _
    $region81: #{tpu_custom_call.1} parent=1 // pred_fallthru
      _
    // Predicated region
    $region82: #{tpu_custom_call.1} parent=1 // pred_check
      _
    $region83: #{tpu_custom_call.1} parent=1 // pred_check_branch
      %128 = sbr.rel (0) target = $region85
    $region84: #{tpu_custom_call.1} parent=1 // pred_region
      _
    $region85: #{tpu_custom_call.1} parent=1 // pred_fallthru
      _
    // Predicated region
    $region86: #{tpu_custom_call.1} parent=1 // pred_check
      _
    $region87: #{tpu_custom_call.1} parent=1 // pred_check_branch
      %130 = sbr.rel (0) target = $region89
    $region88: #{tpu_custom_call.1} parent=1 // pred_region
      _
    $region89: #{tpu_custom_call.1} parent=1 // pred_fallthru
      _
    // Predicated region
    $region90: #{tpu_custom_call.1} parent=1 // pred_check
      _
    $region91: #{tpu_custom_call.1} parent=1 // pred_check_branch
      %132 = sbr.rel (0) target = $region93
    $region92: #{tpu_custom_call.1} parent=1 // pred_region
      _
    $region93: #{tpu_custom_call.1} parent=1 // pred_fallthru
      _
    // Predicated region
    $region94: #{tpu_custom_call.1} parent=1 // pred_check
      _
    $region95: #{tpu_custom_call.1} parent=1 // pred_check_branch
      %134 = sbr.rel (0) target = $region97
    $region96: #{tpu_custom_call.1} parent=1 // pred_region
      _
    $region97: #{tpu_custom_call.1} parent=1 // pred_fallthru
      _
    // Predicated region
    $region98: #{tpu_custom_call.1} parent=1 // pred_check
      _
    $region99: #{tpu_custom_call.1} parent=1 // pred_check_branch
      %136 = sbr.rel (0) target = $region101
    $region100: #{tpu_custom_call.1} parent=1 // pred_region
      _
    $region101: #{tpu_custom_call.1} parent=1 // pred_fallthru
      _
    // Predicated region
    $region102: #{tpu_custom_call.1} parent=1 // pred_check
      _
    $region103: #{tpu_custom_call.1} parent=1 // pred_check_branch
      %138 = sbr.rel (0) target = $region105
    $region104: #{tpu_custom_call.1} parent=1 // pred_region
      _
    $region105: #{tpu_custom_call.1} parent=1 // pred_fallthru
      _
    // Predicated region
    $region106: #{tpu_custom_call.1} parent=1 // pred_check
      _
    $region107: #{tpu_custom_call.1} parent=1 // pred_check_branch
      %140 = sbr.rel (0) target = $region109
    $region108: #{tpu_custom_call.1} parent=1 // pred_region
      _
    $region109: #{tpu_custom_call.1} parent=1 // pred_fallthru
      _
    // Predicated region
    $region110: #{tpu_custom_call.1} parent=1 // pred_check
      _
    $region111: #{tpu_custom_call.1} parent=1 // pred_check_branch
      %142 = sbr.rel (0) target = $region113
    $region112: #{tpu_custom_call.1} parent=1 // pred_region
      _
    $region113: #{tpu_custom_call.1} parent=1 // pred_fallthru
      _
    // Predicated region
    $region114: #{tpu_custom_call.1} parent=1 // pred_check
      _
    $region115: #{tpu_custom_call.1} parent=1 // pred_check_branch
      %144 = sbr.rel (0) target = $region117
    $region116: #{tpu_custom_call.1} parent=1 // pred_region
      _
    $region117: #{tpu_custom_call.1} parent=1 // pred_fallthru
      _
    // Predicated region
    $region118: #{tpu_custom_call.1} parent=1 // pred_check
      _
    $region119: #{tpu_custom_call.1} parent=1 // pred_check_branch
      %146 = sbr.rel (0) target = $region121
    $region120: #{tpu_custom_call.1} parent=1 // pred_region
      _
    $region121: #{tpu_custom_call.1} parent=1 // pred_fallthru
      _
    // Predicated region
    $region122: #{tpu_custom_call.1} parent=1 // pred_check
      _
    $region123: #{tpu_custom_call.1} parent=1 // pred_check_branch
      %148 = sbr.rel (0) target = $region125
    $region124: #{tpu_custom_call.1} parent=1 // pred_region
      _
    $region125: #{tpu_custom_call.1} parent=1 // pred_fallthru
      _
    // Predicated region
    $region126: #{tpu_custom_call.1} parent=1 // pred_check
      _
    $region127: #{tpu_custom_call.1} parent=1 // pred_check_branch
      %150 = sbr.rel (0) target = $region129
    $region128: #{tpu_custom_call.1} parent=1 // pred_region
      _
    $region129: #{tpu_custom_call.1} parent=1 // pred_fallthru
      _
    // Predicated region
    $region130: #{tpu_custom_call.1} parent=1 // pred_check
      _
    $region131: #{tpu_custom_call.1} parent=1 // pred_check_branch
      %152 = sbr.rel (0) target = $region133
    $region132: #{tpu_custom_call.1} parent=1 // pred_region
      _
    $region133: #{tpu_custom_call.1} parent=1 // pred_fallthru
      _
    // Predicated region
    $region134: #{tpu_custom_call.1} parent=1 // pred_check
      _
    $region135: #{tpu_custom_call.1} parent=1 // pred_check_branch
      %154 = sbr.rel (0) target = $region137
    $region136: #{tpu_custom_call.1} parent=1 // pred_region
      _
    $region137: #{tpu_custom_call.1} parent=1 // pred_fallthru
      _
    // Predicated region
    $region138: #{tpu_custom_call.1} parent=1 // pred_check
      _
    $region139: #{tpu_custom_call.1} parent=1 // pred_check_branch
      %156 = sbr.rel (0) target = $region141
    $region140: #{tpu_custom_call.1} parent=1 // pred_region
      _
    $region141: #{tpu_custom_call.1} parent=1 // pred_fallthru
      _
    // Predicated region
    $region142: #{tpu_custom_call.1} parent=1 // pred_check
      _
    $region143: #{tpu_custom_call.1} parent=1 // pred_check_branch
      %158 = sbr.rel (0) target = $region145
    $region144: #{tpu_custom_call.1} parent=1 // pred_region
      _
    $region145: #{tpu_custom_call.1} parent=1 // pred_fallthru
      _
    // Predicated region
    $region146: #{tpu_custom_call.1} parent=1 // pred_check
      _
    $region147: #{tpu_custom_call.1} parent=1 // pred_check_branch
      %160 = sbr.rel (0) target = $region149
    $region148: #{tpu_custom_call.1} parent=1 // pred_region
      _
    $region149: #{tpu_custom_call.1} parent=1 // pred_fallthru
      _
    // Predicated region
    $region150: #{tpu_custom_call.1} parent=1 // pred_check
      _
    $region151: #{tpu_custom_call.1} parent=1 // pred_check_branch
      %162 = sbr.rel (0) target = $region153
    $region152: #{tpu_custom_call.1} parent=1 // pred_region
      _
    $region153: #{tpu_custom_call.1} parent=1 // pred_fallthru
      _
    %v163 = vld [vmem:[%s3] sm:$0xff]
    %v164 = vld [vmem:[%s3 + $0x8] sm:$0xff]
    %v165 = vld [vmem:[%s3 + $0x10] sm:$0xff]
    %v166 = vld [vmem:[%s3 + $0x18] sm:$0xff]
    %v167 = vld [vmem:[%s1] sm:$0x1]
    %v168 = vlaneseq
    %v169 = vshrl.u32 %v168, 7
    %v170 = vlaneseq
    %v171 = vshrl.u32 %v170, 7
    %v172 = vsub.s32 0, %v171
    %v173 = vrot.slane %v167, %v172
    %vm174 = vcmp.eq.s32.totalorder %v169, %v173
    %v175 = vld [vmem:[%s5] sm:$0xff]
    %v176 = vld [vmem:[%s5 + $0x8] sm:$0xff]
    %v177 = vld [vmem:[%s5 + $0x10] sm:$0xff]
    %v178 = vld [vmem:[%s5 + $0x18] sm:$0xff]
    %v179 = vld [vmem:[%s7] sm:$0xff]
    %v180 = vld [vmem:[%s7 + $0x8] sm:$0xff]
    %v181 = vld [vmem:[%s7 + $0x10] sm:$0xff]
    %v182 = vld [vmem:[%s7 + $0x18] sm:$0xff]
    %184 = vset.pattern.permute.xlu0 0
    %185 = vperm.xlu0 %184, %v179
    %v186 = vpop.permute.xlu0 %185
    %189 = vset.pattern.permute.xlu0 0
    %190 = vperm.xlu0 %189, %v180
    %v191 = vpop.permute.xlu0 %190
    %194 = vset.pattern.permute.xlu0 0
    %195 = vperm.xlu0 %194, %v181
    %v196 = vpop.permute.xlu0 %195
    %199 = vset.pattern.permute.xlu0 0
    %200 = vperm.xlu0 %199, %v182
    %v201 = vpop.permute.xlu0 %200
    %vm203 = vcmask 261120
    %v205 = vsel %vm203, %v175, 0
    %v208 = vsel %vm203, %v176, 0
    %v211 = vsel %vm203, %v177, 0
    %v214 = vsel %vm203, %v178, 0
    %216 = vmatprep.subr.mxu0 0.0
    %217 = vmatpush1.msra.mxu0 %v163
    %218 = vmatprep.subr.mxu0 0.0
    %219 = vmatpush1.msra.mxu0 %v164
    %220 = vmatprep.subr.mxu0 0.0
    %221 = vmatpush1.msra.mxu0 %v165
    %222 = vmatprep.subr.mxu0 0.0
    %223 = vmatpush1.msra.mxu0 %v166
    %224 = vmatprep.subr.mxu0 0.0
    %225 = vmatpush1.msra.mxu0 0.0
    %226 = vmatprep.subr.mxu0 0.0
    %227 = vmatpush1.msra.mxu0 0.0
    %228 = vmatprep.subr.mxu0 0.0
    %229 = vmatpush1.msra.mxu0 0.0
    %230 = vmatprep.subr.mxu0 0.0
    %231 = vmatpush1.msra.mxu0 0.0
    %232 = vmatprep.subr.mxu0 0.0
    %233 = vmatpush1.msra.mxu0 0.0
    %234 = vmatprep.subr.mxu0 0.0
    %235 = vmatpush1.msra.mxu0 0.0
    %236 = vmatprep.subr.mxu0 0.0
    %237 = vmatpush1.msra.mxu0 0.0
    %238 = vmatprep.subr.mxu0 0.0
    %239 = vmatpush1.msra.mxu0 0.0
    %240 = vmatprep.subr.mxu0 0.0
    %241 = vmatpush1.msra.mxu0 0.0
    %242 = vmatprep.subr.mxu0 0.0
    %243 = vmatpush1.msra.mxu0 0.0
    %244 = vmatprep.subr.mxu0 0.0
    %245 = vmatpush1.msra.mxu0 0.0
    %246 = vmatprep.subr.mxu0 0.0
    %247 = vmatpush1.msra.mxu0 0.0
    %248 = vmatprep.subr.mxu0 0.0
    %249 = vmatpush1.msra.mxu0 0.0
    %250 = vmatprep.subr.mxu0 0.0
    %251 = vmatpush1.msra.mxu0 0.0
    %252 = vmatprep.subr.mxu0 0.0
    %253 = vmatpush1.msra.mxu0 0.0
    %254 = vmatprep.subr.mxu0 0.0
    %255 = vmatpush1.msra.mxu0 0.0
    %256 = vmatprep.subr.mxu0 0.0
    %257 = vmatpush1.msra.mxu0 0.0
    %258 = vmatprep.subr.mxu0 0.0
    %259 = vmatpush1.msra.mxu0 0.0
    %260 = vmatprep.subr.mxu0 0.0
    %261 = vmatpush1.msra.mxu0 0.0
    %262 = vmatprep.subr.mxu0 0.0
    %263 = vmatpush1.msra.mxu0 0.0
    %264 = vmatprep.subr.mxu0 0.0
    %265 = vmatpush1.msra.mxu0 0.0
    %266 = vmatprep.subr.mxu0 0.0
    %267 = vmatpush1.msra.mxu0 0.0
    %268 = vmatprep.subr.mxu0 0.0
    %269 = vmatpush1.msra.mxu0 0.0
    %270 = vmatprep.subr.mxu0 0.0
    %271 = vmatpush1.msra.mxu0 0.0
    %272 = vmatprep.subr.mxu0 0.0
    %273 = vmatpush1.msra.mxu0 0.0
    %274 = vmatprep.subr.mxu0 0.0
    %275 = vmatpush1.msra.mxu0 0.0
    %276 = vmatprep.subr.mxu0 0.0
    %277 = vmatpush1.msra.mxu0 0.0
    %278 = vmatprep.subr.mxu0 0.0
    %279 = vmatpush1.msra.mxu0 0.0
    %280 = vmatprep.mubr.f32.mxu0 0.0
    %281 = vmatmul.mubr.f32.gmra.mrb[0].mxu0 %v205
    %v282 = vpop.f32.mrb[0].mxu0
    %v283 = vadd.f32 %v186, %v282
    %v284 = vpop.f32.mrb[0].mxu0
    %285 = vmatprep.mubr.f32.mxu0 0.0
    %286 = vmatmul.mubr.f32.gmra.mrb[0].mxu0 %v208
    %v287 = vpop.f32.mrb[0].mxu0
    %v288 = vadd.f32 %v191, %v287
    %v289 = vpop.f32.mrb[0].mxu0
    %290 = vmatprep.mubr.f32.mxu0 0.0
    %291 = vmatmul.mubr.f32.gmra.mrb[0].mxu0 %v211
    %v292 = vpop.f32.mrb[0].mxu0
    %v293 = vadd.f32 %v196, %v292
    %v294 = vpop.f32.mrb[0].mxu0
    %295 = vmatprep.mubr.f32.mxu0 0.0
    %296 = vmatmul.mubr.f32.gmra.mrb[0].mxu0 %v214
    %v297 = vpop.f32.mrb[0].mxu0
    %v298 = vadd.f32 %v201, %v297
    %v299 = vpop.f32.mrb[0].mxu0
    %300 = vdwg.mxu0
    %v301 = vmax.f32 %v283, 0.0
    %v302 = vmax.f32 %v288, 0.0
    %v303 = vmax.f32 %v293, 0.0
    %v304 = vmax.f32 %v298, 0.0
    %v305 = vadd.f32 %v301, %v163
    %v306 = vadd.f32 %v302, %v164
    %v307 = vadd.f32 %v303, %v165
    %v308 = vadd.f32 %v304, %v166
    %v309 = vld [vmem:[%s9] sm:$0xff]
    %v310 = vld [vmem:[%s9 + $0x8] sm:$0xff]
    %v311 = vld [vmem:[%s9 + $0x10] sm:$0xff]
    %v312 = vld [vmem:[%s9 + $0x18] sm:$0xff]
    %v313 = vld [vmem:[%s11] sm:$0xff]
    %v314 = vld [vmem:[%s11 + $0x8] sm:$0xff]
    %v315 = vld [vmem:[%s11 + $0x10] sm:$0xff]
    %v316 = vld [vmem:[%s11 + $0x18] sm:$0xff]
    %318 = vset.pattern.permute.xlu0 0
    %319 = vperm.xlu0 %318, %v313
    %v320 = vpop.permute.xlu0 %319
    %323 = vset.pattern.permute.xlu0 0
    %324 = vperm.xlu0 %323, %v314
    %v325 = vpop.permute.xlu0 %324
    %328 = vset.pattern.permute.xlu0 0
    %329 = vperm.xlu0 %328, %v315
    %v330 = vpop.permute.xlu0 %329
    %333 = vset.pattern.permute.xlu0 0
    %334 = vperm.xlu0 %333, %v316
    %v335 = vpop.permute.xlu0 %334
    %v338 = vsel %vm203, %v309, 0
    %v341 = vsel %vm203, %v310, 0
    %v344 = vsel %vm203, %v311, 0
    %v347 = vsel %vm203, %v312, 0
    %349 = vmatprep.subr.mxu0 0.0
    %350 = vmatpush1.msra.mxu0 %v305
    %351 = vmatprep.subr.mxu0 0.0
    %352 = vmatpush1.msra.mxu0 %v306
    %353 = vmatprep.subr.mxu0 0.0
    %354 = vmatpush1.msra.mxu0 %v307
    %355 = vmatprep.subr.mxu0 0.0
    %356 = vmatpush1.msra.mxu0 %v308
    %357 = vmatprep.subr.mxu0 0.0
    %358 = vmatpush1.msra.mxu0 0.0
    %359 = vmatprep.subr.mxu0 0.0
    %360 = vmatpush1.msra.mxu0 0.0
    %361 = vmatprep.subr.mxu0 0.0
    %362 = vmatpush1.msra.mxu0 0.0
    %363 = vmatprep.subr.mxu0 0.0
    %364 = vmatpush1.msra.mxu0 0.0
    %365 = vmatprep.subr.mxu0 0.0
    %366 = vmatpush1.msra.mxu0 0.0
    %367 = vmatprep.subr.mxu0 0.0
    %368 = vmatpush1.msra.mxu0 0.0
    %369 = vmatprep.subr.mxu0 0.0
    %370 = vmatpush1.msra.mxu0 0.0
    %371 = vmatprep.subr.mxu0 0.0
    %372 = vmatpush1.msra.mxu0 0.0
    %373 = vmatprep.subr.mxu0 0.0
    %374 = vmatpush1.msra.mxu0 0.0
    %375 = vmatprep.subr.mxu0 0.0
    %376 = vmatpush1.msra.mxu0 0.0
    %377 = vmatprep.subr.mxu0 0.0
    %378 = vmatpush1.msra.mxu0 0.0
    %379 = vmatprep.subr.mxu0 0.0
    %380 = vmatpush1.msra.mxu0 0.0
    %381 = vmatprep.subr.mxu0 0.0
    %382 = vmatpush1.msra.mxu0 0.0
    %383 = vmatprep.subr.mxu0 0.0
    %384 = vmatpush1.msra.mxu0 0.0
    %385 = vmatprep.subr.mxu0 0.0
    %386 = vmatpush1.msra.mxu0 0.0
    %387 = vmatprep.subr.mxu0 0.0
    %388 = vmatpush1.msra.mxu0 0.0
    %389 = vmatprep.subr.mxu0 0.0
    %390 = vmatpush1.msra.mxu0 0.0
    %391 = vmatprep.subr.mxu0 0.0
    %392 = vmatpush1.msra.mxu0 0.0
    %393 = vmatprep.subr.mxu0 0.0
    %394 = vmatpush1.msra.mxu0 0.0
    %395 = vmatprep.subr.mxu0 0.0
    %396 = vmatpush1.msra.mxu0 0.0
    %397 = vmatprep.subr.mxu0 0.0
    %398 = vmatpush1.msra.mxu0 0.0
    %399 = vmatprep.subr.mxu0 0.0
    %400 = vmatpush1.msra.mxu0 0.0
    %401 = vmatprep.subr.mxu0 0.0
    %402 = vmatpush1.msra.mxu0 0.0
    %403 = vmatprep.subr.mxu0 0.0
    %404 = vmatpush1.msra.mxu0 0.0
    %405 = vmatprep.subr.mxu0 0.0
    %406 = vmatpush1.msra.mxu0 0.0
    %407 = vmatprep.subr.mxu0 0.0
    %408 = vmatpush1.msra.mxu0 0.0
    %409 = vmatprep.subr.mxu0 0.0
    %410 = vmatpush1.msra.mxu0 0.0
    %411 = vmatprep.subr.mxu0 0.0
    %412 = vmatpush1.msra.mxu0 0.0
    %413 = vmatprep.mubr.f32.mxu0 0.0
    %414 = vmatmul.mubr.f32.gmra.mrb[0].mxu0 %v338
    %v415 = vpop.f32.mrb[0].mxu0
    %v416 = vadd.f32 %v320, %v415
    %v417 = vpop.f32.mrb[0].mxu0
    %418 = vmatprep.mubr.f32.mxu0 0.0
    %419 = vmatmul.mubr.f32.gmra.mrb[0].mxu0 %v341
    %v420 = vpop.f32.mrb[0].mxu0
    %v421 = vadd.f32 %v325, %v420
    %v422 = vpop.f32.mrb[0].mxu0
    %423 = vmatprep.mubr.f32.mxu0 0.0
    %424 = vmatmul.mubr.f32.gmra.mrb[0].mxu0 %v344
    %v425 = vpop.f32.mrb[0].mxu0
    %v426 = vadd.f32 %v330, %v425
    %v427 = vpop.f32.mrb[0].mxu0
    %428 = vmatprep.mubr.f32.mxu0 0.0
    %429 = vmatmul.mubr.f32.gmra.mrb[0].mxu0 %v347
    %v430 = vpop.f32.mrb[0].mxu0
    %v431 = vadd.f32 %v335, %v430
    %v432 = vpop.f32.mrb[0].mxu0
    %433 = vdwg.mxu0
    %v434 = vmax.f32 %v416, 0.0
    %v435 = vmax.f32 %v421, 0.0
    %v436 = vmax.f32 %v426, 0.0
    %v437 = vmax.f32 %v431, 0.0
    %v438 = vadd.f32 %v434, %v305
    %v439 = vadd.f32 %v435, %v306
    %v440 = vadd.f32 %v436, %v307
    %v441 = vadd.f32 %v437, %v308
    %v442 = vld [vmem:[%s13] sm:$0xff]
    %v443 = vld [vmem:[%s13 + $0x8] sm:$0xff]
    %v444 = vld [vmem:[%s13 + $0x10] sm:$0xff]
    %v445 = vld [vmem:[%s13 + $0x18] sm:$0xff]
    %v446 = vld [vmem:[%s15] sm:$0xff]
    %v447 = vld [vmem:[%s15 + $0x8] sm:$0xff]
    %v448 = vld [vmem:[%s15 + $0x10] sm:$0xff]
    %v449 = vld [vmem:[%s15 + $0x18] sm:$0xff]
    %451 = vset.pattern.permute.xlu0 0
    %452 = vperm.xlu0 %451, %v446
    %v453 = vpop.permute.xlu0 %452
    %456 = vset.pattern.permute.xlu0 0
    %457 = vperm.xlu0 %456, %v447
    %v458 = vpop.permute.xlu0 %457
    %461 = vset.pattern.permute.xlu0 0
    %462 = vperm.xlu0 %461, %v448
    %v463 = vpop.permute.xlu0 %462
    %466 = vset.pattern.permute.xlu0 0
    %467 = vperm.xlu0 %466, %v449
    %v468 = vpop.permute.xlu0 %467
    %v471 = vsel %vm203, %v442, 0
    %v474 = vsel %vm203, %v443, 0
    %v477 = vsel %vm203, %v444, 0
    %v480 = vsel %vm203, %v445, 0
    %482 = vmatprep.subr.mxu0 0.0
    %483 = vmatpush1.msra.mxu0 %v438
    %484 = vmatprep.subr.mxu0 0.0
    %485 = vmatpush1.msra.mxu0 %v439
    %486 = vmatprep.subr.mxu0 0.0
    %487 = vmatpush1.msra.mxu0 %v440
    %488 = vmatprep.subr.mxu0 0.0
    %489 = vmatpush1.msra.mxu0 %v441
    %490 = vmatprep.subr.mxu0 0.0
    %491 = vmatpush1.msra.mxu0 0.0
    %492 = vmatprep.subr.mxu0 0.0
    %493 = vmatpush1.msra.mxu0 0.0
    %494 = vmatprep.subr.mxu0 0.0
    %495 = vmatpush1.msra.mxu0 0.0
    %496 = vmatprep.subr.mxu0 0.0
    %497 = vmatpush1.msra.mxu0 0.0
    %498 = vmatprep.subr.mxu0 0.0
    %499 = vmatpush1.msra.mxu0 0.0
    %500 = vmatprep.subr.mxu0 0.0
    %501 = vmatpush1.msra.mxu0 0.0
    %502 = vmatprep.subr.mxu0 0.0
    %503 = vmatpush1.msra.mxu0 0.0
    %504 = vmatprep.subr.mxu0 0.0
    %505 = vmatpush1.msra.mxu0 0.0
    %506 = vmatprep.subr.mxu0 0.0
    %507 = vmatpush1.msra.mxu0 0.0
    %508 = vmatprep.subr.mxu0 0.0
    %509 = vmatpush1.msra.mxu0 0.0
    %510 = vmatprep.subr.mxu0 0.0
    %511 = vmatpush1.msra.mxu0 0.0
    %512 = vmatprep.subr.mxu0 0.0
    %513 = vmatpush1.msra.mxu0 0.0
    %514 = vmatprep.subr.mxu0 0.0
    %515 = vmatpush1.msra.mxu0 0.0
    %516 = vmatprep.subr.mxu0 0.0
    %517 = vmatpush1.msra.mxu0 0.0
    %518 = vmatprep.subr.mxu0 0.0
    %519 = vmatpush1.msra.mxu0 0.0
    %520 = vmatprep.subr.mxu0 0.0
    %521 = vmatpush1.msra.mxu0 0.0
    %522 = vmatprep.subr.mxu0 0.0
    %523 = vmatpush1.msra.mxu0 0.0
    %524 = vmatprep.subr.mxu0 0.0
    %525 = vmatpush1.msra.mxu0 0.0
    %526 = vmatprep.subr.mxu0 0.0
    %527 = vmatpush1.msra.mxu0 0.0
    %528 = vmatprep.subr.mxu0 0.0
    %529 = vmatpush1.msra.mxu0 0.0
    %530 = vmatprep.subr.mxu0 0.0
    %531 = vmatpush1.msra.mxu0 0.0
    %532 = vmatprep.subr.mxu0 0.0
    %533 = vmatpush1.msra.mxu0 0.0
    %534 = vmatprep.subr.mxu0 0.0
    %535 = vmatpush1.msra.mxu0 0.0
    %536 = vmatprep.subr.mxu0 0.0
    %537 = vmatpush1.msra.mxu0 0.0
    %538 = vmatprep.subr.mxu0 0.0
    %539 = vmatpush1.msra.mxu0 0.0
    %540 = vmatprep.subr.mxu0 0.0
    %541 = vmatpush1.msra.mxu0 0.0
    %542 = vmatprep.subr.mxu0 0.0
    %543 = vmatpush1.msra.mxu0 0.0
    %544 = vmatprep.subr.mxu0 0.0
    %545 = vmatpush1.msra.mxu0 0.0
    %546 = vmatprep.mubr.f32.mxu0 0.0
    %547 = vmatmul.mubr.f32.gmra.mrb[0].mxu0 %v471
    %v548 = vpop.f32.mrb[0].mxu0
    %v549 = vadd.f32 %v453, %v548
    %v550 = vpop.f32.mrb[0].mxu0
    %551 = vmatprep.mubr.f32.mxu0 0.0
    %552 = vmatmul.mubr.f32.gmra.mrb[0].mxu0 %v474
    %v553 = vpop.f32.mrb[0].mxu0
    %v554 = vadd.f32 %v458, %v553
    %v555 = vpop.f32.mrb[0].mxu0
    %556 = vmatprep.mubr.f32.mxu0 0.0
    %557 = vmatmul.mubr.f32.gmra.mrb[0].mxu0 %v477
    %v558 = vpop.f32.mrb[0].mxu0
    %v559 = vadd.f32 %v463, %v558
    %v560 = vpop.f32.mrb[0].mxu0
    %561 = vmatprep.mubr.f32.mxu0 0.0
    %562 = vmatmul.mubr.f32.gmra.mrb[0].mxu0 %v480
    %v563 = vpop.f32.mrb[0].mxu0
    %v564 = vadd.f32 %v468, %v563
    %v565 = vpop.f32.mrb[0].mxu0
    %566 = vdwg.mxu0
    %v567 = vmax.f32 %v549, 0.0
    %v568 = vmax.f32 %v554, 0.0
    %v569 = vmax.f32 %v559, 0.0
    %v570 = vmax.f32 %v564, 0.0
    %v571 = vadd.f32 %v567, %v438
    %v572 = vadd.f32 %v568, %v439
    %v573 = vadd.f32 %v569, %v440
    %v574 = vadd.f32 %v570, %v441
    %v575 = vld [vmem:[%s17] sm:$0xff]
    %v576 = vld [vmem:[%s17 + $0x8] sm:$0xff]
    %v577 = vld [vmem:[%s17 + $0x10] sm:$0xff]
    %v578 = vld [vmem:[%s17 + $0x18] sm:$0xff]
    %v579 = vld [vmem:[%s19] sm:$0xff]
    %v580 = vld [vmem:[%s19 + $0x8] sm:$0xff]
    %v581 = vld [vmem:[%s19 + $0x10] sm:$0xff]
    %v582 = vld [vmem:[%s19 + $0x18] sm:$0xff]
    %584 = vset.pattern.permute.xlu0 0
    %585 = vperm.xlu0 %584, %v579
    %v586 = vpop.permute.xlu0 %585
    %589 = vset.pattern.permute.xlu0 0
    %590 = vperm.xlu0 %589, %v580
    %v591 = vpop.permute.xlu0 %590
    %594 = vset.pattern.permute.xlu0 0
    %595 = vperm.xlu0 %594, %v581
    %v596 = vpop.permute.xlu0 %595
    %599 = vset.pattern.permute.xlu0 0
    %600 = vperm.xlu0 %599, %v582
    %v601 = vpop.permute.xlu0 %600
    %v604 = vsel %vm203, %v575, 0
    %v607 = vsel %vm203, %v576, 0
    %v610 = vsel %vm203, %v577, 0
    %v613 = vsel %vm203, %v578, 0
    %615 = vmatprep.subr.mxu0 0.0
    %616 = vmatpush1.msra.mxu0 %v571
    %617 = vmatprep.subr.mxu0 0.0
    %618 = vmatpush1.msra.mxu0 %v572
    %619 = vmatprep.subr.mxu0 0.0
    %620 = vmatpush1.msra.mxu0 %v573
    %621 = vmatprep.subr.mxu0 0.0
    %622 = vmatpush1.msra.mxu0 %v574
    %623 = vmatprep.subr.mxu0 0.0
    %624 = vmatpush1.msra.mxu0 0.0
    %625 = vmatprep.subr.mxu0 0.0
    %626 = vmatpush1.msra.mxu0 0.0
    %627 = vmatprep.subr.mxu0 0.0
    %628 = vmatpush1.msra.mxu0 0.0
    %629 = vmatprep.subr.mxu0 0.0
    %630 = vmatpush1.msra.mxu0 0.0
    %631 = vmatprep.subr.mxu0 0.0
    %632 = vmatpush1.msra.mxu0 0.0
    %633 = vmatprep.subr.mxu0 0.0
    %634 = vmatpush1.msra.mxu0 0.0
    %635 = vmatprep.subr.mxu0 0.0
    %636 = vmatpush1.msra.mxu0 0.0
    %637 = vmatprep.subr.mxu0 0.0
    %638 = vmatpush1.msra.mxu0 0.0
    %639 = vmatprep.subr.mxu0 0.0
    %640 = vmatpush1.msra.mxu0 0.0
    %641 = vmatprep.subr.mxu0 0.0
    %642 = vmatpush1.msra.mxu0 0.0
    %643 = vmatprep.subr.mxu0 0.0
    %644 = vmatpush1.msra.mxu0 0.0
    %645 = vmatprep.subr.mxu0 0.0
    %646 = vmatpush1.msra.mxu0 0.0
    %647 = vmatprep.subr.mxu0 0.0
    %648 = vmatpush1.msra.mxu0 0.0
    %649 = vmatprep.subr.mxu0 0.0
    %650 = vmatpush1.msra.mxu0 0.0
    %651 = vmatprep.subr.mxu0 0.0
    %652 = vmatpush1.msra.mxu0 0.0
    %653 = vmatprep.subr.mxu0 0.0
    %654 = vmatpush1.msra.mxu0 0.0
    %655 = vmatprep.subr.mxu0 0.0
    %656 = vmatpush1.msra.mxu0 0.0
    %657 = vmatprep.subr.mxu0 0.0
    %658 = vmatpush1.msra.mxu0 0.0
    %659 = vmatprep.subr.mxu0 0.0
    %660 = vmatpush1.msra.mxu0 0.0
    %661 = vmatprep.subr.mxu0 0.0
    %662 = vmatpush1.msra.mxu0 0.0
    %663 = vmatprep.subr.mxu0 0.0
    %664 = vmatpush1.msra.mxu0 0.0
    %665 = vmatprep.subr.mxu0 0.0
    %666 = vmatpush1.msra.mxu0 0.0
    %667 = vmatprep.subr.mxu0 0.0
    %668 = vmatpush1.msra.mxu0 0.0
    %669 = vmatprep.subr.mxu0 0.0
    %670 = vmatpush1.msra.mxu0 0.0
    %671 = vmatprep.subr.mxu0 0.0
    %672 = vmatpush1.msra.mxu0 0.0
    %673 = vmatprep.subr.mxu0 0.0
    %674 = vmatpush1.msra.mxu0 0.0
    %675 = vmatprep.subr.mxu0 0.0
    %676 = vmatpush1.msra.mxu0 0.0
    %677 = vmatprep.subr.mxu0 0.0
    %678 = vmatpush1.msra.mxu0 0.0
    %679 = vmatprep.mubr.f32.mxu0 0.0
    %680 = vmatmul.mubr.f32.gmra.mrb[0].mxu0 %v604
    %v681 = vpop.f32.mrb[0].mxu0
    %v682 = vadd.f32 %v586, %v681
    %v683 = vpop.f32.mrb[0].mxu0
    %684 = vmatprep.mubr.f32.mxu0 0.0
    %685 = vmatmul.mubr.f32.gmra.mrb[0].mxu0 %v607
    %v686 = vpop.f32.mrb[0].mxu0
    %v687 = vadd.f32 %v591, %v686
    %v688 = vpop.f32.mrb[0].mxu0
    %689 = vmatprep.mubr.f32.mxu0 0.0
    %690 = vmatmul.mubr.f32.gmra.mrb[0].mxu0 %v610
    %v691 = vpop.f32.mrb[0].mxu0
    %v692 = vadd.f32 %v596, %v691
    %v693 = vpop.f32.mrb[0].mxu0
    %694 = vmatprep.mubr.f32.mxu0 0.0
    %695 = vmatmul.mubr.f32.gmra.mrb[0].mxu0 %v613
    %v696 = vpop.f32.mrb[0].mxu0
    %v697 = vadd.f32 %v601, %v696
    %v698 = vpop.f32.mrb[0].mxu0
    %699 = vdwg.mxu0
    %v700 = vmax.f32 %v682, 0.0
    %v701 = vmax.f32 %v687, 0.0
    %v702 = vmax.f32 %v692, 0.0
    %v703 = vmax.f32 %v697, 0.0
    %v704 = vadd.f32 %v700, %v571
    %v705 = vadd.f32 %v701, %v572
    %v706 = vadd.f32 %v702, %v573
    %v707 = vadd.f32 %v703, %v574
    %v708 = vld [vmem:[%s21] sm:$0xff]
    %v709 = vld [vmem:[%s21 + $0x8] sm:$0xff]
    %v710 = vld [vmem:[%s21 + $0x10] sm:$0xff]
    %v711 = vld [vmem:[%s21 + $0x18] sm:$0xff]
    %v712 = vld [vmem:[%s21 + $0x20] sm:$0xff]
    %v713 = vld [vmem:[%s21 + $0x28] sm:$0xff]
    %v714 = vld [vmem:[%s21 + $0x30] sm:$0xff]
    %v715 = vld [vmem:[%s21 + $0x38] sm:$0xff]
    %v716 = vld [vmem:[%s21 + $0x40] sm:$0xff]
    %v717 = vld [vmem:[%s21 + $0x48] sm:$0xff]
    %v718 = vld [vmem:[%s21 + $0x50] sm:$0xff]
    %v719 = vld [vmem:[%s21 + $0x58] sm:$0xff]
    %v720 = vld [vmem:[%s21 + $0x60] sm:$0xff]
    %v721 = vld [vmem:[%s21 + $0x68] sm:$0xff]
    %v722 = vld [vmem:[%s21 + $0x70] sm:$0xff]
    %v723 = vld [vmem:[%s21 + $0x78] sm:$0xff]
    %v724 = vld [vmem:[%s23] sm:$0xff]
    %v725 = vld [vmem:[%s23 + $0x8] sm:$0xff]
    %v726 = vld [vmem:[%s23 + $0x10] sm:$0xff]
    %v727 = vld [vmem:[%s23 + $0x18] sm:$0xff]
    %v728 = vld [vmem:[%s23 + $0x20] sm:$0xff]
    %v729 = vld [vmem:[%s23 + $0x28] sm:$0xff]
    %v730 = vld [vmem:[%s23 + $0x30] sm:$0xff]
    %v731 = vld [vmem:[%s23 + $0x38] sm:$0xff]
    %v732 = vld [vmem:[%s23 + $0x40] sm:$0xff]
    %v733 = vld [vmem:[%s23 + $0x48] sm:$0xff]
    %v734 = vld [vmem:[%s23 + $0x50] sm:$0xff]
    %v735 = vld [vmem:[%s23 + $0x58] sm:$0xff]
    %v736 = vld [vmem:[%s23 + $0x60] sm:$0xff]
    %v737 = vld [vmem:[%s23 + $0x68] sm:$0xff]
    %v738 = vld [vmem:[%s23 + $0x70] sm:$0xff]
    %v739 = vld [vmem:[%s23 + $0x78] sm:$0xff]
    %741 = vset.pattern.permute.xlu0 0
    %742 = vperm.xlu0 %741, %v724
    %v743 = vpop.permute.xlu0 %742
    %746 = vset.pattern.permute.xlu0 0
    %747 = vperm.xlu0 %746, %v725
    %v748 = vpop.permute.xlu0 %747
    %751 = vset.pattern.permute.xlu0 0
    %752 = vperm.xlu0 %751, %v726
    %v753 = vpop.permute.xlu0 %752
    %756 = vset.pattern.permute.xlu0 0
    %757 = vperm.xlu0 %756, %v727
    %v758 = vpop.permute.xlu0 %757
    %761 = vset.pattern.permute.xlu0 0
    %762 = vperm.xlu0 %761, %v728
    %v763 = vpop.permute.xlu0 %762
    %766 = vset.pattern.permute.xlu0 0
    %767 = vperm.xlu0 %766, %v729
    %v768 = vpop.permute.xlu0 %767
    %771 = vset.pattern.permute.xlu0 0
    %772 = vperm.xlu0 %771, %v730
    %v773 = vpop.permute.xlu0 %772
    %776 = vset.pattern.permute.xlu0 0
    %777 = vperm.xlu0 %776, %v731
    %v778 = vpop.permute.xlu0 %777
    %781 = vset.pattern.permute.xlu0 0
    %782 = vperm.xlu0 %781, %v732
    %v783 = vpop.permute.xlu0 %782
    %786 = vset.pattern.permute.xlu0 0
    %787 = vperm.xlu0 %786, %v733
    %v788 = vpop.permute.xlu0 %787
    %791 = vset.pattern.permute.xlu0 0
    %792 = vperm.xlu0 %791, %v734
    %v793 = vpop.permute.xlu0 %792
    %796 = vset.pattern.permute.xlu0 0
    %797 = vperm.xlu0 %796, %v735
    %v798 = vpop.permute.xlu0 %797
    %801 = vset.pattern.permute.xlu0 0
    %802 = vperm.xlu0 %801, %v736
    %v803 = vpop.permute.xlu0 %802
    %806 = vset.pattern.permute.xlu0 0
    %807 = vperm.xlu0 %806, %v737
    %v808 = vpop.permute.xlu0 %807
    %811 = vset.pattern.permute.xlu0 0
    %812 = vperm.xlu0 %811, %v738
    %v813 = vpop.permute.xlu0 %812
    %816 = vset.pattern.permute.xlu0 0
    %817 = vperm.xlu0 %816, %v739
    %v818 = vpop.permute.xlu0 %817
    %v821 = vsel %vm203, %v708, 0
    %v824 = vsel %vm203, %v709, 0
    %v827 = vsel %vm203, %v710, 0
    %v830 = vsel %vm203, %v711, 0
    %v833 = vsel %vm203, %v712, 0
    %v836 = vsel %vm203, %v713, 0
    %v839 = vsel %vm203, %v714, 0
    %v842 = vsel %vm203, %v715, 0
    %v845 = vsel %vm203, %v716, 0
    %v848 = vsel %vm203, %v717, 0
    %v851 = vsel %vm203, %v718, 0
    %v854 = vsel %vm203, %v719, 0
    %v857 = vsel %vm203, %v720, 0
    %v860 = vsel %vm203, %v721, 0
    %v863 = vsel %vm203, %v722, 0
    %v866 = vsel %vm203, %v723, 0
    %868 = vmatprep.subr.mxu0 0.0
    %869 = vmatpush1.msra.mxu0 %v704
    %870 = vmatprep.subr.mxu0 0.0
    %871 = vmatpush1.msra.mxu0 %v705
    %872 = vmatprep.subr.mxu0 0.0
    %873 = vmatpush1.msra.mxu0 %v706
    %874 = vmatprep.subr.mxu0 0.0
    %875 = vmatpush1.msra.mxu0 %v707
    %876 = vmatprep.subr.mxu0 0.0
    %877 = vmatpush1.msra.mxu0 0.0
    %878 = vmatprep.subr.mxu0 0.0
    %879 = vmatpush1.msra.mxu0 0.0
    %880 = vmatprep.subr.mxu0 0.0
    %881 = vmatpush1.msra.mxu0 0.0
    %882 = vmatprep.subr.mxu0 0.0
    %883 = vmatpush1.msra.mxu0 0.0
    %884 = vmatprep.subr.mxu0 0.0
    %885 = vmatpush1.msra.mxu0 0.0
    %886 = vmatprep.subr.mxu0 0.0
    %887 = vmatpush1.msra.mxu0 0.0
    %888 = vmatprep.subr.mxu0 0.0
    %889 = vmatpush1.msra.mxu0 0.0
    %890 = vmatprep.subr.mxu0 0.0
    %891 = vmatpush1.msra.mxu0 0.0
    %892 = vmatprep.subr.mxu0 0.0
    %893 = vmatpush1.msra.mxu0 0.0
    %894 = vmatprep.subr.mxu0 0.0
    %895 = vmatpush1.msra.mxu0 0.0
    %896 = vmatprep.subr.mxu0 0.0
    %897 = vmatpush1.msra.mxu0 0.0
    %898 = vmatprep.subr.mxu0 0.0
    %899 = vmatpush1.msra.mxu0 0.0
    %900 = vmatprep.subr.mxu0 0.0
    %901 = vmatpush1.msra.mxu0 0.0
    %902 = vmatprep.subr.mxu0 0.0
    %903 = vmatpush1.msra.mxu0 0.0
    %904 = vmatprep.subr.mxu0 0.0
    %905 = vmatpush1.msra.mxu0 0.0
    %906 = vmatprep.subr.mxu0 0.0
    %907 = vmatpush1.msra.mxu0 0.0
    %908 = vmatprep.subr.mxu0 0.0
    %909 = vmatpush1.msra.mxu0 0.0
    %910 = vmatprep.subr.mxu0 0.0
    %911 = vmatpush1.msra.mxu0 0.0
    %912 = vmatprep.subr.mxu0 0.0
    %913 = vmatpush1.msra.mxu0 0.0
    %914 = vmatprep.subr.mxu0 0.0
    %915 = vmatpush1.msra.mxu0 0.0
    %916 = vmatprep.subr.mxu0 0.0
    %917 = vmatpush1.msra.mxu0 0.0
    %918 = vmatprep.subr.mxu0 0.0
    %919 = vmatpush1.msra.mxu0 0.0
    %920 = vmatprep.subr.mxu0 0.0
    %921 = vmatpush1.msra.mxu0 0.0
    %922 = vmatprep.subr.mxu0 0.0
    %923 = vmatpush1.msra.mxu0 0.0
    %924 = vmatprep.subr.mxu0 0.0
    %925 = vmatpush1.msra.mxu0 0.0
    %926 = vmatprep.subr.mxu0 0.0
    %927 = vmatpush1.msra.mxu0 0.0
    %928 = vmatprep.subr.mxu0 0.0
    %929 = vmatpush1.msra.mxu0 0.0
    %930 = vmatprep.subr.mxu0 0.0
    %931 = vmatpush1.msra.mxu0 0.0
    %932 = vmatprep.mubr.f32.mxu0 0.0
    %933 = vmatmul.mubr.f32.gmra.mrb[0].mxu0 %v821
    %v934 = vpop.f32.mrb[0].mxu0
    %v935 = vadd.f32 %v743, %v934
    %v936 = vpop.f32.mrb[0].mxu0
    %937 = vmatprep.mubr.f32.mxu0 0.0
    %938 = vmatmul.mubr.f32.gmra.mrb[0].mxu0 %v824
    %v939 = vpop.f32.mrb[0].mxu0
    %v940 = vadd.f32 %v748, %v939
    %v941 = vpop.f32.mrb[0].mxu0
    %942 = vmatprep.mubr.f32.mxu0 0.0
    %943 = vmatmul.mubr.f32.gmra.mrb[0].mxu0 %v827
    %v944 = vpop.f32.mrb[0].mxu0
    %v945 = vadd.f32 %v753, %v944
    %v946 = vpop.f32.mrb[0].mxu0
    %947 = vmatprep.mubr.f32.mxu0 0.0
    %948 = vmatmul.mubr.f32.gmra.mrb[0].mxu0 %v830
    %v949 = vpop.f32.mrb[0].mxu0
    %v950 = vadd.f32 %v758, %v949
    %v951 = vpop.f32.mrb[0].mxu0
    %952 = vmatprep.mubr.f32.mxu0 0.0
    %953 = vmatmul.mubr.f32.gmra.mrb[0].mxu0 %v833
    %v954 = vpop.f32.mrb[0].mxu0
    %v955 = vadd.f32 %v763, %v954
    %v956 = vpop.f32.mrb[0].mxu0
    %957 = vmatprep.mubr.f32.mxu0 0.0
    %958 = vmatmul.mubr.f32.gmra.mrb[0].mxu0 %v836
    %v959 = vpop.f32.mrb[0].mxu0
    %v960 = vadd.f32 %v768, %v959
    %v961 = vpop.f32.mrb[0].mxu0
    %962 = vmatprep.mubr.f32.mxu0 0.0
    %963 = vmatmul.mubr.f32.gmra.mrb[0].mxu0 %v839
    %v964 = vpop.f32.mrb[0].mxu0
    %v965 = vadd.f32 %v773, %v964
    %v966 = vpop.f32.mrb[0].mxu0
    %967 = vmatprep.mubr.f32.mxu0 0.0
    %968 = vmatmul.mubr.f32.gmra.mrb[0].mxu0 %v842
    %v969 = vpop.f32.mrb[0].mxu0
    %v970 = vadd.f32 %v778, %v969
    %v971 = vpop.f32.mrb[0].mxu0
    %972 = vmatprep.mubr.f32.mxu0 0.0
    %973 = vmatmul.mubr.f32.gmra.mrb[0].mxu0 %v845
    %v974 = vpop.f32.mrb[0].mxu0
    %v975 = vadd.f32 %v783, %v974
    %v976 = vpop.f32.mrb[0].mxu0
    %977 = vmatprep.mubr.f32.mxu0 0.0
    %978 = vmatmul.mubr.f32.gmra.mrb[0].mxu0 %v848
    %v979 = vpop.f32.mrb[0].mxu0
    %v980 = vadd.f32 %v788, %v979
    %v981 = vpop.f32.mrb[0].mxu0
    %982 = vmatprep.mubr.f32.mxu0 0.0
    %983 = vmatmul.mubr.f32.gmra.mrb[0].mxu0 %v851
    %v984 = vpop.f32.mrb[0].mxu0
    %v985 = vadd.f32 %v793, %v984
    %v986 = vpop.f32.mrb[0].mxu0
    %987 = vmatprep.mubr.f32.mxu0 0.0
    %988 = vmatmul.mubr.f32.gmra.mrb[0].mxu0 %v854
    %v989 = vpop.f32.mrb[0].mxu0
    %v990 = vadd.f32 %v798, %v989
    %v991 = vpop.f32.mrb[0].mxu0
    %992 = vmatprep.mubr.f32.mxu0 0.0
    %993 = vmatmul.mubr.f32.gmra.mrb[0].mxu0 %v857
    %v994 = vpop.f32.mrb[0].mxu0
    %v995 = vadd.f32 %v803, %v994
    %v996 = vpop.f32.mrb[0].mxu0
    %997 = vmatprep.mubr.f32.mxu0 0.0
    %998 = vmatmul.mubr.f32.gmra.mrb[0].mxu0 %v860
    %v999 = vpop.f32.mrb[0].mxu0
    %v1000 = vadd.f32 %v808, %v999
    %v1001 = vpop.f32.mrb[0].mxu0
    %1002 = vmatprep.mubr.f32.mxu0 0.0
    %1003 = vmatmul.mubr.f32.gmra.mrb[0].mxu0 %v863
    %v1004 = vpop.f32.mrb[0].mxu0
    %v1005 = vadd.f32 %v813, %v1004
    %v1006 = vpop.f32.mrb[0].mxu0
    %1007 = vmatprep.mubr.f32.mxu0 0.0
    %1008 = vmatmul.mubr.f32.gmra.mrb[0].mxu0 %v866
    %v1009 = vpop.f32.mrb[0].mxu0
    %v1010 = vadd.f32 %v818, %v1009
    %v1011 = vpop.f32.mrb[0].mxu0
    %1012 = vdwg.mxu0
    %v1013 = vld [vmem:[%s25] sm:$0xff]
    %v1014 = vld [vmem:[%s25 + $0x8] sm:$0xff]
    %v1015 = vld [vmem:[%s25 + $0x10] sm:$0xff]
    %v1016 = vld [vmem:[%s25 + $0x18] sm:$0xff]
    %v1017 = vld [vmem:[%s25 + $0x20] sm:$0xff]
    %v1018 = vld [vmem:[%s25 + $0x28] sm:$0xff]
    %v1019 = vld [vmem:[%s25 + $0x30] sm:$0xff]
    %v1020 = vld [vmem:[%s25 + $0x38] sm:$0xff]
    %v1021 = vld [vmem:[%s25 + $0x40] sm:$0xff]
    %v1022 = vld [vmem:[%s25 + $0x48] sm:$0xff]
    %v1023 = vld [vmem:[%s25 + $0x50] sm:$0xff]
    %v1024 = vld [vmem:[%s25 + $0x58] sm:$0xff]
    %v1025 = vld [vmem:[%s25 + $0x60] sm:$0xff]
    %v1026 = vld [vmem:[%s25 + $0x68] sm:$0xff]
    %v1027 = vld [vmem:[%s25 + $0x70] sm:$0xff]
    %v1028 = vld [vmem:[%s25 + $0x78] sm:$0xff]
    %v1030 = vsel %vm203, %v1013, 0
    %v1033 = vsel %vm203, %v1014, 0
    %v1036 = vsel %vm203, %v1015, 0
    %v1039 = vsel %vm203, %v1016, 0
    %v1042 = vsel %vm203, %v1017, 0
    %v1045 = vsel %vm203, %v1018, 0
    %v1048 = vsel %vm203, %v1019, 0
    %v1051 = vsel %vm203, %v1020, 0
    %v1054 = vsel %vm203, %v1021, 0
    %v1057 = vsel %vm203, %v1022, 0
    %v1060 = vsel %vm203, %v1023, 0
    %v1063 = vsel %vm203, %v1024, 0
    %v1066 = vsel %vm203, %v1025, 0
    %v1069 = vsel %vm203, %v1026, 0
    %v1072 = vsel %vm203, %v1027, 0
    %v1075 = vsel %vm203, %v1028, 0
    %1077 = vmatprep.subr.mxu0 0.0
    %1078 = vmatpush1.msra.mxu0 %v704
    %1079 = vmatprep.subr.mxu0 0.0
    %1080 = vmatpush1.msra.mxu0 %v705
    %1081 = vmatprep.subr.mxu0 0.0
    %1082 = vmatpush1.msra.mxu0 %v706
    %1083 = vmatprep.subr.mxu0 0.0
    %1084 = vmatpush1.msra.mxu0 %v707
    %1085 = vmatprep.subr.mxu0 0.0
    %1086 = vmatpush1.msra.mxu0 0.0
    %1087 = vmatprep.subr.mxu0 0.0
    %1088 = vmatpush1.msra.mxu0 0.0
    %1089 = vmatprep.subr.mxu0 0.0
    %1090 = vmatpush1.msra.mxu0 0.0
    %1091 = vmatprep.subr.mxu0 0.0
    %1092 = vmatpush1.msra.mxu0 0.0
    %1093 = vmatprep.subr.mxu0 0.0
    %1094 = vmatpush1.msra.mxu0 0.0
    %1095 = vmatprep.subr.mxu0 0.0
    %1096 = vmatpush1.msra.mxu0 0.0
    %1097 = vmatprep.subr.mxu0 0.0
    %1098 = vmatpush1.msra.mxu0 0.0
    %1099 = vmatprep.subr.mxu0 0.0
    %1100 = vmatpush1.msra.mxu0 0.0
    %1101 = vmatprep.subr.mxu0 0.0
    %1102 = vmatpush1.msra.mxu0 0.0
    %1103 = vmatprep.subr.mxu0 0.0
    %1104 = vmatpush1.msra.mxu0 0.0
    %1105 = vmatprep.subr.mxu0 0.0
    %1106 = vmatpush1.msra.mxu0 0.0
    %1107 = vmatprep.subr.mxu0 0.0
    %1108 = vmatpush1.msra.mxu0 0.0
    %1109 = vmatprep.subr.mxu0 0.0
    %1110 = vmatpush1.msra.mxu0 0.0
    %1111 = vmatprep.subr.mxu0 0.0
    %1112 = vmatpush1.msra.mxu0 0.0
    %1113 = vmatprep.subr.mxu0 0.0
    %1114 = vmatpush1.msra.mxu0 0.0
    %1115 = vmatprep.subr.mxu0 0.0
    %1116 = vmatpush1.msra.mxu0 0.0
    %1117 = vmatprep.subr.mxu0 0.0
    %1118 = vmatpush1.msra.mxu0 0.0
    %1119 = vmatprep.subr.mxu0 0.0
    %1120 = vmatpush1.msra.mxu0 0.0
    %1121 = vmatprep.subr.mxu0 0.0
    %1122 = vmatpush1.msra.mxu0 0.0
    %1123 = vmatprep.subr.mxu0 0.0
    %1124 = vmatpush1.msra.mxu0 0.0
    %1125 = vmatprep.subr.mxu0 0.0
    %1126 = vmatpush1.msra.mxu0 0.0
    %1127 = vmatprep.subr.mxu0 0.0
    %1128 = vmatpush1.msra.mxu0 0.0
    %1129 = vmatprep.subr.mxu0 0.0
    %1130 = vmatpush1.msra.mxu0 0.0
    %1131 = vmatprep.subr.mxu0 0.0
    %1132 = vmatpush1.msra.mxu0 0.0
    %1133 = vmatprep.subr.mxu0 0.0
    %1134 = vmatpush1.msra.mxu0 0.0
    %1135 = vmatprep.subr.mxu0 0.0
    %1136 = vmatpush1.msra.mxu0 0.0
    %1137 = vmatprep.subr.mxu0 0.0
    %1138 = vmatpush1.msra.mxu0 0.0
    %1139 = vmatprep.subr.mxu0 0.0
    %1140 = vmatpush1.msra.mxu0 0.0
    %1141 = vmatprep.mubr.f32.mxu0 0.0
    %1142 = vmatmul.mubr.f32.gmra.mrb[0].mxu0 %v1030
    %v1143 = vpop.f32.mrb[0].mxu0
    %v1144 = vadd.f32 0.0, %v1143
    %v1145 = vpop.f32.mrb[0].mxu0
    %1146 = vmatprep.mubr.f32.mxu0 0.0
    %1147 = vmatmul.mubr.f32.gmra.mrb[0].mxu0 %v1033
    %v1148 = vpop.f32.mrb[0].mxu0
    %v1149 = vadd.f32 0.0, %v1148
    %v1150 = vpop.f32.mrb[0].mxu0
    %1151 = vmatprep.mubr.f32.mxu0 0.0
    %1152 = vmatmul.mubr.f32.gmra.mrb[0].mxu0 %v1036
    %v1153 = vpop.f32.mrb[0].mxu0
    %v1154 = vadd.f32 0.0, %v1153
    %v1155 = vpop.f32.mrb[0].mxu0
    %1156 = vmatprep.mubr.f32.mxu0 0.0
    %1157 = vmatmul.mubr.f32.gmra.mrb[0].mxu0 %v1039
    %v1158 = vpop.f32.mrb[0].mxu0
    %v1159 = vadd.f32 0.0, %v1158
    %v1160 = vpop.f32.mrb[0].mxu0
    %1161 = vmatprep.mubr.f32.mxu0 0.0
    %1162 = vmatmul.mubr.f32.gmra.mrb[0].mxu0 %v1042
    %v1163 = vpop.f32.mrb[0].mxu0
    %v1164 = vadd.f32 0.0, %v1163
    %v1165 = vpop.f32.mrb[0].mxu0
    %1166 = vmatprep.mubr.f32.mxu0 0.0
    %1167 = vmatmul.mubr.f32.gmra.mrb[0].mxu0 %v1045
    %v1168 = vpop.f32.mrb[0].mxu0
    %v1169 = vadd.f32 0.0, %v1168
    %v1170 = vpop.f32.mrb[0].mxu0
    %1171 = vmatprep.mubr.f32.mxu0 0.0
    %1172 = vmatmul.mubr.f32.gmra.mrb[0].mxu0 %v1048
    %v1173 = vpop.f32.mrb[0].mxu0
    %v1174 = vadd.f32 0.0, %v1173
    %v1175 = vpop.f32.mrb[0].mxu0
    %1176 = vmatprep.mubr.f32.mxu0 0.0
    %1177 = vmatmul.mubr.f32.gmra.mrb[0].mxu0 %v1051
    %v1178 = vpop.f32.mrb[0].mxu0
    %v1179 = vadd.f32 0.0, %v1178
    %v1180 = vpop.f32.mrb[0].mxu0
    %1181 = vmatprep.mubr.f32.mxu0 0.0
    %1182 = vmatmul.mubr.f32.gmra.mrb[0].mxu0 %v1054
    %v1183 = vpop.f32.mrb[0].mxu0
    %v1184 = vadd.f32 0.0, %v1183
    %v1185 = vpop.f32.mrb[0].mxu0
    %1186 = vmatprep.mubr.f32.mxu0 0.0
    %1187 = vmatmul.mubr.f32.gmra.mrb[0].mxu0 %v1057
    %v1188 = vpop.f32.mrb[0].mxu0
    %v1189 = vadd.f32 0.0, %v1188
    %v1190 = vpop.f32.mrb[0].mxu0
    %1191 = vmatprep.mubr.f32.mxu0 0.0
    %1192 = vmatmul.mubr.f32.gmra.mrb[0].mxu0 %v1060
    %v1193 = vpop.f32.mrb[0].mxu0
    %v1194 = vadd.f32 0.0, %v1193
    %v1195 = vpop.f32.mrb[0].mxu0
    %1196 = vmatprep.mubr.f32.mxu0 0.0
    %1197 = vmatmul.mubr.f32.gmra.mrb[0].mxu0 %v1063
    %v1198 = vpop.f32.mrb[0].mxu0
    %v1199 = vadd.f32 0.0, %v1198
    %v1200 = vpop.f32.mrb[0].mxu0
    %1201 = vmatprep.mubr.f32.mxu0 0.0
    %1202 = vmatmul.mubr.f32.gmra.mrb[0].mxu0 %v1066
    %v1203 = vpop.f32.mrb[0].mxu0
    %v1204 = vadd.f32 0.0, %v1203
    %v1205 = vpop.f32.mrb[0].mxu0
    %1206 = vmatprep.mubr.f32.mxu0 0.0
    %1207 = vmatmul.mubr.f32.gmra.mrb[0].mxu0 %v1069
    %v1208 = vpop.f32.mrb[0].mxu0
    %v1209 = vadd.f32 0.0, %v1208
    %v1210 = vpop.f32.mrb[0].mxu0
    %1211 = vmatprep.mubr.f32.mxu0 0.0
    %1212 = vmatmul.mubr.f32.gmra.mrb[0].mxu0 %v1072
    %v1213 = vpop.f32.mrb[0].mxu0
    %v1214 = vadd.f32 0.0, %v1213
    %v1215 = vpop.f32.mrb[0].mxu0
    %1216 = vmatprep.mubr.f32.mxu0 0.0
    %1217 = vmatmul.mubr.f32.gmra.mrb[0].mxu0 %v1075
    %v1218 = vpop.f32.mrb[0].mxu0
    %v1219 = vadd.f32 0.0, %v1218
    %v1220 = vpop.f32.mrb[0].mxu0
    %1221 = vdwg.mxu0
    %v1222 = vmax.f32 %v935, 0.0
    %v1223 = vmax.f32 %v940, 0.0
    %v1224 = vmax.f32 %v945, 0.0
    %v1225 = vmax.f32 %v950, 0.0
    %v1226 = vmax.f32 %v955, 0.0
    %v1227 = vmax.f32 %v960, 0.0
    %v1228 = vmax.f32 %v965, 0.0
    %v1229 = vmax.f32 %v970, 0.0
    %v1230 = vmax.f32 %v975, 0.0
    %v1231 = vmax.f32 %v980, 0.0
    %v1232 = vmax.f32 %v985, 0.0
    %v1233 = vmax.f32 %v990, 0.0
    %v1234 = vmax.f32 %v995, 0.0
    %v1235 = vmax.f32 %v1000, 0.0
    %v1236 = vmax.f32 %v1005, 0.0
    %v1237 = vmax.f32 %v1010, 0.0
    %v1238 = vadd.f32 %v1222, %v1144
    %v1239 = vadd.f32 %v1223, %v1149
    %v1240 = vadd.f32 %v1224, %v1154
    %v1241 = vadd.f32 %v1225, %v1159
    %v1242 = vadd.f32 %v1226, %v1164
    %v1243 = vadd.f32 %v1227, %v1169
    %v1244 = vadd.f32 %v1228, %v1174
    %v1245 = vadd.f32 %v1229, %v1179
    %v1246 = vadd.f32 %v1230, %v1184
    %v1247 = vadd.f32 %v1231, %v1189
    %v1248 = vadd.f32 %v1232, %v1194
    %v1249 = vadd.f32 %v1233, %v1199
    %v1250 = vadd.f32 %v1234, %v1204
    %v1251 = vadd.f32 %v1235, %v1209
    %v1252 = vadd.f32 %v1236, %v1214
    %v1253 = vadd.f32 %v1237, %v1219
    %v1254 = vld [vmem:[%s27] sm:$0xff]
    %v1255 = vld [vmem:[%s27 + $0x8] sm:$0xff]
    %v1256 = vld [vmem:[%s27 + $0x10] sm:$0xff]
    %v1257 = vld [vmem:[%s27 + $0x18] sm:$0xff]
    %v1258 = vld [vmem:[%s27 + $0x20] sm:$0xff]
    %v1259 = vld [vmem:[%s27 + $0x28] sm:$0xff]
    %v1260 = vld [vmem:[%s27 + $0x30] sm:$0xff]
    %v1261 = vld [vmem:[%s27 + $0x38] sm:$0xff]
    %v1262 = vld [vmem:[%s27 + $0x40] sm:$0xff]
    %v1263 = vld [vmem:[%s27 + $0x48] sm:$0xff]
    %v1264 = vld [vmem:[%s27 + $0x50] sm:$0xff]
    %v1265 = vld [vmem:[%s27 + $0x58] sm:$0xff]
    %v1266 = vld [vmem:[%s27 + $0x60] sm:$0xff]
    %v1267 = vld [vmem:[%s27 + $0x68] sm:$0xff]
    %v1268 = vld [vmem:[%s27 + $0x70] sm:$0xff]
    %v1269 = vld [vmem:[%s27 + $0x78] sm:$0xff]
    %v1270 = vld [vmem:[%s29] sm:$0xff]
    %v1271 = vld [vmem:[%s29 + $0x8] sm:$0xff]
    %v1272 = vld [vmem:[%s29 + $0x10] sm:$0xff]
    %v1273 = vld [vmem:[%s29 + $0x18] sm:$0xff]
    %v1274 = vld [vmem:[%s29 + $0x20] sm:$0xff]
    %v1275 = vld [vmem:[%s29 + $0x28] sm:$0xff]
    %v1276 = vld [vmem:[%s29 + $0x30] sm:$0xff]
    %v1277 = vld [vmem:[%s29 + $0x38] sm:$0xff]
    %v1278 = vld [vmem:[%s29 + $0x40] sm:$0xff]
    %v1279 = vld [vmem:[%s29 + $0x48] sm:$0xff]
    %v1280 = vld [vmem:[%s29 + $0x50] sm:$0xff]
    %v1281 = vld [vmem:[%s29 + $0x58] sm:$0xff]
    %v1282 = vld [vmem:[%s29 + $0x60] sm:$0xff]
    %v1283 = vld [vmem:[%s29 + $0x68] sm:$0xff]
    %v1284 = vld [vmem:[%s29 + $0x70] sm:$0xff]
    %v1285 = vld [vmem:[%s29 + $0x78] sm:$0xff]
    %1287 = vset.pattern.permute.xlu0 0
    %1288 = vperm.xlu0 %1287, %v1270
    %v1289 = vpop.permute.xlu0 %1288
    %1292 = vset.pattern.permute.xlu0 0
    %1293 = vperm.xlu0 %1292, %v1271
    %v1294 = vpop.permute.xlu0 %1293
    %1297 = vset.pattern.permute.xlu0 0
    %1298 = vperm.xlu0 %1297, %v1272
    %v1299 = vpop.permute.xlu0 %1298
    %1302 = vset.pattern.permute.xlu0 0
    %1303 = vperm.xlu0 %1302, %v1273
    %v1304 = vpop.permute.xlu0 %1303
    %1307 = vset.pattern.permute.xlu0 0
    %1308 = vperm.xlu0 %1307, %v1274
    %v1309 = vpop.permute.xlu0 %1308
    %1312 = vset.pattern.permute.xlu0 0
    %1313 = vperm.xlu0 %1312, %v1275
    %v1314 = vpop.permute.xlu0 %1313
    %1317 = vset.pattern.permute.xlu0 0
    %1318 = vperm.xlu0 %1317, %v1276
    %v1319 = vpop.permute.xlu0 %1318
    %1322 = vset.pattern.permute.xlu0 0
    %1323 = vperm.xlu0 %1322, %v1277
    %v1324 = vpop.permute.xlu0 %1323
    %1327 = vset.pattern.permute.xlu0 0
    %1328 = vperm.xlu0 %1327, %v1278
    %v1329 = vpop.permute.xlu0 %1328
    %1332 = vset.pattern.permute.xlu0 0
    %1333 = vperm.xlu0 %1332, %v1279
    %v1334 = vpop.permute.xlu0 %1333
    %1337 = vset.pattern.permute.xlu0 0
    %1338 = vperm.xlu0 %1337, %v1280
    %v1339 = vpop.permute.xlu0 %1338
    %1342 = vset.pattern.permute.xlu0 0
    %1343 = vperm.xlu0 %1342, %v1281
    %v1344 = vpop.permute.xlu0 %1343
    %1347 = vset.pattern.permute.xlu0 0
    %1348 = vperm.xlu0 %1347, %v1282
    %v1349 = vpop.permute.xlu0 %1348
    %1352 = vset.pattern.permute.xlu0 0
    %1353 = vperm.xlu0 %1352, %v1283
    %v1354 = vpop.permute.xlu0 %1353
    %1357 = vset.pattern.permute.xlu0 0
    %1358 = vperm.xlu0 %1357, %v1284
    %v1359 = vpop.permute.xlu0 %1358
    %1362 = vset.pattern.permute.xlu0 0
    %1363 = vperm.xlu0 %1362, %v1285
    %v1364 = vpop.permute.xlu0 %1363
    %1366 = vmatprep.subr.mxu0 0.0
    %1367 = vmatpush1.msra.mxu0 %v1238
    %1368 = vmatprep.subr.mxu0 0.0
    %1369 = vmatpush1.msra.mxu0 %v1239
    %1370 = vmatprep.subr.mxu0 0.0
    %1371 = vmatpush1.msra.mxu0 %v1240
    %1372 = vmatprep.subr.mxu0 0.0
    %1373 = vmatpush1.msra.mxu0 %v1241
    %1374 = vmatprep.subr.mxu0 0.0
    %1375 = vmatpush1.msra.mxu0 %v1242
    %1376 = vmatprep.subr.mxu0 0.0
    %1377 = vmatpush1.msra.mxu0 %v1243
    %1378 = vmatprep.subr.mxu0 0.0
    %1379 = vmatpush1.msra.mxu0 %v1244
    %1380 = vmatprep.subr.mxu0 0.0
    %1381 = vmatpush1.msra.mxu0 %v1245
    %1382 = vmatprep.subr.mxu0 0.0
    %1383 = vmatpush1.msra.mxu0 %v1246
    %1384 = vmatprep.subr.mxu0 0.0
    %1385 = vmatpush1.msra.mxu0 %v1247
    %1386 = vmatprep.subr.mxu0 0.0
    %1387 = vmatpush1.msra.mxu0 %v1248
    %1388 = vmatprep.subr.mxu0 0.0
    %1389 = vmatpush1.msra.mxu0 %v1249
    %1390 = vmatprep.subr.mxu0 0.0
    %1391 = vmatpush1.msra.mxu0 %v1250
    %1392 = vmatprep.subr.mxu0 0.0
    %1393 = vmatpush1.msra.mxu0 %v1251
    %1394 = vmatprep.subr.mxu0 0.0
    %1395 = vmatpush1.msra.mxu0 %v1252
    %1396 = vmatprep.subr.mxu0 0.0
    %1397 = vmatpush1.msra.mxu0 %v1253
    %1398 = vmatprep.subr.mxu0 0.0
    %1399 = vmatpush1.msra.mxu0 0.0
    %1400 = vmatprep.subr.mxu0 0.0
    %1401 = vmatpush1.msra.mxu0 0.0
    %1402 = vmatprep.subr.mxu0 0.0
    %1403 = vmatpush1.msra.mxu0 0.0
    %1404 = vmatprep.subr.mxu0 0.0
    %1405 = vmatpush1.msra.mxu0 0.0
    %1406 = vmatprep.subr.mxu0 0.0
    %1407 = vmatpush1.msra.mxu0 0.0
    %1408 = vmatprep.subr.mxu0 0.0
    %1409 = vmatpush1.msra.mxu0 0.0
    %1410 = vmatprep.subr.mxu0 0.0
    %1411 = vmatpush1.msra.mxu0 0.0
    %1412 = vmatprep.subr.mxu0 0.0
    %1413 = vmatpush1.msra.mxu0 0.0
    %1414 = vmatprep.subr.mxu0 0.0
    %1415 = vmatpush1.msra.mxu0 0.0
    %1416 = vmatprep.subr.mxu0 0.0
    %1417 = vmatpush1.msra.mxu0 0.0
    %1418 = vmatprep.subr.mxu0 0.0
    %1419 = vmatpush1.msra.mxu0 0.0
    %1420 = vmatprep.subr.mxu0 0.0
    %1421 = vmatpush1.msra.mxu0 0.0
    %1422 = vmatprep.subr.mxu0 0.0
    %1423 = vmatpush1.msra.mxu0 0.0
    %1424 = vmatprep.subr.mxu0 0.0
    %1425 = vmatpush1.msra.mxu0 0.0
    %1426 = vmatprep.subr.mxu0 0.0
    %1427 = vmatpush1.msra.mxu0 0.0
    %1428 = vmatprep.subr.mxu0 0.0
    %1429 = vmatpush1.msra.mxu0 0.0
    %1430 = vmatprep.mubr.f32.mxu0 0.0
    %1431 = vmatmul.mubr.f32.gmra.mrb[0].mxu0 %v1254
    %v1432 = vpop.f32.mrb[0].mxu0
    %v1433 = vadd.f32 %v1289, %v1432
    %v1434 = vpop.f32.mrb[0].mxu0
    %1435 = vmatprep.mubr.f32.mxu0 0.0
    %1436 = vmatmul.mubr.f32.gmra.mrb[0].mxu0 %v1255
    %v1437 = vpop.f32.mrb[0].mxu0
    %v1438 = vadd.f32 %v1294, %v1437
    %v1439 = vpop.f32.mrb[0].mxu0
    %1440 = vmatprep.mubr.f32.mxu0 0.0
    %1441 = vmatmul.mubr.f32.gmra.mrb[0].mxu0 %v1256
    %v1442 = vpop.f32.mrb[0].mxu0
    %v1443 = vadd.f32 %v1299, %v1442
    %v1444 = vpop.f32.mrb[0].mxu0
    %1445 = vmatprep.mubr.f32.mxu0 0.0
    %1446 = vmatmul.mubr.f32.gmra.mrb[0].mxu0 %v1257
    %v1447 = vpop.f32.mrb[0].mxu0
    %v1448 = vadd.f32 %v1304, %v1447
    %v1449 = vpop.f32.mrb[0].mxu0
    %1450 = vmatprep.mubr.f32.mxu0 0.0
    %1451 = vmatmul.mubr.f32.gmra.mrb[0].mxu0 %v1258
    %v1452 = vpop.f32.mrb[0].mxu0
    %v1453 = vadd.f32 %v1309, %v1452
    %v1454 = vpop.f32.mrb[0].mxu0
    %1455 = vmatprep.mubr.f32.mxu0 0.0
    %1456 = vmatmul.mubr.f32.gmra.mrb[0].mxu0 %v1259
    %v1457 = vpop.f32.mrb[0].mxu0
    %v1458 = vadd.f32 %v1314, %v1457
    %v1459 = vpop.f32.mrb[0].mxu0
    %1460 = vmatprep.mubr.f32.mxu0 0.0
    %1461 = vmatmul.mubr.f32.gmra.mrb[0].mxu0 %v1260
    %v1462 = vpop.f32.mrb[0].mxu0
    %v1463 = vadd.f32 %v1319, %v1462
    %v1464 = vpop.f32.mrb[0].mxu0
    %1465 = vmatprep.mubr.f32.mxu0 0.0
    %1466 = vmatmul.mubr.f32.gmra.mrb[0].mxu0 %v1261
    %v1467 = vpop.f32.mrb[0].mxu0
    %v1468 = vadd.f32 %v1324, %v1467
    %v1469 = vpop.f32.mrb[0].mxu0
    %1470 = vmatprep.mubr.f32.mxu0 0.0
    %1471 = vmatmul.mubr.f32.gmra.mrb[0].mxu0 %v1262
    %v1472 = vpop.f32.mrb[0].mxu0
    %v1473 = vadd.f32 %v1329, %v1472
    %v1474 = vpop.f32.mrb[0].mxu0
    %1475 = vmatprep.mubr.f32.mxu0 0.0
    %1476 = vmatmul.mubr.f32.gmra.mrb[0].mxu0 %v1263
    %v1477 = vpop.f32.mrb[0].mxu0
    %v1478 = vadd.f32 %v1334, %v1477
    %v1479 = vpop.f32.mrb[0].mxu0
    %1480 = vmatprep.mubr.f32.mxu0 0.0
    %1481 = vmatmul.mubr.f32.gmra.mrb[0].mxu0 %v1264
    %v1482 = vpop.f32.mrb[0].mxu0
    %v1483 = vadd.f32 %v1339, %v1482
    %v1484 = vpop.f32.mrb[0].mxu0
    %1485 = vmatprep.mubr.f32.mxu0 0.0
    %1486 = vmatmul.mubr.f32.gmra.mrb[0].mxu0 %v1265
    %v1487 = vpop.f32.mrb[0].mxu0
    %v1488 = vadd.f32 %v1344, %v1487
    %v1489 = vpop.f32.mrb[0].mxu0
    %1490 = vmatprep.mubr.f32.mxu0 0.0
    %1491 = vmatmul.mubr.f32.gmra.mrb[0].mxu0 %v1266
    %v1492 = vpop.f32.mrb[0].mxu0
    %v1493 = vadd.f32 %v1349, %v1492
    %v1494 = vpop.f32.mrb[0].mxu0
    %1495 = vmatprep.mubr.f32.mxu0 0.0
    %1496 = vmatmul.mubr.f32.gmra.mrb[0].mxu0 %v1267
    %v1497 = vpop.f32.mrb[0].mxu0
    %v1498 = vadd.f32 %v1354, %v1497
    %v1499 = vpop.f32.mrb[0].mxu0
    %1500 = vmatprep.mubr.f32.mxu0 0.0
    %1501 = vmatmul.mubr.f32.gmra.mrb[0].mxu0 %v1268
    %v1502 = vpop.f32.mrb[0].mxu0
    %v1503 = vadd.f32 %v1359, %v1502
    %v1504 = vpop.f32.mrb[0].mxu0
    %1505 = vmatprep.mubr.f32.mxu0 0.0
    %1506 = vmatmul.mubr.f32.gmra.mrb[0].mxu0 %v1269
    %v1507 = vpop.f32.mrb[0].mxu0
    %v1508 = vadd.f32 %v1364, %v1507
    %v1509 = vpop.f32.mrb[0].mxu0
    %1510 = vdwg.mxu0
    %v1511 = vmax.f32 %v1433, 0.0
    %v1512 = vmax.f32 %v1438, 0.0
    %v1513 = vmax.f32 %v1443, 0.0
    %v1514 = vmax.f32 %v1448, 0.0
    %v1515 = vmax.f32 %v1453, 0.0
    %v1516 = vmax.f32 %v1458, 0.0
    %v1517 = vmax.f32 %v1463, 0.0
    %v1518 = vmax.f32 %v1468, 0.0
    %v1519 = vmax.f32 %v1473, 0.0
    %v1520 = vmax.f32 %v1478, 0.0
    %v1521 = vmax.f32 %v1483, 0.0
    %v1522 = vmax.f32 %v1488, 0.0
    %v1523 = vmax.f32 %v1493, 0.0
    %v1524 = vmax.f32 %v1498, 0.0
    %v1525 = vmax.f32 %v1503, 0.0
    %v1526 = vmax.f32 %v1508, 0.0
    %v1527 = vadd.f32 %v1511, %v1238
    %v1528 = vadd.f32 %v1512, %v1239
    %v1529 = vadd.f32 %v1513, %v1240
    %v1530 = vadd.f32 %v1514, %v1241
    %v1531 = vadd.f32 %v1515, %v1242
    %v1532 = vadd.f32 %v1516, %v1243
    %v1533 = vadd.f32 %v1517, %v1244
    %v1534 = vadd.f32 %v1518, %v1245
    %v1535 = vadd.f32 %v1519, %v1246
    %v1536 = vadd.f32 %v1520, %v1247
    %v1537 = vadd.f32 %v1521, %v1248
    %v1538 = vadd.f32 %v1522, %v1249
    %v1539 = vadd.f32 %v1523, %v1250
    %v1540 = vadd.f32 %v1524, %v1251
    %v1541 = vadd.f32 %v1525, %v1252
    %v1542 = vadd.f32 %v1526, %v1253
    %v1543 = vld [vmem:[%s31] sm:$0xff]
    %v1544 = vld [vmem:[%s31 + $0x8] sm:$0xff]
    %v1545 = vld [vmem:[%s31 + $0x10] sm:$0xff]
    %v1546 = vld [vmem:[%s31 + $0x18] sm:$0xff]
    %v1547 = vld [vmem:[%s31 + $0x20] sm:$0xff]
    %v1548 = vld [vmem:[%s31 + $0x28] sm:$0xff]
    %v1549 = vld [vmem:[%s31 + $0x30] sm:$0xff]
    %v1550 = vld [vmem:[%s31 + $0x38] sm:$0xff]
    %v1551 = vld [vmem:[%s33] sm:$0xff]
    %v1552 = vld [vmem:[%s33 + $0x8] sm:$0xff]
    %v1553 = vld [vmem:[%s33 + $0x10] sm:$0xff]
    %v1554 = vld [vmem:[%s33 + $0x18] sm:$0xff]
    %v1555 = vld [vmem:[%s33 + $0x20] sm:$0xff]
    %v1556 = vld [vmem:[%s33 + $0x28] sm:$0xff]
    %v1557 = vld [vmem:[%s33 + $0x30] sm:$0xff]
    %v1558 = vld [vmem:[%s33 + $0x38] sm:$0xff]
    %1560 = vset.pattern.permute.xlu0 0
    %1561 = vperm.xlu0 %1560, %v1551
    %v1562 = vpop.permute.xlu0 %1561
    %1565 = vset.pattern.permute.xlu0 0
    %1566 = vperm.xlu0 %1565, %v1552
    %v1567 = vpop.permute.xlu0 %1566
    %1570 = vset.pattern.permute.xlu0 0
    %1571 = vperm.xlu0 %1570, %v1553
    %v1572 = vpop.permute.xlu0 %1571
    %1575 = vset.pattern.permute.xlu0 0
    %1576 = vperm.xlu0 %1575, %v1554
    %v1577 = vpop.permute.xlu0 %1576
    %1580 = vset.pattern.permute.xlu0 0
    %1581 = vperm.xlu0 %1580, %v1555
    %v1582 = vpop.permute.xlu0 %1581
    %1585 = vset.pattern.permute.xlu0 0
    %1586 = vperm.xlu0 %1585, %v1556
    %v1587 = vpop.permute.xlu0 %1586
    %1590 = vset.pattern.permute.xlu0 0
    %1591 = vperm.xlu0 %1590, %v1557
    %v1592 = vpop.permute.xlu0 %1591
    %1595 = vset.pattern.permute.xlu0 0
    %1596 = vperm.xlu0 %1595, %v1558
    %v1597 = vpop.permute.xlu0 %1596
    %1599 = vmatprep.subr.mxu0 0.0
    %1600 = vmatpush1.msra.mxu0 %v1527
    %1601 = vmatprep.subr.mxu0 0.0
    %1602 = vmatpush1.msra.mxu0 %v1528
    %1603 = vmatprep.subr.mxu0 0.0
    %1604 = vmatpush1.msra.mxu0 %v1529
    %1605 = vmatprep.subr.mxu0 0.0
    %1606 = vmatpush1.msra.mxu0 %v1530
    %1607 = vmatprep.subr.mxu0 0.0
    %1608 = vmatpush1.msra.mxu0 %v1531
    %1609 = vmatprep.subr.mxu0 0.0
    %1610 = vmatpush1.msra.mxu0 %v1532
    %1611 = vmatprep.subr.mxu0 0.0
    %1612 = vmatpush1.msra.mxu0 %v1533
    %1613 = vmatprep.subr.mxu0 0.0
    %1614 = vmatpush1.msra.mxu0 %v1534
    %1615 = vmatprep.subr.mxu0 0.0
    %1616 = vmatpush1.msra.mxu0 %v1535
    %1617 = vmatprep.subr.mxu0 0.0
    %1618 = vmatpush1.msra.mxu0 %v1536
    %1619 = vmatprep.subr.mxu0 0.0
    %1620 = vmatpush1.msra.mxu0 %v1537
    %1621 = vmatprep.subr.mxu0 0.0
    %1622 = vmatpush1.msra.mxu0 %v1538
    %1623 = vmatprep.subr.mxu0 0.0
    %1624 = vmatpush1.msra.mxu0 %v1539
    %1625 = vmatprep.subr.mxu0 0.0
    %1626 = vmatpush1.msra.mxu0 %v1540
    %1627 = vmatprep.subr.mxu0 0.0
    %1628 = vmatpush1.msra.mxu0 %v1541
    %1629 = vmatprep.subr.mxu0 0.0
    %1630 = vmatpush1.msra.mxu0 %v1542
    %1631 = vmatprep.subr.mxu0 0.0
    %1632 = vmatpush1.msra.mxu0 0.0
    %1633 = vmatprep.subr.mxu0 0.0
    %1634 = vmatpush1.msra.mxu0 0.0
    %1635 = vmatprep.subr.mxu0 0.0
    %1636 = vmatpush1.msra.mxu0 0.0
    %1637 = vmatprep.subr.mxu0 0.0
    %1638 = vmatpush1.msra.mxu0 0.0
    %1639 = vmatprep.subr.mxu0 0.0
    %1640 = vmatpush1.msra.mxu0 0.0
    %1641 = vmatprep.subr.mxu0 0.0
    %1642 = vmatpush1.msra.mxu0 0.0
    %1643 = vmatprep.subr.mxu0 0.0
    %1644 = vmatpush1.msra.mxu0 0.0
    %1645 = vmatprep.subr.mxu0 0.0
    %1646 = vmatpush1.msra.mxu0 0.0
    %1647 = vmatprep.subr.mxu0 0.0
    %1648 = vmatpush1.msra.mxu0 0.0
    %1649 = vmatprep.subr.mxu0 0.0
    %1650 = vmatpush1.msra.mxu0 0.0
    %1651 = vmatprep.subr.mxu0 0.0
    %1652 = vmatpush1.msra.mxu0 0.0
    %1653 = vmatprep.subr.mxu0 0.0
    %1654 = vmatpush1.msra.mxu0 0.0
    %1655 = vmatprep.subr.mxu0 0.0
    %1656 = vmatpush1.msra.mxu0 0.0
    %1657 = vmatprep.subr.mxu0 0.0
    %1658 = vmatpush1.msra.mxu0 0.0
    %1659 = vmatprep.subr.mxu0 0.0
    %1660 = vmatpush1.msra.mxu0 0.0
    %1661 = vmatprep.subr.mxu0 0.0
    %1662 = vmatpush1.msra.mxu0 0.0
    %1663 = vmatprep.mubr.f32.mxu0 0.0
    %1664 = vmatmul.mubr.f32.gmra.mrb[0].mxu0 %v1543
    %v1665 = vpop.f32.mrb[0].mxu0
    %v1666 = vadd.f32 %v1562, %v1665
    %v1667 = vpop.f32.mrb[0].mxu0
    %1668 = vmatprep.mubr.f32.mxu0 0.0
    %1669 = vmatmul.mubr.f32.gmra.mrb[0].mxu0 %v1544
    %v1670 = vpop.f32.mrb[0].mxu0
    %v1671 = vadd.f32 %v1567, %v1670
    %v1672 = vpop.f32.mrb[0].mxu0
    %1673 = vmatprep.mubr.f32.mxu0 0.0
    %1674 = vmatmul.mubr.f32.gmra.mrb[0].mxu0 %v1545
    %v1675 = vpop.f32.mrb[0].mxu0
    %v1676 = vadd.f32 %v1572, %v1675
    %v1677 = vpop.f32.mrb[0].mxu0
    %1678 = vmatprep.mubr.f32.mxu0 0.0
    %1679 = vmatmul.mubr.f32.gmra.mrb[0].mxu0 %v1546
    %v1680 = vpop.f32.mrb[0].mxu0
    %v1681 = vadd.f32 %v1577, %v1680
    %v1682 = vpop.f32.mrb[0].mxu0
    %1683 = vmatprep.mubr.f32.mxu0 0.0
    %1684 = vmatmul.mubr.f32.gmra.mrb[0].mxu0 %v1547
    %v1685 = vpop.f32.mrb[0].mxu0
    %v1686 = vadd.f32 %v1582, %v1685
    %v1687 = vpop.f32.mrb[0].mxu0
    %1688 = vmatprep.mubr.f32.mxu0 0.0
    %1689 = vmatmul.mubr.f32.gmra.mrb[0].mxu0 %v1548
    %v1690 = vpop.f32.mrb[0].mxu0
    %v1691 = vadd.f32 %v1587, %v1690
    %v1692 = vpop.f32.mrb[0].mxu0
    %1693 = vmatprep.mubr.f32.mxu0 0.0
    %1694 = vmatmul.mubr.f32.gmra.mrb[0].mxu0 %v1549
    %v1695 = vpop.f32.mrb[0].mxu0
    %v1696 = vadd.f32 %v1592, %v1695
    %v1697 = vpop.f32.mrb[0].mxu0
    %1698 = vmatprep.mubr.f32.mxu0 0.0
    %1699 = vmatmul.mubr.f32.gmra.mrb[0].mxu0 %v1550
    %v1700 = vpop.f32.mrb[0].mxu0
    %v1701 = vadd.f32 %v1597, %v1700
    %v1702 = vpop.f32.mrb[0].mxu0
    %1703 = vdwg.mxu0
    %v1704 = vld [vmem:[%s35] sm:$0xff]
    %v1705 = vld [vmem:[%s35 + $0x8] sm:$0xff]
    %v1706 = vld [vmem:[%s35 + $0x10] sm:$0xff]
    %v1707 = vld [vmem:[%s35 + $0x18] sm:$0xff]
    %v1708 = vld [vmem:[%s35 + $0x20] sm:$0xff]
    %v1709 = vld [vmem:[%s35 + $0x28] sm:$0xff]
    %v1710 = vld [vmem:[%s35 + $0x30] sm:$0xff]
    %v1711 = vld [vmem:[%s35 + $0x38] sm:$0xff]
    %1712 = vmatprep.subr.mxu0 0.0
    %1713 = vmatpush1.msra.mxu0 %v1527
    %1714 = vmatprep.subr.mxu0 0.0
    %1715 = vmatpush1.msra.mxu0 %v1528
    %1716 = vmatprep.subr.mxu0 0.0
    %1717 = vmatpush1.msra.mxu0 %v1529
    %1718 = vmatprep.subr.mxu0 0.0
    %1719 = vmatpush1.msra.mxu0 %v1530
    %1720 = vmatprep.subr.mxu0 0.0
    %1721 = vmatpush1.msra.mxu0 %v1531
    %1722 = vmatprep.subr.mxu0 0.0
    %1723 = vmatpush1.msra.mxu0 %v1532
    %1724 = vmatprep.subr.mxu0 0.0
    %1725 = vmatpush1.msra.mxu0 %v1533
    %1726 = vmatprep.subr.mxu0 0.0
    %1727 = vmatpush1.msra.mxu0 %v1534
    %1728 = vmatprep.subr.mxu0 0.0
    %1729 = vmatpush1.msra.mxu0 %v1535
    %1730 = vmatprep.subr.mxu0 0.0
    %1731 = vmatpush1.msra.mxu0 %v1536
    %1732 = vmatprep.subr.mxu0 0.0
    %1733 = vmatpush1.msra.mxu0 %v1537
    %1734 = vmatprep.subr.mxu0 0.0
    %1735 = vmatpush1.msra.mxu0 %v1538
    %1736 = vmatprep.subr.mxu0 0.0
    %1737 = vmatpush1.msra.mxu0 %v1539
    %1738 = vmatprep.subr.mxu0 0.0
    %1739 = vmatpush1.msra.mxu0 %v1540
    %1740 = vmatprep.subr.mxu0 0.0
    %1741 = vmatpush1.msra.mxu0 %v1541
    %1742 = vmatprep.subr.mxu0 0.0
    %1743 = vmatpush1.msra.mxu0 %v1542
    %1744 = vmatprep.subr.mxu0 0.0
    %1745 = vmatpush1.msra.mxu0 0.0
    %1746 = vmatprep.subr.mxu0 0.0
    %1747 = vmatpush1.msra.mxu0 0.0
    %1748 = vmatprep.subr.mxu0 0.0
    %1749 = vmatpush1.msra.mxu0 0.0
    %1750 = vmatprep.subr.mxu0 0.0
    %1751 = vmatpush1.msra.mxu0 0.0
    %1752 = vmatprep.subr.mxu0 0.0
    %1753 = vmatpush1.msra.mxu0 0.0
    %1754 = vmatprep.subr.mxu0 0.0
    %1755 = vmatpush1.msra.mxu0 0.0
    %1756 = vmatprep.subr.mxu0 0.0
    %1757 = vmatpush1.msra.mxu0 0.0
    %1758 = vmatprep.subr.mxu0 0.0
    %1759 = vmatpush1.msra.mxu0 0.0
    %1760 = vmatprep.subr.mxu0 0.0
    %1761 = vmatpush1.msra.mxu0 0.0
    %1762 = vmatprep.subr.mxu0 0.0
    %1763 = vmatpush1.msra.mxu0 0.0
    %1764 = vmatprep.subr.mxu0 0.0
    %1765 = vmatpush1.msra.mxu0 0.0
    %1766 = vmatprep.subr.mxu0 0.0
    %1767 = vmatpush1.msra.mxu0 0.0
    %1768 = vmatprep.subr.mxu0 0.0
    %1769 = vmatpush1.msra.mxu0 0.0
    %1770 = vmatprep.subr.mxu0 0.0
    %1771 = vmatpush1.msra.mxu0 0.0
    %1772 = vmatprep.subr.mxu0 0.0
    %1773 = vmatpush1.msra.mxu0 0.0
    %1774 = vmatprep.subr.mxu0 0.0
    %1775 = vmatpush1.msra.mxu0 0.0
    %1776 = vmatprep.mubr.f32.mxu0 0.0
    %1777 = vmatmul.mubr.f32.gmra.mrb[0].mxu0 %v1704
    %v1778 = vpop.f32.mrb[0].mxu0
    %v1779 = vadd.f32 0.0, %v1778
    %v1780 = vpop.f32.mrb[0].mxu0
    %1781 = vmatprep.mubr.f32.mxu0 0.0
    %1782 = vmatmul.mubr.f32.gmra.mrb[0].mxu0 %v1705
    %v1783 = vpop.f32.mrb[0].mxu0
    %v1784 = vadd.f32 0.0, %v1783
    %v1785 = vpop.f32.mrb[0].mxu0
    %1786 = vmatprep.mubr.f32.mxu0 0.0
    %1787 = vmatmul.mubr.f32.gmra.mrb[0].mxu0 %v1706
    %v1788 = vpop.f32.mrb[0].mxu0
    %v1789 = vadd.f32 0.0, %v1788
    %v1790 = vpop.f32.mrb[0].mxu0
    %1791 = vmatprep.mubr.f32.mxu0 0.0
    %1792 = vmatmul.mubr.f32.gmra.mrb[0].mxu0 %v1707
    %v1793 = vpop.f32.mrb[0].mxu0
    %v1794 = vadd.f32 0.0, %v1793
    %v1795 = vpop.f32.mrb[0].mxu0
    %1796 = vmatprep.mubr.f32.mxu0 0.0
    %1797 = vmatmul.mubr.f32.gmra.mrb[0].mxu0 %v1708
    %v1798 = vpop.f32.mrb[0].mxu0
    %v1799 = vadd.f32 0.0, %v1798
    %v1800 = vpop.f32.mrb[0].mxu0
    %1801 = vmatprep.mubr.f32.mxu0 0.0
    %1802 = vmatmul.mubr.f32.gmra.mrb[0].mxu0 %v1709
    %v1803 = vpop.f32.mrb[0].mxu0
    %v1804 = vadd.f32 0.0, %v1803
    %v1805 = vpop.f32.mrb[0].mxu0
    %1806 = vmatprep.mubr.f32.mxu0 0.0
    %1807 = vmatmul.mubr.f32.gmra.mrb[0].mxu0 %v1710
    %v1808 = vpop.f32.mrb[0].mxu0
    %v1809 = vadd.f32 0.0, %v1808
    %v1810 = vpop.f32.mrb[0].mxu0
    %1811 = vmatprep.mubr.f32.mxu0 0.0
    %1812 = vmatmul.mubr.f32.gmra.mrb[0].mxu0 %v1711
    %v1813 = vpop.f32.mrb[0].mxu0
    %v1814 = vadd.f32 0.0, %v1813
    %v1815 = vpop.f32.mrb[0].mxu0
    %1816 = vdwg.mxu0
    %v1817 = vmax.f32 %v1666, 0.0
    %v1818 = vmax.f32 %v1671, 0.0
    %v1819 = vmax.f32 %v1676, 0.0
    %v1820 = vmax.f32 %v1681, 0.0
    %v1821 = vmax.f32 %v1686, 0.0
    %v1822 = vmax.f32 %v1691, 0.0
    %v1823 = vmax.f32 %v1696, 0.0
    %v1824 = vmax.f32 %v1701, 0.0
    %v1825 = vadd.f32 %v1817, %v1779
    %v1826 = vadd.f32 %v1818, %v1784
    %v1827 = vadd.f32 %v1819, %v1789
    %v1828 = vadd.f32 %v1820, %v1794
    %v1829 = vadd.f32 %v1821, %v1799
    %v1830 = vadd.f32 %v1822, %v1804
    %v1831 = vadd.f32 %v1823, %v1809
    %v1832 = vadd.f32 %v1824, %v1814
    %v1833 = vld [vmem:[%s37] sm:$0x1]
    %v1834 = vld [vmem:[#allocation2] sm:$0x1]
    %1836 = vset.pattern.permute.xlu0 0
    %1837 = vperm.xlu0 %1836, %v1834
    %v1838 = vpop.permute.xlu0 %1837
    %v1840 = vlaneseq
    %v1841 = vshrl.u32 %v1840, 7
    %v1842 = vsub.s32 0, %v1841
    %v1843 = vrot.slane %v1838, %v1842
    %vm1844 = vcmask 523264
    %v1846 = vsel %vm1844, %v1833, 0
    %1848 = vmatprep.subr.mxu0 0.0
    %1849 = vmatpush1.msra.mxu0 %v1825
    %1850 = vmatprep.subr.mxu0 0.0
    %1851 = vmatpush1.msra.mxu0 %v1826
    %1852 = vmatprep.subr.mxu0 0.0
    %1853 = vmatpush1.msra.mxu0 %v1827
    %1854 = vmatprep.subr.mxu0 0.0
    %1855 = vmatpush1.msra.mxu0 %v1828
    %1856 = vmatprep.subr.mxu0 0.0
    %1857 = vmatpush1.msra.mxu0 %v1829
    %1858 = vmatprep.subr.mxu0 0.0
    %1859 = vmatpush1.msra.mxu0 %v1830
    %1860 = vmatprep.subr.mxu0 0.0
    %1861 = vmatpush1.msra.mxu0 %v1831
    %1862 = vmatprep.subr.mxu0 0.0
    %1863 = vmatpush1.msra.mxu0 %v1832
    %1864 = vmatprep.subr.mxu0 0.0
    %1865 = vmatpush1.msra.mxu0 0.0
    %1866 = vmatprep.subr.mxu0 0.0
    %1867 = vmatpush1.msra.mxu0 0.0
    %1868 = vmatprep.subr.mxu0 0.0
    %1869 = vmatpush1.msra.mxu0 0.0
    %1870 = vmatprep.subr.mxu0 0.0
    %1871 = vmatpush1.msra.mxu0 0.0
    %1872 = vmatprep.subr.mxu0 0.0
    %1873 = vmatpush1.msra.mxu0 0.0
    %1874 = vmatprep.subr.mxu0 0.0
    %1875 = vmatpush1.msra.mxu0 0.0
    %1876 = vmatprep.subr.mxu0 0.0
    %1877 = vmatpush1.msra.mxu0 0.0
    %1878 = vmatprep.subr.mxu0 0.0
    %1879 = vmatpush1.msra.mxu0 0.0
    %1880 = vmatprep.subr.mxu0 0.0
    %1881 = vmatpush1.msra.mxu0 0.0
    %1882 = vmatprep.subr.mxu0 0.0
    %1883 = vmatpush1.msra.mxu0 0.0
    %1884 = vmatprep.subr.mxu0 0.0
    %1885 = vmatpush1.msra.mxu0 0.0
    %1886 = vmatprep.subr.mxu0 0.0
    %1887 = vmatpush1.msra.mxu0 0.0
    %1888 = vmatprep.subr.mxu0 0.0
    %1889 = vmatpush1.msra.mxu0 0.0
    %1890 = vmatprep.subr.mxu0 0.0
    %1891 = vmatpush1.msra.mxu0 0.0
    %1892 = vmatprep.subr.mxu0 0.0
    %1893 = vmatpush1.msra.mxu0 0.0
    %1894 = vmatprep.subr.mxu0 0.0
    %1895 = vmatpush1.msra.mxu0 0.0
    %1896 = vmatprep.subr.mxu0 0.0
    %1897 = vmatpush1.msra.mxu0 0.0
    %1898 = vmatprep.subr.mxu0 0.0
    %1899 = vmatpush1.msra.mxu0 0.0
    %1900 = vmatprep.subr.mxu0 0.0
    %1901 = vmatpush1.msra.mxu0 0.0
    %1902 = vmatprep.subr.mxu0 0.0
    %1903 = vmatpush1.msra.mxu0 0.0
    %1904 = vmatprep.subr.mxu0 0.0
    %1905 = vmatpush1.msra.mxu0 0.0
    %1906 = vmatprep.subr.mxu0 0.0
    %1907 = vmatpush1.msra.mxu0 0.0
    %1908 = vmatprep.subr.mxu0 0.0
    %1909 = vmatpush1.msra.mxu0 0.0
    %1910 = vmatprep.subr.mxu0 0.0
    %1911 = vmatpush1.msra.mxu0 0.0
    %1912 = vmatprep.mubr.f32.mxu0 0.0
    %1913 = vmatmul.mubr.f32.gmra.mrb[0].mxu0 %v1846
    %v1914 = vpop.f32.mrb[0].mxu0
    %v1915 = vadd.f32 %v1843, %v1914
    %v1916 = vpop.f32.mrb[0].mxu0
    %1917 = vdwg.mxu0
    %v1918 = vlaneseq
    %v1919 = vshrl.u32 %v1918, 7
    %v1920 = vsub.s32 0, %v1919
    %v1921 = vrot.slane %v1915, %v1920
    %v1922 = vsel %vm174, %v1921, -inf
    %vm1923 = vcmask 59392
    %v1924 = vsel %vm1923, %v1922, -inf
    %1925 = vmax.xlane.f32.xlu0 %v1924
    %v1926 = vpop.xlane.xlu0 %1925
    %v1927 = vsel %vm174, %v1926, -inf
    %v1928 = vsel %vm1923, %v1927, -inf
    %v1929 = vrot.slane %v1928, 4
    %v1930 = vmax.f32 %v1928, %v1929
    %v1931 = vrot.slane %v1930, 2
    %v1932 = vmax.f32 %v1930, %v1931
    %v1933 = vrot.slane %v1932, 1
    %v1934 = vmax.f32 %v1932, %v1933
    %v1935 = vsub.f32 %v1915, %v1934
    %v1936 = vmul.f32 %v1935, 1.442695
    %v1937 = vpow.pop %v1936
    %v1938 = vlaneseq
    %v1939 = vshrl.u32 %v1938, 7
    %v1940 = vsub.s32 0, %v1939
    %v1941 = vrot.slane %v1937, %v1940
    %v1942 = vsel %vm174, %v1941, 0.0
    %v1943 = vsel %vm1923, %v1942, 0.0
    %1944 = vadd.xlane.f32.xlu0 %v1943
    %v1945 = vpop.xlane.xlu0 %1944
    %v1946 = vsel %vm174, %v1945, 0.0
    %v1947 = vsel %vm1923, %v1946, 0.0
    %v1948 = vrot.slane %v1947, 4
    %v1949 = vadd.f32 %v1947, %v1948
    %v1950 = vrot.slane %v1949, 2
    %v1951 = vadd.f32 %v1949, %v1950
    %v1952 = vrot.slane %v1951, 1
    %v1953 = vadd.f32 %v1951, %v1952
    %v1954 = vadd.f32 %v1953, 1e-13
    %v1955 = vrcp.pop %v1954
    %v1956 = vmul.f32 %v1937, %v1955
    %v1957 = vadd.f32 %v1956, 0.0
    %v1958 = vld [vmem:[%s41] sm:$0xff]
    %v1959 = vld [vmem:[%s41 + $0x8] sm:$0xff]
    %v1960 = vld [vmem:[%s41 + $0x10] sm:$0xff]
    %v1961 = vld [vmem:[%s41 + $0x18] sm:$0xff]
    %v1962 = vld [vmem:[%s43] sm:$0xff]
    %v1963 = vld [vmem:[%s43 + $0x8] sm:$0xff]
    %v1964 = vld [vmem:[%s43 + $0x10] sm:$0xff]
    %v1965 = vld [vmem:[%s43 + $0x18] sm:$0xff]
    %1967 = vset.pattern.permute.xlu0 0
    %1968 = vperm.xlu0 %1967, %v1962
    %v1969 = vpop.permute.xlu0 %1968
    %1972 = vset.pattern.permute.xlu0 0
    %1973 = vperm.xlu0 %1972, %v1963
    %v1974 = vpop.permute.xlu0 %1973
    %1977 = vset.pattern.permute.xlu0 0
    %1978 = vperm.xlu0 %1977, %v1964
    %v1979 = vpop.permute.xlu0 %1978
    %1982 = vset.pattern.permute.xlu0 0
    %1983 = vperm.xlu0 %1982, %v1965
    %v1984 = vpop.permute.xlu0 %1983
    %v1987 = vsel %vm203, %v1958, 0
    %v1990 = vsel %vm203, %v1959, 0
    %v1993 = vsel %vm203, %v1960, 0
    %v1996 = vsel %vm203, %v1961, 0
    %1998 = vmatprep.subr.mxu0 0.0
    %1999 = vmatpush1.msra.mxu0 %v163
    %2000 = vmatprep.subr.mxu0 0.0
    %2001 = vmatpush1.msra.mxu0 %v164
    %2002 = vmatprep.subr.mxu0 0.0
    %2003 = vmatpush1.msra.mxu0 %v165
    %2004 = vmatprep.subr.mxu0 0.0
    %2005 = vmatpush1.msra.mxu0 %v166
    %2006 = vmatprep.subr.mxu0 0.0
    %2007 = vmatpush1.msra.mxu0 0.0
    %2008 = vmatprep.subr.mxu0 0.0
    %2009 = vmatpush1.msra.mxu0 0.0
    %2010 = vmatprep.subr.mxu0 0.0
    %2011 = vmatpush1.msra.mxu0 0.0
    %2012 = vmatprep.subr.mxu0 0.0
    %2013 = vmatpush1.msra.mxu0 0.0
    %2014 = vmatprep.subr.mxu0 0.0
    %2015 = vmatpush1.msra.mxu0 0.0
    %2016 = vmatprep.subr.mxu0 0.0
    %2017 = vmatpush1.msra.mxu0 0.0
    %2018 = vmatprep.subr.mxu0 0.0
    %2019 = vmatpush1.msra.mxu0 0.0
    %2020 = vmatprep.subr.mxu0 0.0
    %2021 = vmatpush1.msra.mxu0 0.0
    %2022 = vmatprep.subr.mxu0 0.0
    %2023 = vmatpush1.msra.mxu0 0.0
    %2024 = vmatprep.subr.mxu0 0.0
    %2025 = vmatpush1.msra.mxu0 0.0
    %2026 = vmatprep.subr.mxu0 0.0
    %2027 = vmatpush1.msra.mxu0 0.0
    %2028 = vmatprep.subr.mxu0 0.0
    %2029 = vmatpush1.msra.mxu0 0.0
    %2030 = vmatprep.subr.mxu0 0.0
    %2031 = vmatpush1.msra.mxu0 0.0
    %2032 = vmatprep.subr.mxu0 0.0
    %2033 = vmatpush1.msra.mxu0 0.0
    %2034 = vmatprep.subr.mxu0 0.0
    %2035 = vmatpush1.msra.mxu0 0.0
    %2036 = vmatprep.subr.mxu0 0.0
    %2037 = vmatpush1.msra.mxu0 0.0
    %2038 = vmatprep.subr.mxu0 0.0
    %2039 = vmatpush1.msra.mxu0 0.0
    %2040 = vmatprep.subr.mxu0 0.0
    %2041 = vmatpush1.msra.mxu0 0.0
    %2042 = vmatprep.subr.mxu0 0.0
    %2043 = vmatpush1.msra.mxu0 0.0
    %2044 = vmatprep.subr.mxu0 0.0
    %2045 = vmatpush1.msra.mxu0 0.0
    %2046 = vmatprep.subr.mxu0 0.0
    %2047 = vmatpush1.msra.mxu0 0.0
    %2048 = vmatprep.subr.mxu0 0.0
    %2049 = vmatpush1.msra.mxu0 0.0
    %2050 = vmatprep.subr.mxu0 0.0
    %2051 = vmatpush1.msra.mxu0 0.0
    %2052 = vmatprep.subr.mxu0 0.0
    %2053 = vmatpush1.msra.mxu0 0.0
    %2054 = vmatprep.subr.mxu0 0.0
    %2055 = vmatpush1.msra.mxu0 0.0
    %2056 = vmatprep.subr.mxu0 0.0
    %2057 = vmatpush1.msra.mxu0 0.0
    %2058 = vmatprep.subr.mxu0 0.0
    %2059 = vmatpush1.msra.mxu0 0.0
    %2060 = vmatprep.subr.mxu0 0.0
    %2061 = vmatpush1.msra.mxu0 0.0
    %2062 = vmatprep.mubr.f32.mxu0 0.0
    %2063 = vmatmul.mubr.f32.gmra.mrb[0].mxu0 %v1987
    %v2064 = vpop.f32.mrb[0].mxu0
    %v2065 = vadd.f32 %v1969, %v2064
    %v2066 = vpop.f32.mrb[0].mxu0
    %2067 = vmatprep.mubr.f32.mxu0 0.0
    %2068 = vmatmul.mubr.f32.gmra.mrb[0].mxu0 %v1990
    %v2069 = vpop.f32.mrb[0].mxu0
    %v2070 = vadd.f32 %v1974, %v2069
    %v2071 = vpop.f32.mrb[0].mxu0
    %2072 = vmatprep.mubr.f32.mxu0 0.0
    %2073 = vmatmul.mubr.f32.gmra.mrb[0].mxu0 %v1993
    %v2074 = vpop.f32.mrb[0].mxu0
    %v2075 = vadd.f32 %v1979, %v2074
    %v2076 = vpop.f32.mrb[0].mxu0
    %2077 = vmatprep.mubr.f32.mxu0 0.0
    %2078 = vmatmul.mubr.f32.gmra.mrb[0].mxu0 %v1996
    %v2079 = vpop.f32.mrb[0].mxu0
    %v2080 = vadd.f32 %v1984, %v2079
    %v2081 = vpop.f32.mrb[0].mxu0
    %2082 = vdwg.mxu0
    %v2083 = vmax.f32 %v2065, 0.0
    %v2084 = vmax.f32 %v2070, 0.0
    %v2085 = vmax.f32 %v2075, 0.0
    %v2086 = vmax.f32 %v2080, 0.0
    %v2087 = vadd.f32 %v2083, %v163
    %v2088 = vadd.f32 %v2084, %v164
    %v2089 = vadd.f32 %v2085, %v165
    %v2090 = vadd.f32 %v2086, %v166
    %v2091 = vld [vmem:[%s45] sm:$0xff]
    %v2092 = vld [vmem:[%s45 + $0x8] sm:$0xff]
    %v2093 = vld [vmem:[%s45 + $0x10] sm:$0xff]
    %v2094 = vld [vmem:[%s45 + $0x18] sm:$0xff]
    %v2095 = vld [vmem:[%s47] sm:$0xff]
    %v2096 = vld [vmem:[%s47 + $0x8] sm:$0xff]
    %v2097 = vld [vmem:[%s47 + $0x10] sm:$0xff]
    %v2098 = vld [vmem:[%s47 + $0x18] sm:$0xff]
    %2100 = vset.pattern.permute.xlu0 0
    %2101 = vperm.xlu0 %2100, %v2095
    %v2102 = vpop.permute.xlu0 %2101
    %2105 = vset.pattern.permute.xlu0 0
    %2106 = vperm.xlu0 %2105, %v2096
    %v2107 = vpop.permute.xlu0 %2106
    %2110 = vset.pattern.permute.xlu0 0
    %2111 = vperm.xlu0 %2110, %v2097
    %v2112 = vpop.permute.xlu0 %2111
    %2115 = vset.pattern.permute.xlu0 0
    %2116 = vperm.xlu0 %2115, %v2098
    %v2117 = vpop.permute.xlu0 %2116
    %v2120 = vsel %vm203, %v2091, 0
    %v2123 = vsel %vm203, %v2092, 0
    %v2126 = vsel %vm203, %v2093, 0
    %v2129 = vsel %vm203, %v2094, 0
    %2131 = vmatprep.subr.mxu0 0.0
    %2132 = vmatpush1.msra.mxu0 %v2087
    %2133 = vmatprep.subr.mxu0 0.0
    %2134 = vmatpush1.msra.mxu0 %v2088
    %2135 = vmatprep.subr.mxu0 0.0
    %2136 = vmatpush1.msra.mxu0 %v2089
    %2137 = vmatprep.subr.mxu0 0.0
    %2138 = vmatpush1.msra.mxu0 %v2090
    %2139 = vmatprep.subr.mxu0 0.0
    %2140 = vmatpush1.msra.mxu0 0.0
    %2141 = vmatprep.subr.mxu0 0.0
    %2142 = vmatpush1.msra.mxu0 0.0
    %2143 = vmatprep.subr.mxu0 0.0
    %2144 = vmatpush1.msra.mxu0 0.0
    %2145 = vmatprep.subr.mxu0 0.0
    %2146 = vmatpush1.msra.mxu0 0.0
    %2147 = vmatprep.subr.mxu0 0.0
    %2148 = vmatpush1.msra.mxu0 0.0
    %2149 = vmatprep.subr.mxu0 0.0
    %2150 = vmatpush1.msra.mxu0 0.0
    %2151 = vmatprep.subr.mxu0 0.0
    %2152 = vmatpush1.msra.mxu0 0.0
    %2153 = vmatprep.subr.mxu0 0.0
    %2154 = vmatpush1.msra.mxu0 0.0
    %2155 = vmatprep.subr.mxu0 0.0
    %2156 = vmatpush1.msra.mxu0 0.0
    %2157 = vmatprep.subr.mxu0 0.0
    %2158 = vmatpush1.msra.mxu0 0.0
    %2159 = vmatprep.subr.mxu0 0.0
    %2160 = vmatpush1.msra.mxu0 0.0
    %2161 = vmatprep.subr.mxu0 0.0
    %2162 = vmatpush1.msra.mxu0 0.0
    %2163 = vmatprep.subr.mxu0 0.0
    %2164 = vmatpush1.msra.mxu0 0.0
    %2165 = vmatprep.subr.mxu0 0.0
    %2166 = vmatpush1.msra.mxu0 0.0
    %2167 = vmatprep.subr.mxu0 0.0
    %2168 = vmatpush1.msra.mxu0 0.0
    %2169 = vmatprep.subr.mxu0 0.0
    %2170 = vmatpush1.msra.mxu0 0.0
    %2171 = vmatprep.subr.mxu0 0.0
    %2172 = vmatpush1.msra.mxu0 0.0
    %2173 = vmatprep.subr.mxu0 0.0
    %2174 = vmatpush1.msra.mxu0 0.0
    %2175 = vmatprep.subr.mxu0 0.0
    %2176 = vmatpush1.msra.mxu0 0.0
    %2177 = vmatprep.subr.mxu0 0.0
    %2178 = vmatpush1.msra.mxu0 0.0
    %2179 = vmatprep.subr.mxu0 0.0
    %2180 = vmatpush1.msra.mxu0 0.0
    %2181 = vmatprep.subr.mxu0 0.0
    %2182 = vmatpush1.msra.mxu0 0.0
    %2183 = vmatprep.subr.mxu0 0.0
    %2184 = vmatpush1.msra.mxu0 0.0
    %2185 = vmatprep.subr.mxu0 0.0
    %2186 = vmatpush1.msra.mxu0 0.0
    %2187 = vmatprep.subr.mxu0 0.0
    %2188 = vmatpush1.msra.mxu0 0.0
    %2189 = vmatprep.subr.mxu0 0.0
    %2190 = vmatpush1.msra.mxu0 0.0
    %2191 = vmatprep.subr.mxu0 0.0
    %2192 = vmatpush1.msra.mxu0 0.0
    %2193 = vmatprep.subr.mxu0 0.0
    %2194 = vmatpush1.msra.mxu0 0.0
    %2195 = vmatprep.mubr.f32.mxu0 0.0
    %2196 = vmatmul.mubr.f32.gmra.mrb[0].mxu0 %v2120
    %v2197 = vpop.f32.mrb[0].mxu0
    %v2198 = vadd.f32 %v2102, %v2197
    %v2199 = vpop.f32.mrb[0].mxu0
    %2200 = vmatprep.mubr.f32.mxu0 0.0
    %2201 = vmatmul.mubr.f32.gmra.mrb[0].mxu0 %v2123
    %v2202 = vpop.f32.mrb[0].mxu0
    %v2203 = vadd.f32 %v2107, %v2202
    %v2204 = vpop.f32.mrb[0].mxu0
    %2205 = vmatprep.mubr.f32.mxu0 0.0
    %2206 = vmatmul.mubr.f32.gmra.mrb[0].mxu0 %v2126
    %v2207 = vpop.f32.mrb[0].mxu0
    %v2208 = vadd.f32 %v2112, %v2207
    %v2209 = vpop.f32.mrb[0].mxu0
    %2210 = vmatprep.mubr.f32.mxu0 0.0
    %2211 = vmatmul.mubr.f32.gmra.mrb[0].mxu0 %v2129
    %v2212 = vpop.f32.mrb[0].mxu0
    %v2213 = vadd.f32 %v2117, %v2212
    %v2214 = vpop.f32.mrb[0].mxu0
    %2215 = vdwg.mxu0
    %v2216 = vmax.f32 %v2198, 0.0
    %v2217 = vmax.f32 %v2203, 0.0
    %v2218 = vmax.f32 %v2208, 0.0
    %v2219 = vmax.f32 %v2213, 0.0
    %v2220 = vadd.f32 %v2216, %v2087
    %v2221 = vadd.f32 %v2217, %v2088
    %v2222 = vadd.f32 %v2218, %v2089
    %v2223 = vadd.f32 %v2219, %v2090
    %v2224 = vld [vmem:[%s49] sm:$0xff]
    %v2225 = vld [vmem:[%s49 + $0x8] sm:$0xff]
    %v2226 = vld [vmem:[%s49 + $0x10] sm:$0xff]
    %v2227 = vld [vmem:[%s49 + $0x18] sm:$0xff]
    %v2228 = vld [vmem:[%s51] sm:$0xff]
    %v2229 = vld [vmem:[%s51 + $0x8] sm:$0xff]
    %v2230 = vld [vmem:[%s51 + $0x10] sm:$0xff]
    %v2231 = vld [vmem:[%s51 + $0x18] sm:$0xff]
    %2233 = vset.pattern.permute.xlu0 0
    %2234 = vperm.xlu0 %2233, %v2228
    %v2235 = vpop.permute.xlu0 %2234
    %2238 = vset.pattern.permute.xlu0 0
    %2239 = vperm.xlu0 %2238, %v2229
    %v2240 = vpop.permute.xlu0 %2239
    %2243 = vset.pattern.permute.xlu0 0
    %2244 = vperm.xlu0 %2243, %v2230
    %v2245 = vpop.permute.xlu0 %2244
    %2248 = vset.pattern.permute.xlu0 0
    %2249 = vperm.xlu0 %2248, %v2231
    %v2250 = vpop.permute.xlu0 %2249
    %v2253 = vsel %vm203, %v2224, 0
    %v2256 = vsel %vm203, %v2225, 0
    %v2259 = vsel %vm203, %v2226, 0
    %v2262 = vsel %vm203, %v2227, 0
    %2264 = vmatprep.subr.mxu0 0.0
    %2265 = vmatpush1.msra.mxu0 %v2220
    %2266 = vmatprep.subr.mxu0 0.0
    %2267 = vmatpush1.msra.mxu0 %v2221
    %2268 = vmatprep.subr.mxu0 0.0
    %2269 = vmatpush1.msra.mxu0 %v2222
    %2270 = vmatprep.subr.mxu0 0.0
    %2271 = vmatpush1.msra.mxu0 %v2223
    %2272 = vmatprep.subr.mxu0 0.0
    %2273 = vmatpush1.msra.mxu0 0.0
    %2274 = vmatprep.subr.mxu0 0.0
    %2275 = vmatpush1.msra.mxu0 0.0
    %2276 = vmatprep.subr.mxu0 0.0
    %2277 = vmatpush1.msra.mxu0 0.0
    %2278 = vmatprep.subr.mxu0 0.0
    %2279 = vmatpush1.msra.mxu0 0.0
    %2280 = vmatprep.subr.mxu0 0.0
    %2281 = vmatpush1.msra.mxu0 0.0
    %2282 = vmatprep.subr.mxu0 0.0
    %2283 = vmatpush1.msra.mxu0 0.0
    %2284 = vmatprep.subr.mxu0 0.0
    %2285 = vmatpush1.msra.mxu0 0.0
    %2286 = vmatprep.subr.mxu0 0.0
    %2287 = vmatpush1.msra.mxu0 0.0
    %2288 = vmatprep.subr.mxu0 0.0
    %2289 = vmatpush1.msra.mxu0 0.0
    %2290 = vmatprep.subr.mxu0 0.0
    %2291 = vmatpush1.msra.mxu0 0.0
    %2292 = vmatprep.subr.mxu0 0.0
    %2293 = vmatpush1.msra.mxu0 0.0
    %2294 = vmatprep.subr.mxu0 0.0
    %2295 = vmatpush1.msra.mxu0 0.0
    %2296 = vmatprep.subr.mxu0 0.0
    %2297 = vmatpush1.msra.mxu0 0.0
    %2298 = vmatprep.subr.mxu0 0.0
    %2299 = vmatpush1.msra.mxu0 0.0
    %2300 = vmatprep.subr.mxu0 0.0
    %2301 = vmatpush1.msra.mxu0 0.0
    %2302 = vmatprep.subr.mxu0 0.0
    %2303 = vmatpush1.msra.mxu0 0.0
    %2304 = vmatprep.subr.mxu0 0.0
    %2305 = vmatpush1.msra.mxu0 0.0
    %2306 = vmatprep.subr.mxu0 0.0
    %2307 = vmatpush1.msra.mxu0 0.0
    %2308 = vmatprep.subr.mxu0 0.0
    %2309 = vmatpush1.msra.mxu0 0.0
    %2310 = vmatprep.subr.mxu0 0.0
    %2311 = vmatpush1.msra.mxu0 0.0
    %2312 = vmatprep.subr.mxu0 0.0
    %2313 = vmatpush1.msra.mxu0 0.0
    %2314 = vmatprep.subr.mxu0 0.0
    %2315 = vmatpush1.msra.mxu0 0.0
    %2316 = vmatprep.subr.mxu0 0.0
    %2317 = vmatpush1.msra.mxu0 0.0
    %2318 = vmatprep.subr.mxu0 0.0
    %2319 = vmatpush1.msra.mxu0 0.0
    %2320 = vmatprep.subr.mxu0 0.0
    %2321 = vmatpush1.msra.mxu0 0.0
    %2322 = vmatprep.subr.mxu0 0.0
    %2323 = vmatpush1.msra.mxu0 0.0
    %2324 = vmatprep.subr.mxu0 0.0
    %2325 = vmatpush1.msra.mxu0 0.0
    %2326 = vmatprep.subr.mxu0 0.0
    %2327 = vmatpush1.msra.mxu0 0.0
    %2328 = vmatprep.mubr.f32.mxu0 0.0
    %2329 = vmatmul.mubr.f32.gmra.mrb[0].mxu0 %v2253
    %v2330 = vpop.f32.mrb[0].mxu0
    %v2331 = vadd.f32 %v2235, %v2330
    %v2332 = vpop.f32.mrb[0].mxu0
    %2333 = vmatprep.mubr.f32.mxu0 0.0
    %2334 = vmatmul.mubr.f32.gmra.mrb[0].mxu0 %v2256
    %v2335 = vpop.f32.mrb[0].mxu0
    %v2336 = vadd.f32 %v2240, %v2335
    %v2337 = vpop.f32.mrb[0].mxu0
    %2338 = vmatprep.mubr.f32.mxu0 0.0
    %2339 = vmatmul.mubr.f32.gmra.mrb[0].mxu0 %v2259
    %v2340 = vpop.f32.mrb[0].mxu0
    %v2341 = vadd.f32 %v2245, %v2340
    %v2342 = vpop.f32.mrb[0].mxu0
    %2343 = vmatprep.mubr.f32.mxu0 0.0
    %2344 = vmatmul.mubr.f32.gmra.mrb[0].mxu0 %v2262
    %v2345 = vpop.f32.mrb[0].mxu0
    %v2346 = vadd.f32 %v2250, %v2345
    %v2347 = vpop.f32.mrb[0].mxu0
    %2348 = vdwg.mxu0
    %v2349 = vmax.f32 %v2331, 0.0
    %v2350 = vmax.f32 %v2336, 0.0
    %v2351 = vmax.f32 %v2341, 0.0
    %v2352 = vmax.f32 %v2346, 0.0
    %v2353 = vadd.f32 %v2349, %v2220
    %v2354 = vadd.f32 %v2350, %v2221
    %v2355 = vadd.f32 %v2351, %v2222
    %v2356 = vadd.f32 %v2352, %v2223
    %v2357 = vld [vmem:[%s53] sm:$0xff]
    %v2358 = vld [vmem:[%s53 + $0x8] sm:$0xff]
    %v2359 = vld [vmem:[%s53 + $0x10] sm:$0xff]
    %v2360 = vld [vmem:[%s53 + $0x18] sm:$0xff]
    %v2361 = vld [vmem:[%s55] sm:$0xff]
    %v2362 = vld [vmem:[%s55 + $0x8] sm:$0xff]
    %v2363 = vld [vmem:[%s55 + $0x10] sm:$0xff]
    %v2364 = vld [vmem:[%s55 + $0x18] sm:$0xff]
    %2366 = vset.pattern.permute.xlu0 0
    %2367 = vperm.xlu0 %2366, %v2361
    %v2368 = vpop.permute.xlu0 %2367
    %2371 = vset.pattern.permute.xlu0 0
    %2372 = vperm.xlu0 %2371, %v2362
    %v2373 = vpop.permute.xlu0 %2372
    %2376 = vset.pattern.permute.xlu0 0
    %2377 = vperm.xlu0 %2376, %v2363
    %v2378 = vpop.permute.xlu0 %2377
    %2381 = vset.pattern.permute.xlu0 0
    %2382 = vperm.xlu0 %2381, %v2364
    %v2383 = vpop.permute.xlu0 %2382
    %v2386 = vsel %vm203, %v2357, 0
    %v2389 = vsel %vm203, %v2358, 0
    %v2392 = vsel %vm203, %v2359, 0
    %v2395 = vsel %vm203, %v2360, 0
    %2397 = vmatprep.subr.mxu0 0.0
    %2398 = vmatpush1.msra.mxu0 %v2353
    %2399 = vmatprep.subr.mxu0 0.0
    %2400 = vmatpush1.msra.mxu0 %v2354
    %2401 = vmatprep.subr.mxu0 0.0
    %2402 = vmatpush1.msra.mxu0 %v2355
    %2403 = vmatprep.subr.mxu0 0.0
    %2404 = vmatpush1.msra.mxu0 %v2356
    %2405 = vmatprep.subr.mxu0 0.0
    %2406 = vmatpush1.msra.mxu0 0.0
    %2407 = vmatprep.subr.mxu0 0.0
    %2408 = vmatpush1.msra.mxu0 0.0
    %2409 = vmatprep.subr.mxu0 0.0
    %2410 = vmatpush1.msra.mxu0 0.0
    %2411 = vmatprep.subr.mxu0 0.0
    %2412 = vmatpush1.msra.mxu0 0.0
    %2413 = vmatprep.subr.mxu0 0.0
    %2414 = vmatpush1.msra.mxu0 0.0
    %2415 = vmatprep.subr.mxu0 0.0
    %2416 = vmatpush1.msra.mxu0 0.0
    %2417 = vmatprep.subr.mxu0 0.0
    %2418 = vmatpush1.msra.mxu0 0.0
    %2419 = vmatprep.subr.mxu0 0.0
    %2420 = vmatpush1.msra.mxu0 0.0
    %2421 = vmatprep.subr.mxu0 0.0
    %2422 = vmatpush1.msra.mxu0 0.0
    %2423 = vmatprep.subr.mxu0 0.0
    %2424 = vmatpush1.msra.mxu0 0.0
    %2425 = vmatprep.subr.mxu0 0.0
    %2426 = vmatpush1.msra.mxu0 0.0
    %2427 = vmatprep.subr.mxu0 0.0
    %2428 = vmatpush1.msra.mxu0 0.0
    %2429 = vmatprep.subr.mxu0 0.0
    %2430 = vmatpush1.msra.mxu0 0.0
    %2431 = vmatprep.subr.mxu0 0.0
    %2432 = vmatpush1.msra.mxu0 0.0
    %2433 = vmatprep.subr.mxu0 0.0
    %2434 = vmatpush1.msra.mxu0 0.0
    %2435 = vmatprep.subr.mxu0 0.0
    %2436 = vmatpush1.msra.mxu0 0.0
    %2437 = vmatprep.subr.mxu0 0.0
    %2438 = vmatpush1.msra.mxu0 0.0
    %2439 = vmatprep.subr.mxu0 0.0
    %2440 = vmatpush1.msra.mxu0 0.0
    %2441 = vmatprep.subr.mxu0 0.0
    %2442 = vmatpush1.msra.mxu0 0.0
    %2443 = vmatprep.subr.mxu0 0.0
    %2444 = vmatpush1.msra.mxu0 0.0
    %2445 = vmatprep.subr.mxu0 0.0
    %2446 = vmatpush1.msra.mxu0 0.0
    %2447 = vmatprep.subr.mxu0 0.0
    %2448 = vmatpush1.msra.mxu0 0.0
    %2449 = vmatprep.subr.mxu0 0.0
    %2450 = vmatpush1.msra.mxu0 0.0
    %2451 = vmatprep.subr.mxu0 0.0
    %2452 = vmatpush1.msra.mxu0 0.0
    %2453 = vmatprep.subr.mxu0 0.0
    %2454 = vmatpush1.msra.mxu0 0.0
    %2455 = vmatprep.subr.mxu0 0.0
    %2456 = vmatpush1.msra.mxu0 0.0
    %2457 = vmatprep.subr.mxu0 0.0
    %2458 = vmatpush1.msra.mxu0 0.0
    %2459 = vmatprep.subr.mxu0 0.0
    %2460 = vmatpush1.msra.mxu0 0.0
    %2461 = vmatprep.mubr.f32.mxu0 0.0
    %2462 = vmatmul.mubr.f32.gmra.mrb[0].mxu0 %v2386
    %v2463 = vpop.f32.mrb[0].mxu0
    %v2464 = vadd.f32 %v2368, %v2463
    %v2465 = vpop.f32.mrb[0].mxu0
    %2466 = vmatprep.mubr.f32.mxu0 0.0
    %2467 = vmatmul.mubr.f32.gmra.mrb[0].mxu0 %v2389
    %v2468 = vpop.f32.mrb[0].mxu0
    %v2469 = vadd.f32 %v2373, %v2468
    %v2470 = vpop.f32.mrb[0].mxu0
    %2471 = vmatprep.mubr.f32.mxu0 0.0
    %2472 = vmatmul.mubr.f32.gmra.mrb[0].mxu0 %v2392
    %v2473 = vpop.f32.mrb[0].mxu0
    %v2474 = vadd.f32 %v2378, %v2473
    %v2475 = vpop.f32.mrb[0].mxu0
    %2476 = vmatprep.mubr.f32.mxu0 0.0
    %2477 = vmatmul.mubr.f32.gmra.mrb[0].mxu0 %v2395
    %v2478 = vpop.f32.mrb[0].mxu0
    %v2479 = vadd.f32 %v2383, %v2478
    %v2480 = vpop.f32.mrb[0].mxu0
    %2481 = vdwg.mxu0
    %v2482 = vmax.f32 %v2464, 0.0
    %v2483 = vmax.f32 %v2469, 0.0
    %v2484 = vmax.f32 %v2474, 0.0
    %v2485 = vmax.f32 %v2479, 0.0
    %v2486 = vadd.f32 %v2482, %v2353
    %v2487 = vadd.f32 %v2483, %v2354
    %v2488 = vadd.f32 %v2484, %v2355
    %v2489 = vadd.f32 %v2485, %v2356
    %v2490 = vld [vmem:[%s57] sm:$0xff]
    %v2491 = vld [vmem:[%s57 + $0x8] sm:$0xff]
    %v2492 = vld [vmem:[%s57 + $0x10] sm:$0xff]
    %v2493 = vld [vmem:[%s57 + $0x18] sm:$0xff]
    %v2494 = vld [vmem:[%s57 + $0x20] sm:$0xff]
    %v2495 = vld [vmem:[%s57 + $0x28] sm:$0xff]
    %v2496 = vld [vmem:[%s57 + $0x30] sm:$0xff]
    %v2497 = vld [vmem:[%s57 + $0x38] sm:$0xff]
    %v2498 = vld [vmem:[%s57 + $0x40] sm:$0xff]
    %v2499 = vld [vmem:[%s57 + $0x48] sm:$0xff]
    %v2500 = vld [vmem:[%s57 + $0x50] sm:$0xff]
    %v2501 = vld [vmem:[%s57 + $0x58] sm:$0xff]
    %v2502 = vld [vmem:[%s57 + $0x60] sm:$0xff]
    %v2503 = vld [vmem:[%s57 + $0x68] sm:$0xff]
    %v2504 = vld [vmem:[%s57 + $0x70] sm:$0xff]
    %v2505 = vld [vmem:[%s57 + $0x78] sm:$0xff]
    %v2506 = vld [vmem:[%s59] sm:$0xff]
    %v2507 = vld [vmem:[%s59 + $0x8] sm:$0xff]
    %v2508 = vld [vmem:[%s59 + $0x10] sm:$0xff]
    %v2509 = vld [vmem:[%s59 + $0x18] sm:$0xff]
    %v2510 = vld [vmem:[%s59 + $0x20] sm:$0xff]
    %v2511 = vld [vmem:[%s59 + $0x28] sm:$0xff]
    %v2512 = vld [vmem:[%s59 + $0x30] sm:$0xff]
    %v2513 = vld [vmem:[%s59 + $0x38] sm:$0xff]
    %v2514 = vld [vmem:[%s59 + $0x40] sm:$0xff]
    %v2515 = vld [vmem:[%s59 + $0x48] sm:$0xff]
    %v2516 = vld [vmem:[%s59 + $0x50] sm:$0xff]
    %v2517 = vld [vmem:[%s59 + $0x58] sm:$0xff]
    %v2518 = vld [vmem:[%s59 + $0x60] sm:$0xff]
    %v2519 = vld [vmem:[%s59 + $0x68] sm:$0xff]
    %v2520 = vld [vmem:[%s59 + $0x70] sm:$0xff]
    %v2521 = vld [vmem:[%s59 + $0x78] sm:$0xff]
    %2523 = vset.pattern.permute.xlu0 0
    %2524 = vperm.xlu0 %2523, %v2506
    %v2525 = vpop.permute.xlu0 %2524
    %2528 = vset.pattern.permute.xlu0 0
    %2529 = vperm.xlu0 %2528, %v2507
    %v2530 = vpop.permute.xlu0 %2529
    %2533 = vset.pattern.permute.xlu0 0
    %2534 = vperm.xlu0 %2533, %v2508
    %v2535 = vpop.permute.xlu0 %2534
    %2538 = vset.pattern.permute.xlu0 0
    %2539 = vperm.xlu0 %2538, %v2509
    %v2540 = vpop.permute.xlu0 %2539
    %2543 = vset.pattern.permute.xlu0 0
    %2544 = vperm.xlu0 %2543, %v2510
    %v2545 = vpop.permute.xlu0 %2544
    %2548 = vset.pattern.permute.xlu0 0
    %2549 = vperm.xlu0 %2548, %v2511
    %v2550 = vpop.permute.xlu0 %2549
    %2553 = vset.pattern.permute.xlu0 0
    %2554 = vperm.xlu0 %2553, %v2512
    %v2555 = vpop.permute.xlu0 %2554
    %2558 = vset.pattern.permute.xlu0 0
    %2559 = vperm.xlu0 %2558, %v2513
    %v2560 = vpop.permute.xlu0 %2559
    %2563 = vset.pattern.permute.xlu0 0
    %2564 = vperm.xlu0 %2563, %v2514
    %v2565 = vpop.permute.xlu0 %2564
    %2568 = vset.pattern.permute.xlu0 0
    %2569 = vperm.xlu0 %2568, %v2515
    %v2570 = vpop.permute.xlu0 %2569
    %2573 = vset.pattern.permute.xlu0 0
    %2574 = vperm.xlu0 %2573, %v2516
    %v2575 = vpop.permute.xlu0 %2574
    %2578 = vset.pattern.permute.xlu0 0
    %2579 = vperm.xlu0 %2578, %v2517
    %v2580 = vpop.permute.xlu0 %2579
    %2583 = vset.pattern.permute.xlu0 0
    %2584 = vperm.xlu0 %2583, %v2518
    %v2585 = vpop.permute.xlu0 %2584
    %2588 = vset.pattern.permute.xlu0 0
    %2589 = vperm.xlu0 %2588, %v2519
    %v2590 = vpop.permute.xlu0 %2589
    %2593 = vset.pattern.permute.xlu0 0
    %2594 = vperm.xlu0 %2593, %v2520
    %v2595 = vpop.permute.xlu0 %2594
    %2598 = vset.pattern.permute.xlu0 0
    %2599 = vperm.xlu0 %2598, %v2521
    %v2600 = vpop.permute.xlu0 %2599
    %v2603 = vsel %vm203, %v2490, 0
    %v2606 = vsel %vm203, %v2491, 0
    %v2609 = vsel %vm203, %v2492, 0
    %v2612 = vsel %vm203, %v2493, 0
    %v2615 = vsel %vm203, %v2494, 0
    %v2618 = vsel %vm203, %v2495, 0
    %v2621 = vsel %vm203, %v2496, 0
    %v2624 = vsel %vm203, %v2497, 0
    %v2627 = vsel %vm203, %v2498, 0
    %v2630 = vsel %vm203, %v2499, 0
    %v2633 = vsel %vm203, %v2500, 0
    %v2636 = vsel %vm203, %v2501, 0
    %v2639 = vsel %vm203, %v2502, 0
    %v2642 = vsel %vm203, %v2503, 0
    %v2645 = vsel %vm203, %v2504, 0
    %v2648 = vsel %vm203, %v2505, 0
    %2650 = vmatprep.subr.mxu0 0.0
    %2651 = vmatpush1.msra.mxu0 %v2486
    %2652 = vmatprep.subr.mxu0 0.0
    %2653 = vmatpush1.msra.mxu0 %v2487
    %2654 = vmatprep.subr.mxu0 0.0
    %2655 = vmatpush1.msra.mxu0 %v2488
    %2656 = vmatprep.subr.mxu0 0.0
    %2657 = vmatpush1.msra.mxu0 %v2489
    %2658 = vmatprep.subr.mxu0 0.0
    %2659 = vmatpush1.msra.mxu0 0.0
    %2660 = vmatprep.subr.mxu0 0.0
    %2661 = vmatpush1.msra.mxu0 0.0
    %2662 = vmatprep.subr.mxu0 0.0
    %2663 = vmatpush1.msra.mxu0 0.0
    %2664 = vmatprep.subr.mxu0 0.0
    %2665 = vmatpush1.msra.mxu0 0.0
    %2666 = vmatprep.subr.mxu0 0.0
    %2667 = vmatpush1.msra.mxu0 0.0
    %2668 = vmatprep.subr.mxu0 0.0
    %2669 = vmatpush1.msra.mxu0 0.0
    %2670 = vmatprep.subr.mxu0 0.0
    %2671 = vmatpush1.msra.mxu0 0.0
    %2672 = vmatprep.subr.mxu0 0.0
    %2673 = vmatpush1.msra.mxu0 0.0
    %2674 = vmatprep.subr.mxu0 0.0
    %2675 = vmatpush1.msra.mxu0 0.0
    %2676 = vmatprep.subr.mxu0 0.0
    %2677 = vmatpush1.msra.mxu0 0.0
    %2678 = vmatprep.subr.mxu0 0.0
    %2679 = vmatpush1.msra.mxu0 0.0
    %2680 = vmatprep.subr.mxu0 0.0
    %2681 = vmatpush1.msra.mxu0 0.0
    %2682 = vmatprep.subr.mxu0 0.0
    %2683 = vmatpush1.msra.mxu0 0.0
    %2684 = vmatprep.subr.mxu0 0.0
    %2685 = vmatpush1.msra.mxu0 0.0
    %2686 = vmatprep.subr.mxu0 0.0
    %2687 = vmatpush1.msra.mxu0 0.0
    %2688 = vmatprep.subr.mxu0 0.0
    %2689 = vmatpush1.msra.mxu0 0.0
    %2690 = vmatprep.subr.mxu0 0.0
    %2691 = vmatpush1.msra.mxu0 0.0
    %2692 = vmatprep.subr.mxu0 0.0
    %2693 = vmatpush1.msra.mxu0 0.0
    %2694 = vmatprep.subr.mxu0 0.0
    %2695 = vmatpush1.msra.mxu0 0.0
    %2696 = vmatprep.subr.mxu0 0.0
    %2697 = vmatpush1.msra.mxu0 0.0
    %2698 = vmatprep.subr.mxu0 0.0
    %2699 = vmatpush1.msra.mxu0 0.0
    %2700 = vmatprep.subr.mxu0 0.0
    %2701 = vmatpush1.msra.mxu0 0.0
    %2702 = vmatprep.subr.mxu0 0.0
    %2703 = vmatpush1.msra.mxu0 0.0
    %2704 = vmatprep.subr.mxu0 0.0
    %2705 = vmatpush1.msra.mxu0 0.0
    %2706 = vmatprep.subr.mxu0 0.0
    %2707 = vmatpush1.msra.mxu0 0.0
    %2708 = vmatprep.subr.mxu0 0.0
    %2709 = vmatpush1.msra.mxu0 0.0
    %2710 = vmatprep.subr.mxu0 0.0
    %2711 = vmatpush1.msra.mxu0 0.0
    %2712 = vmatprep.subr.mxu0 0.0
    %2713 = vmatpush1.msra.mxu0 0.0
    %2714 = vmatprep.mubr.f32.mxu0 0.0
    %2715 = vmatmul.mubr.f32.gmra.mrb[0].mxu0 %v2603
    %v2716 = vpop.f32.mrb[0].mxu0
    %v2717 = vadd.f32 %v2525, %v2716
    %v2718 = vpop.f32.mrb[0].mxu0
    %2719 = vmatprep.mubr.f32.mxu0 0.0
    %2720 = vmatmul.mubr.f32.gmra.mrb[0].mxu0 %v2606
    %v2721 = vpop.f32.mrb[0].mxu0
    %v2722 = vadd.f32 %v2530, %v2721
    %v2723 = vpop.f32.mrb[0].mxu0
    %2724 = vmatprep.mubr.f32.mxu0 0.0
    %2725 = vmatmul.mubr.f32.gmra.mrb[0].mxu0 %v2609
    %v2726 = vpop.f32.mrb[0].mxu0
    %v2727 = vadd.f32 %v2535, %v2726
    %v2728 = vpop.f32.mrb[0].mxu0
    %2729 = vmatprep.mubr.f32.mxu0 0.0
    %2730 = vmatmul.mubr.f32.gmra.mrb[0].mxu0 %v2612
    %v2731 = vpop.f32.mrb[0].mxu0
    %v2732 = vadd.f32 %v2540, %v2731
    %v2733 = vpop.f32.mrb[0].mxu0
    %2734 = vmatprep.mubr.f32.mxu0 0.0
    %2735 = vmatmul.mubr.f32.gmra.mrb[0].mxu0 %v2615
    %v2736 = vpop.f32.mrb[0].mxu0
    %v2737 = vadd.f32 %v2545, %v2736
    %v2738 = vpop.f32.mrb[0].mxu0
    %2739 = vmatprep.mubr.f32.mxu0 0.0
    %2740 = vmatmul.mubr.f32.gmra.mrb[0].mxu0 %v2618
    %v2741 = vpop.f32.mrb[0].mxu0
    %v2742 = vadd.f32 %v2550, %v2741
    %v2743 = vpop.f32.mrb[0].mxu0
    %2744 = vmatprep.mubr.f32.mxu0 0.0
    %2745 = vmatmul.mubr.f32.gmra.mrb[0].mxu0 %v2621
    %v2746 = vpop.f32.mrb[0].mxu0
    %v2747 = vadd.f32 %v2555, %v2746
    %v2748 = vpop.f32.mrb[0].mxu0
    %2749 = vmatprep.mubr.f32.mxu0 0.0
    %2750 = vmatmul.mubr.f32.gmra.mrb[0].mxu0 %v2624
    %v2751 = vpop.f32.mrb[0].mxu0
    %v2752 = vadd.f32 %v2560, %v2751
    %v2753 = vpop.f32.mrb[0].mxu0
    %2754 = vmatprep.mubr.f32.mxu0 0.0
    %2755 = vmatmul.mubr.f32.gmra.mrb[0].mxu0 %v2627
    %v2756 = vpop.f32.mrb[0].mxu0
    %v2757 = vadd.f32 %v2565, %v2756
    %v2758 = vpop.f32.mrb[0].mxu0
    %2759 = vmatprep.mubr.f32.mxu0 0.0
    %2760 = vmatmul.mubr.f32.gmra.mrb[0].mxu0 %v2630
    %v2761 = vpop.f32.mrb[0].mxu0
    %v2762 = vadd.f32 %v2570, %v2761
    %v2763 = vpop.f32.mrb[0].mxu0
    %2764 = vmatprep.mubr.f32.mxu0 0.0
    %2765 = vmatmul.mubr.f32.gmra.mrb[0].mxu0 %v2633
    %v2766 = vpop.f32.mrb[0].mxu0
    %v2767 = vadd.f32 %v2575, %v2766
    %v2768 = vpop.f32.mrb[0].mxu0
    %2769 = vmatprep.mubr.f32.mxu0 0.0
    %2770 = vmatmul.mubr.f32.gmra.mrb[0].mxu0 %v2636
    %v2771 = vpop.f32.mrb[0].mxu0
    %v2772 = vadd.f32 %v2580, %v2771
    %v2773 = vpop.f32.mrb[0].mxu0
    %2774 = vmatprep.mubr.f32.mxu0 0.0
    %2775 = vmatmul.mubr.f32.gmra.mrb[0].mxu0 %v2639
    %v2776 = vpop.f32.mrb[0].mxu0
    %v2777 = vadd.f32 %v2585, %v2776
    %v2778 = vpop.f32.mrb[0].mxu0
    %2779 = vmatprep.mubr.f32.mxu0 0.0
    %2780 = vmatmul.mubr.f32.gmra.mrb[0].mxu0 %v2642
    %v2781 = vpop.f32.mrb[0].mxu0
    %v2782 = vadd.f32 %v2590, %v2781
    %v2783 = vpop.f32.mrb[0].mxu0
    %2784 = vmatprep.mubr.f32.mxu0 0.0
    %2785 = vmatmul.mubr.f32.gmra.mrb[0].mxu0 %v2645
    %v2786 = vpop.f32.mrb[0].mxu0
    %v2787 = vadd.f32 %v2595, %v2786
    %v2788 = vpop.f32.mrb[0].mxu0
    %2789 = vmatprep.mubr.f32.mxu0 0.0
    %2790 = vmatmul.mubr.f32.gmra.mrb[0].mxu0 %v2648
    %v2791 = vpop.f32.mrb[0].mxu0
    %v2792 = vadd.f32 %v2600, %v2791
    %v2793 = vpop.f32.mrb[0].mxu0
    %2794 = vdwg.mxu0
    %v2795 = vld [vmem:[%s61] sm:$0xff]
    %v2796 = vld [vmem:[%s61 + $0x8] sm:$0xff]
    %v2797 = vld [vmem:[%s61 + $0x10] sm:$0xff]
    %v2798 = vld [vmem:[%s61 + $0x18] sm:$0xff]
    %v2799 = vld [vmem:[%s61 + $0x20] sm:$0xff]
    %v2800 = vld [vmem:[%s61 + $0x28] sm:$0xff]
    %v2801 = vld [vmem:[%s61 + $0x30] sm:$0xff]
    %v2802 = vld [vmem:[%s61 + $0x38] sm:$0xff]
    %v2803 = vld [vmem:[%s61 + $0x40] sm:$0xff]
    %v2804 = vld [vmem:[%s61 + $0x48] sm:$0xff]
    %v2805 = vld [vmem:[%s61 + $0x50] sm:$0xff]
    %v2806 = vld [vmem:[%s61 + $0x58] sm:$0xff]
    %v2807 = vld [vmem:[%s61 + $0x60] sm:$0xff]
    %v2808 = vld [vmem:[%s61 + $0x68] sm:$0xff]
    %v2809 = vld [vmem:[%s61 + $0x70] sm:$0xff]
    %v2810 = vld [vmem:[%s61 + $0x78] sm:$0xff]
    %v2812 = vsel %vm203, %v2795, 0
    %v2815 = vsel %vm203, %v2796, 0
    %v2818 = vsel %vm203, %v2797, 0
    %v2821 = vsel %vm203, %v2798, 0
    %v2824 = vsel %vm203, %v2799, 0
    %v2827 = vsel %vm203, %v2800, 0
    %v2830 = vsel %vm203, %v2801, 0
    %v2833 = vsel %vm203, %v2802, 0
    %v2836 = vsel %vm203, %v2803, 0
    %v2839 = vsel %vm203, %v2804, 0
    %v2842 = vsel %vm203, %v2805, 0
    %v2845 = vsel %vm203, %v2806, 0
    %v2848 = vsel %vm203, %v2807, 0
    %v2851 = vsel %vm203, %v2808, 0
    %v2854 = vsel %vm203, %v2809, 0
    %v2857 = vsel %vm203, %v2810, 0
    %2859 = vmatprep.subr.mxu0 0.0
    %2860 = vmatpush1.msra.mxu0 %v2486
    %2861 = vmatprep.subr.mxu0 0.0
    %2862 = vmatpush1.msra.mxu0 %v2487
    %2863 = vmatprep.subr.mxu0 0.0
    %2864 = vmatpush1.msra.mxu0 %v2488
    %2865 = vmatprep.subr.mxu0 0.0
    %2866 = vmatpush1.msra.mxu0 %v2489
    %2867 = vmatprep.subr.mxu0 0.0
    %2868 = vmatpush1.msra.mxu0 0.0
    %2869 = vmatprep.subr.mxu0 0.0
    %2870 = vmatpush1.msra.mxu0 0.0
    %2871 = vmatprep.subr.mxu0 0.0
    %2872 = vmatpush1.msra.mxu0 0.0
    %2873 = vmatprep.subr.mxu0 0.0
    %2874 = vmatpush1.msra.mxu0 0.0
    %2875 = vmatprep.subr.mxu0 0.0
    %2876 = vmatpush1.msra.mxu0 0.0
    %2877 = vmatprep.subr.mxu0 0.0
    %2878 = vmatpush1.msra.mxu0 0.0
    %2879 = vmatprep.subr.mxu0 0.0
    %2880 = vmatpush1.msra.mxu0 0.0
    %2881 = vmatprep.subr.mxu0 0.0
    %2882 = vmatpush1.msra.mxu0 0.0
    %2883 = vmatprep.subr.mxu0 0.0
    %2884 = vmatpush1.msra.mxu0 0.0
    %2885 = vmatprep.subr.mxu0 0.0
    %2886 = vmatpush1.msra.mxu0 0.0
    %2887 = vmatprep.subr.mxu0 0.0
    %2888 = vmatpush1.msra.mxu0 0.0
    %2889 = vmatprep.subr.mxu0 0.0
    %2890 = vmatpush1.msra.mxu0 0.0
    %2891 = vmatprep.subr.mxu0 0.0
    %2892 = vmatpush1.msra.mxu0 0.0
    %2893 = vmatprep.subr.mxu0 0.0
    %2894 = vmatpush1.msra.mxu0 0.0
    %2895 = vmatprep.subr.mxu0 0.0
    %2896 = vmatpush1.msra.mxu0 0.0
    %2897 = vmatprep.subr.mxu0 0.0
    %2898 = vmatpush1.msra.mxu0 0.0
    %2899 = vmatprep.subr.mxu0 0.0
    %2900 = vmatpush1.msra.mxu0 0.0
    %2901 = vmatprep.subr.mxu0 0.0
    %2902 = vmatpush1.msra.mxu0 0.0
    %2903 = vmatprep.subr.mxu0 0.0
    %2904 = vmatpush1.msra.mxu0 0.0
    %2905 = vmatprep.subr.mxu0 0.0
    %2906 = vmatpush1.msra.mxu0 0.0
    %2907 = vmatprep.subr.mxu0 0.0
    %2908 = vmatpush1.msra.mxu0 0.0
    %2909 = vmatprep.subr.mxu0 0.0
    %2910 = vmatpush1.msra.mxu0 0.0
    %2911 = vmatprep.subr.mxu0 0.0
    %2912 = vmatpush1.msra.mxu0 0.0
    %2913 = vmatprep.subr.mxu0 0.0
    %2914 = vmatpush1.msra.mxu0 0.0
    %2915 = vmatprep.subr.mxu0 0.0
    %2916 = vmatpush1.msra.mxu0 0.0
    %2917 = vmatprep.subr.mxu0 0.0
    %2918 = vmatpush1.msra.mxu0 0.0
    %2919 = vmatprep.subr.mxu0 0.0
    %2920 = vmatpush1.msra.mxu0 0.0
    %2921 = vmatprep.subr.mxu0 0.0
    %2922 = vmatpush1.msra.mxu0 0.0
    %2923 = vmatprep.mubr.f32.mxu0 0.0
    %2924 = vmatmul.mubr.f32.gmra.mrb[0].mxu0 %v2812
    %v2925 = vpop.f32.mrb[0].mxu0
    %v2926 = vadd.f32 0.0, %v2925
    %v2927 = vpop.f32.mrb[0].mxu0
    %2928 = vmatprep.mubr.f32.mxu0 0.0
    %2929 = vmatmul.mubr.f32.gmra.mrb[0].mxu0 %v2815
    %v2930 = vpop.f32.mrb[0].mxu0
    %v2931 = vadd.f32 0.0, %v2930
    %v2932 = vpop.f32.mrb[0].mxu0
    %2933 = vmatprep.mubr.f32.mxu0 0.0
    %2934 = vmatmul.mubr.f32.gmra.mrb[0].mxu0 %v2818
    %v2935 = vpop.f32.mrb[0].mxu0
    %v2936 = vadd.f32 0.0, %v2935
    %v2937 = vpop.f32.mrb[0].mxu0
    %2938 = vmatprep.mubr.f32.mxu0 0.0
    %2939 = vmatmul.mubr.f32.gmra.mrb[0].mxu0 %v2821
    %v2940 = vpop.f32.mrb[0].mxu0
    %v2941 = vadd.f32 0.0, %v2940
    %v2942 = vpop.f32.mrb[0].mxu0
    %2943 = vmatprep.mubr.f32.mxu0 0.0
    %2944 = vmatmul.mubr.f32.gmra.mrb[0].mxu0 %v2824
    %v2945 = vpop.f32.mrb[0].mxu0
    %v2946 = vadd.f32 0.0, %v2945
    %v2947 = vpop.f32.mrb[0].mxu0
    %2948 = vmatprep.mubr.f32.mxu0 0.0
    %2949 = vmatmul.mubr.f32.gmra.mrb[0].mxu0 %v2827
    %v2950 = vpop.f32.mrb[0].mxu0
    %v2951 = vadd.f32 0.0, %v2950
    %v2952 = vpop.f32.mrb[0].mxu0
    %2953 = vmatprep.mubr.f32.mxu0 0.0
    %2954 = vmatmul.mubr.f32.gmra.mrb[0].mxu0 %v2830
    %v2955 = vpop.f32.mrb[0].mxu0
    %v2956 = vadd.f32 0.0, %v2955
    %v2957 = vpop.f32.mrb[0].mxu0
    %2958 = vmatprep.mubr.f32.mxu0 0.0
    %2959 = vmatmul.mubr.f32.gmra.mrb[0].mxu0 %v2833
    %v2960 = vpop.f32.mrb[0].mxu0
    %v2961 = vadd.f32 0.0, %v2960
    %v2962 = vpop.f32.mrb[0].mxu0
    %2963 = vmatprep.mubr.f32.mxu0 0.0
    %2964 = vmatmul.mubr.f32.gmra.mrb[0].mxu0 %v2836
    %v2965 = vpop.f32.mrb[0].mxu0
    %v2966 = vadd.f32 0.0, %v2965
    %v2967 = vpop.f32.mrb[0].mxu0
    %2968 = vmatprep.mubr.f32.mxu0 0.0
    %2969 = vmatmul.mubr.f32.gmra.mrb[0].mxu0 %v2839
    %v2970 = vpop.f32.mrb[0].mxu0
    %v2971 = vadd.f32 0.0, %v2970
    %v2972 = vpop.f32.mrb[0].mxu0
    %2973 = vmatprep.mubr.f32.mxu0 0.0
    %2974 = vmatmul.mubr.f32.gmra.mrb[0].mxu0 %v2842
    %v2975 = vpop.f32.mrb[0].mxu0
    %v2976 = vadd.f32 0.0, %v2975
    %v2977 = vpop.f32.mrb[0].mxu0
    %2978 = vmatprep.mubr.f32.mxu0 0.0
    %2979 = vmatmul.mubr.f32.gmra.mrb[0].mxu0 %v2845
    %v2980 = vpop.f32.mrb[0].mxu0
    %v2981 = vadd.f32 0.0, %v2980
    %v2982 = vpop.f32.mrb[0].mxu0
    %2983 = vmatprep.mubr.f32.mxu0 0.0
    %2984 = vmatmul.mubr.f32.gmra.mrb[0].mxu0 %v2848
    %v2985 = vpop.f32.mrb[0].mxu0
    %v2986 = vadd.f32 0.0, %v2985
    %v2987 = vpop.f32.mrb[0].mxu0
    %2988 = vmatprep.mubr.f32.mxu0 0.0
    %2989 = vmatmul.mubr.f32.gmra.mrb[0].mxu0 %v2851
    %v2990 = vpop.f32.mrb[0].mxu0
    %v2991 = vadd.f32 0.0, %v2990
    %v2992 = vpop.f32.mrb[0].mxu0
    %2993 = vmatprep.mubr.f32.mxu0 0.0
    %2994 = vmatmul.mubr.f32.gmra.mrb[0].mxu0 %v2854
    %v2995 = vpop.f32.mrb[0].mxu0
    %v2996 = vadd.f32 0.0, %v2995
    %v2997 = vpop.f32.mrb[0].mxu0
    %2998 = vmatprep.mubr.f32.mxu0 0.0
    %2999 = vmatmul.mubr.f32.gmra.mrb[0].mxu0 %v2857
    %v3000 = vpop.f32.mrb[0].mxu0
    %v3001 = vadd.f32 0.0, %v3000
    %v3002 = vpop.f32.mrb[0].mxu0
    %3003 = vdwg.mxu0
    %v3004 = vmax.f32 %v2717, 0.0
    %v3005 = vmax.f32 %v2722, 0.0
    %v3006 = vmax.f32 %v2727, 0.0
    %v3007 = vmax.f32 %v2732, 0.0
    %v3008 = vmax.f32 %v2737, 0.0
    %v3009 = vmax.f32 %v2742, 0.0
    %v3010 = vmax.f32 %v2747, 0.0
    %v3011 = vmax.f32 %v2752, 0.0
    %v3012 = vmax.f32 %v2757, 0.0
    %v3013 = vmax.f32 %v2762, 0.0
    %v3014 = vmax.f32 %v2767, 0.0
    %v3015 = vmax.f32 %v2772, 0.0
    %v3016 = vmax.f32 %v2777, 0.0
    %v3017 = vmax.f32 %v2782, 0.0
    %v3018 = vmax.f32 %v2787, 0.0
    %v3019 = vmax.f32 %v2792, 0.0
    %v3020 = vadd.f32 %v3004, %v2926
    %v3021 = vadd.f32 %v3005, %v2931
    %v3022 = vadd.f32 %v3006, %v2936
    %v3023 = vadd.f32 %v3007, %v2941
    %v3024 = vadd.f32 %v3008, %v2946
    %v3025 = vadd.f32 %v3009, %v2951
    %v3026 = vadd.f32 %v3010, %v2956
    %v3027 = vadd.f32 %v3011, %v2961
    %v3028 = vadd.f32 %v3012, %v2966
    %v3029 = vadd.f32 %v3013, %v2971
    %v3030 = vadd.f32 %v3014, %v2976
    %v3031 = vadd.f32 %v3015, %v2981
    %v3032 = vadd.f32 %v3016, %v2986
    %v3033 = vadd.f32 %v3017, %v2991
    %v3034 = vadd.f32 %v3018, %v2996
    %v3035 = vadd.f32 %v3019, %v3001
    %v3036 = vld [vmem:[%s63] sm:$0xff]
    %v3037 = vld [vmem:[%s63 + $0x8] sm:$0xff]
    %v3038 = vld [vmem:[%s63 + $0x10] sm:$0xff]
    %v3039 = vld [vmem:[%s63 + $0x18] sm:$0xff]
    %v3040 = vld [vmem:[%s63 + $0x20] sm:$0xff]
    %v3041 = vld [vmem:[%s63 + $0x28] sm:$0xff]
    %v3042 = vld [vmem:[%s63 + $0x30] sm:$0xff]
    %v3043 = vld [vmem:[%s63 + $0x38] sm:$0xff]
    %v3044 = vld [vmem:[%s63 + $0x40] sm:$0xff]
    %v3045 = vld [vmem:[%s63 + $0x48] sm:$0xff]
    %v3046 = vld [vmem:[%s63 + $0x50] sm:$0xff]
    %v3047 = vld [vmem:[%s63 + $0x58] sm:$0xff]
    %v3048 = vld [vmem:[%s63 + $0x60] sm:$0xff]
    %v3049 = vld [vmem:[%s63 + $0x68] sm:$0xff]
    %v3050 = vld [vmem:[%s63 + $0x70] sm:$0xff]
    %v3051 = vld [vmem:[%s63 + $0x78] sm:$0xff]
    %v3052 = vld [vmem:[%s65] sm:$0xff]
    %v3053 = vld [vmem:[%s65 + $0x8] sm:$0xff]
    %v3054 = vld [vmem:[%s65 + $0x10] sm:$0xff]
    %v3055 = vld [vmem:[%s65 + $0x18] sm:$0xff]
    %v3056 = vld [vmem:[%s65 + $0x20] sm:$0xff]
    %v3057 = vld [vmem:[%s65 + $0x28] sm:$0xff]
    %v3058 = vld [vmem:[%s65 + $0x30] sm:$0xff]
    %v3059 = vld [vmem:[%s65 + $0x38] sm:$0xff]
    %v3060 = vld [vmem:[%s65 + $0x40] sm:$0xff]
    %v3061 = vld [vmem:[%s65 + $0x48] sm:$0xff]
    %v3062 = vld [vmem:[%s65 + $0x50] sm:$0xff]
    %v3063 = vld [vmem:[%s65 + $0x58] sm:$0xff]
    %v3064 = vld [vmem:[%s65 + $0x60] sm:$0xff]
    %v3065 = vld [vmem:[%s65 + $0x68] sm:$0xff]
    %v3066 = vld [vmem:[%s65 + $0x70] sm:$0xff]
    %v3067 = vld [vmem:[%s65 + $0x78] sm:$0xff]
    %3069 = vset.pattern.permute.xlu0 0
    %3070 = vperm.xlu0 %3069, %v3052
    %v3071 = vpop.permute.xlu0 %3070
    %3074 = vset.pattern.permute.xlu0 0
    %3075 = vperm.xlu0 %3074, %v3053
    %v3076 = vpop.permute.xlu0 %3075
    %3079 = vset.pattern.permute.xlu0 0
    %3080 = vperm.xlu0 %3079, %v3054
    %v3081 = vpop.permute.xlu0 %3080
    %3084 = vset.pattern.permute.xlu0 0
    %3085 = vperm.xlu0 %3084, %v3055
    %v3086 = vpop.permute.xlu0 %3085
    %3089 = vset.pattern.permute.xlu0 0
    %3090 = vperm.xlu0 %3089, %v3056
    %v3091 = vpop.permute.xlu0 %3090
    %3094 = vset.pattern.permute.xlu0 0
    %3095 = vperm.xlu0 %3094, %v3057
    %v3096 = vpop.permute.xlu0 %3095
    %3099 = vset.pattern.permute.xlu0 0
    %3100 = vperm.xlu0 %3099, %v3058
    %v3101 = vpop.permute.xlu0 %3100
    %3104 = vset.pattern.permute.xlu0 0
    %3105 = vperm.xlu0 %3104, %v3059
    %v3106 = vpop.permute.xlu0 %3105
    %3109 = vset.pattern.permute.xlu0 0
    %3110 = vperm.xlu0 %3109, %v3060
    %v3111 = vpop.permute.xlu0 %3110
    %3114 = vset.pattern.permute.xlu0 0
    %3115 = vperm.xlu0 %3114, %v3061
    %v3116 = vpop.permute.xlu0 %3115
    %3119 = vset.pattern.permute.xlu0 0
    %3120 = vperm.xlu0 %3119, %v3062
    %v3121 = vpop.permute.xlu0 %3120
    %3124 = vset.pattern.permute.xlu0 0
    %3125 = vperm.xlu0 %3124, %v3063
    %v3126 = vpop.permute.xlu0 %3125
    %3129 = vset.pattern.permute.xlu0 0
    %3130 = vperm.xlu0 %3129, %v3064
    %v3131 = vpop.permute.xlu0 %3130
    %3134 = vset.pattern.permute.xlu0 0
    %3135 = vperm.xlu0 %3134, %v3065
    %v3136 = vpop.permute.xlu0 %3135
    %3139 = vset.pattern.permute.xlu0 0
    %3140 = vperm.xlu0 %3139, %v3066
    %v3141 = vpop.permute.xlu0 %3140
    %3144 = vset.pattern.permute.xlu0 0
    %3145 = vperm.xlu0 %3144, %v3067
    %v3146 = vpop.permute.xlu0 %3145
    %3148 = vmatprep.subr.mxu0 0.0
    %3149 = vmatpush1.msra.mxu0 %v3020
    %3150 = vmatprep.subr.mxu0 0.0
    %3151 = vmatpush1.msra.mxu0 %v3021
    %3152 = vmatprep.subr.mxu0 0.0
    %3153 = vmatpush1.msra.mxu0 %v3022
    %3154 = vmatprep.subr.mxu0 0.0
    %3155 = vmatpush1.msra.mxu0 %v3023
    %3156 = vmatprep.subr.mxu0 0.0
    %3157 = vmatpush1.msra.mxu0 %v3024
    %3158 = vmatprep.subr.mxu0 0.0
    %3159 = vmatpush1.msra.mxu0 %v3025
    %3160 = vmatprep.subr.mxu0 0.0
    %3161 = vmatpush1.msra.mxu0 %v3026
    %3162 = vmatprep.subr.mxu0 0.0
    %3163 = vmatpush1.msra.mxu0 %v3027
    %3164 = vmatprep.subr.mxu0 0.0
    %3165 = vmatpush1.msra.mxu0 %v3028
    %3166 = vmatprep.subr.mxu0 0.0
    %3167 = vmatpush1.msra.mxu0 %v3029
    %3168 = vmatprep.subr.mxu0 0.0
    %3169 = vmatpush1.msra.mxu0 %v3030
    %3170 = vmatprep.subr.mxu0 0.0
    %3171 = vmatpush1.msra.mxu0 %v3031
    %3172 = vmatprep.subr.mxu0 0.0
    %3173 = vmatpush1.msra.mxu0 %v3032
    %3174 = vmatprep.subr.mxu0 0.0
    %3175 = vmatpush1.msra.mxu0 %v3033
    %3176 = vmatprep.subr.mxu0 0.0
    %3177 = vmatpush1.msra.mxu0 %v3034
    %3178 = vmatprep.subr.mxu0 0.0
    %3179 = vmatpush1.msra.mxu0 %v3035
    %3180 = vmatprep.subr.mxu0 0.0
    %3181 = vmatpush1.msra.mxu0 0.0
    %3182 = vmatprep.subr.mxu0 0.0
    %3183 = vmatpush1.msra.mxu0 0.0
    %3184 = vmatprep.subr.mxu0 0.0
    %3185 = vmatpush1.msra.mxu0 0.0
    %3186 = vmatprep.subr.mxu0 0.0
    %3187 = vmatpush1.msra.mxu0 0.0
    %3188 = vmatprep.subr.mxu0 0.0
    %3189 = vmatpush1.msra.mxu0 0.0
    %3190 = vmatprep.subr.mxu0 0.0
    %3191 = vmatpush1.msra.mxu0 0.0
    %3192 = vmatprep.subr.mxu0 0.0
    %3193 = vmatpush1.msra.mxu0 0.0
    %3194 = vmatprep.subr.mxu0 0.0
    %3195 = vmatpush1.msra.mxu0 0.0
    %3196 = vmatprep.subr.mxu0 0.0
    %3197 = vmatpush1.msra.mxu0 0.0
    %3198 = vmatprep.subr.mxu0 0.0
    %3199 = vmatpush1.msra.mxu0 0.0
    %3200 = vmatprep.subr.mxu0 0.0
    %3201 = vmatpush1.msra.mxu0 0.0
    %3202 = vmatprep.subr.mxu0 0.0
    %3203 = vmatpush1.msra.mxu0 0.0
    %3204 = vmatprep.subr.mxu0 0.0
    %3205 = vmatpush1.msra.mxu0 0.0
    %3206 = vmatprep.subr.mxu0 0.0
    %3207 = vmatpush1.msra.mxu0 0.0
    %3208 = vmatprep.subr.mxu0 0.0
    %3209 = vmatpush1.msra.mxu0 0.0
    %3210 = vmatprep.subr.mxu0 0.0
    %3211 = vmatpush1.msra.mxu0 0.0
    %3212 = vmatprep.mubr.f32.mxu0 0.0
    %3213 = vmatmul.mubr.f32.gmra.mrb[0].mxu0 %v3036
    %v3214 = vpop.f32.mrb[0].mxu0
    %v3215 = vadd.f32 %v3071, %v3214
    %v3216 = vpop.f32.mrb[0].mxu0
    %3217 = vmatprep.mubr.f32.mxu0 0.0
    %3218 = vmatmul.mubr.f32.gmra.mrb[0].mxu0 %v3037
    %v3219 = vpop.f32.mrb[0].mxu0
    %v3220 = vadd.f32 %v3076, %v3219
    %v3221 = vpop.f32.mrb[0].mxu0
    %3222 = vmatprep.mubr.f32.mxu0 0.0
    %3223 = vmatmul.mubr.f32.gmra.mrb[0].mxu0 %v3038
    %v3224 = vpop.f32.mrb[0].mxu0
    %v3225 = vadd.f32 %v3081, %v3224
    %v3226 = vpop.f32.mrb[0].mxu0
    %3227 = vmatprep.mubr.f32.mxu0 0.0
    %3228 = vmatmul.mubr.f32.gmra.mrb[0].mxu0 %v3039
    %v3229 = vpop.f32.mrb[0].mxu0
    %v3230 = vadd.f32 %v3086, %v3229
    %v3231 = vpop.f32.mrb[0].mxu0
    %3232 = vmatprep.mubr.f32.mxu0 0.0
    %3233 = vmatmul.mubr.f32.gmra.mrb[0].mxu0 %v3040
    %v3234 = vpop.f32.mrb[0].mxu0
    %v3235 = vadd.f32 %v3091, %v3234
    %v3236 = vpop.f32.mrb[0].mxu0
    %3237 = vmatprep.mubr.f32.mxu0 0.0
    %3238 = vmatmul.mubr.f32.gmra.mrb[0].mxu0 %v3041
    %v3239 = vpop.f32.mrb[0].mxu0
    %v3240 = vadd.f32 %v3096, %v3239
    %v3241 = vpop.f32.mrb[0].mxu0
    %3242 = vmatprep.mubr.f32.mxu0 0.0
    %3243 = vmatmul.mubr.f32.gmra.mrb[0].mxu0 %v3042
    %v3244 = vpop.f32.mrb[0].mxu0
    %v3245 = vadd.f32 %v3101, %v3244
    %v3246 = vpop.f32.mrb[0].mxu0
    %3247 = vmatprep.mubr.f32.mxu0 0.0
    %3248 = vmatmul.mubr.f32.gmra.mrb[0].mxu0 %v3043
    %v3249 = vpop.f32.mrb[0].mxu0
    %v3250 = vadd.f32 %v3106, %v3249
    %v3251 = vpop.f32.mrb[0].mxu0
    %3252 = vmatprep.mubr.f32.mxu0 0.0
    %3253 = vmatmul.mubr.f32.gmra.mrb[0].mxu0 %v3044
    %v3254 = vpop.f32.mrb[0].mxu0
    %v3255 = vadd.f32 %v3111, %v3254
    %v3256 = vpop.f32.mrb[0].mxu0
    %3257 = vmatprep.mubr.f32.mxu0 0.0
    %3258 = vmatmul.mubr.f32.gmra.mrb[0].mxu0 %v3045
    %v3259 = vpop.f32.mrb[0].mxu0
    %v3260 = vadd.f32 %v3116, %v3259
    %v3261 = vpop.f32.mrb[0].mxu0
    %3262 = vmatprep.mubr.f32.mxu0 0.0
    %3263 = vmatmul.mubr.f32.gmra.mrb[0].mxu0 %v3046
    %v3264 = vpop.f32.mrb[0].mxu0
    %v3265 = vadd.f32 %v3121, %v3264
    %v3266 = vpop.f32.mrb[0].mxu0
    %3267 = vmatprep.mubr.f32.mxu0 0.0
    %3268 = vmatmul.mubr.f32.gmra.mrb[0].mxu0 %v3047
    %v3269 = vpop.f32.mrb[0].mxu0
    %v3270 = vadd.f32 %v3126, %v3269
    %v3271 = vpop.f32.mrb[0].mxu0
    %3272 = vmatprep.mubr.f32.mxu0 0.0
    %3273 = vmatmul.mubr.f32.gmra.mrb[0].mxu0 %v3048
    %v3274 = vpop.f32.mrb[0].mxu0
    %v3275 = vadd.f32 %v3131, %v3274
    %v3276 = vpop.f32.mrb[0].mxu0
    %3277 = vmatprep.mubr.f32.mxu0 0.0
    %3278 = vmatmul.mubr.f32.gmra.mrb[0].mxu0 %v3049
    %v3279 = vpop.f32.mrb[0].mxu0
    %v3280 = vadd.f32 %v3136, %v3279
    %v3281 = vpop.f32.mrb[0].mxu0
    %3282 = vmatprep.mubr.f32.mxu0 0.0
    %3283 = vmatmul.mubr.f32.gmra.mrb[0].mxu0 %v3050
    %v3284 = vpop.f32.mrb[0].mxu0
    %v3285 = vadd.f32 %v3141, %v3284
    %v3286 = vpop.f32.mrb[0].mxu0
    %3287 = vmatprep.mubr.f32.mxu0 0.0
    %3288 = vmatmul.mubr.f32.gmra.mrb[0].mxu0 %v3051
    %v3289 = vpop.f32.mrb[0].mxu0
    %v3290 = vadd.f32 %v3146, %v3289
    %v3291 = vpop.f32.mrb[0].mxu0
    %3292 = vdwg.mxu0
    %v3293 = vmax.f32 %v3215, 0.0
    %v3294 = vmax.f32 %v3220, 0.0
    %v3295 = vmax.f32 %v3225, 0.0
    %v3296 = vmax.f32 %v3230, 0.0
    %v3297 = vmax.f32 %v3235, 0.0
    %v3298 = vmax.f32 %v3240, 0.0
    %v3299 = vmax.f32 %v3245, 0.0
    %v3300 = vmax.f32 %v3250, 0.0
    %v3301 = vmax.f32 %v3255, 0.0
    %v3302 = vmax.f32 %v3260, 0.0
    %v3303 = vmax.f32 %v3265, 0.0
    %v3304 = vmax.f32 %v3270, 0.0
    %v3305 = vmax.f32 %v3275, 0.0
    %v3306 = vmax.f32 %v3280, 0.0
    %v3307 = vmax.f32 %v3285, 0.0
    %v3308 = vmax.f32 %v3290, 0.0
    %v3309 = vadd.f32 %v3293, %v3020
    %v3310 = vadd.f32 %v3294, %v3021
    %v3311 = vadd.f32 %v3295, %v3022
    %v3312 = vadd.f32 %v3296, %v3023
    %v3313 = vadd.f32 %v3297, %v3024
    %v3314 = vadd.f32 %v3298, %v3025
    %v3315 = vadd.f32 %v3299, %v3026
    %v3316 = vadd.f32 %v3300, %v3027
    %v3317 = vadd.f32 %v3301, %v3028
    %v3318 = vadd.f32 %v3302, %v3029
    %v3319 = vadd.f32 %v3303, %v3030
    %v3320 = vadd.f32 %v3304, %v3031
    %v3321 = vadd.f32 %v3305, %v3032
    %v3322 = vadd.f32 %v3306, %v3033
    %v3323 = vadd.f32 %v3307, %v3034
    %v3324 = vadd.f32 %v3308, %v3035
    %v3325 = vld [vmem:[%s67] sm:$0xff]
    %v3326 = vld [vmem:[%s67 + $0x8] sm:$0xff]
    %v3327 = vld [vmem:[%s67 + $0x10] sm:$0xff]
    %v3328 = vld [vmem:[%s67 + $0x18] sm:$0xff]
    %v3329 = vld [vmem:[%s67 + $0x20] sm:$0xff]
    %v3330 = vld [vmem:[%s67 + $0x28] sm:$0xff]
    %v3331 = vld [vmem:[%s67 + $0x30] sm:$0xff]
    %v3332 = vld [vmem:[%s67 + $0x38] sm:$0xff]
    %v3333 = vld [vmem:[%s69] sm:$0xff]
    %v3334 = vld [vmem:[%s69 + $0x8] sm:$0xff]
    %v3335 = vld [vmem:[%s69 + $0x10] sm:$0xff]
    %v3336 = vld [vmem:[%s69 + $0x18] sm:$0xff]
    %v3337 = vld [vmem:[%s69 + $0x20] sm:$0xff]
    %v3338 = vld [vmem:[%s69 + $0x28] sm:$0xff]
    %v3339 = vld [vmem:[%s69 + $0x30] sm:$0xff]
    %v3340 = vld [vmem:[%s69 + $0x38] sm:$0xff]
    %3342 = vset.pattern.permute.xlu0 0
    %3343 = vperm.xlu0 %3342, %v3333
    %v3344 = vpop.permute.xlu0 %3343
    %3347 = vset.pattern.permute.xlu0 0
    %3348 = vperm.xlu0 %3347, %v3334
    %v3349 = vpop.permute.xlu0 %3348
    %3352 = vset.pattern.permute.xlu0 0
    %3353 = vperm.xlu0 %3352, %v3335
    %v3354 = vpop.permute.xlu0 %3353
    %3357 = vset.pattern.permute.xlu0 0
    %3358 = vperm.xlu0 %3357, %v3336
    %v3359 = vpop.permute.xlu0 %3358
    %3362 = vset.pattern.permute.xlu0 0
    %3363 = vperm.xlu0 %3362, %v3337
    %v3364 = vpop.permute.xlu0 %3363
    %3367 = vset.pattern.permute.xlu0 0
    %3368 = vperm.xlu0 %3367, %v3338
    %v3369 = vpop.permute.xlu0 %3368
    %3372 = vset.pattern.permute.xlu0 0
    %3373 = vperm.xlu0 %3372, %v3339
    %v3374 = vpop.permute.xlu0 %3373
    %3377 = vset.pattern.permute.xlu0 0
    %3378 = vperm.xlu0 %3377, %v3340
    %v3379 = vpop.permute.xlu0 %3378
    %3381 = vmatprep.subr.mxu0 0.0
    %3382 = vmatpush1.msra.mxu0 %v3309
    %3383 = vmatprep.subr.mxu0 0.0
    %3384 = vmatpush1.msra.mxu0 %v3310
    %3385 = vmatprep.subr.mxu0 0.0
    %3386 = vmatpush1.msra.mxu0 %v3311
    %3387 = vmatprep.subr.mxu0 0.0
    %3388 = vmatpush1.msra.mxu0 %v3312
    %3389 = vmatprep.subr.mxu0 0.0
    %3390 = vmatpush1.msra.mxu0 %v3313
    %3391 = vmatprep.subr.mxu0 0.0
    %3392 = vmatpush1.msra.mxu0 %v3314
    %3393 = vmatprep.subr.mxu0 0.0
    %3394 = vmatpush1.msra.mxu0 %v3315
    %3395 = vmatprep.subr.mxu0 0.0
    %3396 = vmatpush1.msra.mxu0 %v3316
    %3397 = vmatprep.subr.mxu0 0.0
    %3398 = vmatpush1.msra.mxu0 %v3317
    %3399 = vmatprep.subr.mxu0 0.0
    %3400 = vmatpush1.msra.mxu0 %v3318
    %3401 = vmatprep.subr.mxu0 0.0
    %3402 = vmatpush1.msra.mxu0 %v3319
    %3403 = vmatprep.subr.mxu0 0.0
    %3404 = vmatpush1.msra.mxu0 %v3320
    %3405 = vmatprep.subr.mxu0 0.0
    %3406 = vmatpush1.msra.mxu0 %v3321
    %3407 = vmatprep.subr.mxu0 0.0
    %3408 = vmatpush1.msra.mxu0 %v3322
    %3409 = vmatprep.subr.mxu0 0.0
    %3410 = vmatpush1.msra.mxu0 %v3323
    %3411 = vmatprep.subr.mxu0 0.0
    %3412 = vmatpush1.msra.mxu0 %v3324
    %3413 = vmatprep.subr.mxu0 0.0
    %3414 = vmatpush1.msra.mxu0 0.0
    %3415 = vmatprep.subr.mxu0 0.0
    %3416 = vmatpush1.msra.mxu0 0.0
    %3417 = vmatprep.subr.mxu0 0.0
    %3418 = vmatpush1.msra.mxu0 0.0
    %3419 = vmatprep.subr.mxu0 0.0
    %3420 = vmatpush1.msra.mxu0 0.0
    %3421 = vmatprep.subr.mxu0 0.0
    %3422 = vmatpush1.msra.mxu0 0.0
    %3423 = vmatprep.subr.mxu0 0.0
    %3424 = vmatpush1.msra.mxu0 0.0
    %3425 = vmatprep.subr.mxu0 0.0
    %3426 = vmatpush1.msra.mxu0 0.0
    %3427 = vmatprep.subr.mxu0 0.0
    %3428 = vmatpush1.msra.mxu0 0.0
    %3429 = vmatprep.subr.mxu0 0.0
    %3430 = vmatpush1.msra.mxu0 0.0
    %3431 = vmatprep.subr.mxu0 0.0
    %3432 = vmatpush1.msra.mxu0 0.0
    %3433 = vmatprep.subr.mxu0 0.0
    %3434 = vmatpush1.msra.mxu0 0.0
    %3435 = vmatprep.subr.mxu0 0.0
    %3436 = vmatpush1.msra.mxu0 0.0
    %3437 = vmatprep.subr.mxu0 0.0
    %3438 = vmatpush1.msra.mxu0 0.0
    %3439 = vmatprep.subr.mxu0 0.0
    %3440 = vmatpush1.msra.mxu0 0.0
    %3441 = vmatprep.subr.mxu0 0.0
    %3442 = vmatpush1.msra.mxu0 0.0
    %3443 = vmatprep.subr.mxu0 0.0
    %3444 = vmatpush1.msra.mxu0 0.0
    %3445 = vmatprep.mubr.f32.mxu0 0.0
    %3446 = vmatmul.mubr.f32.gmra.mrb[0].mxu0 %v3325
    %v3447 = vpop.f32.mrb[0].mxu0
    %v3448 = vadd.f32 %v3344, %v3447
    %v3449 = vpop.f32.mrb[0].mxu0
    %3450 = vmatprep.mubr.f32.mxu0 0.0
    %3451 = vmatmul.mubr.f32.gmra.mrb[0].mxu0 %v3326
    %v3452 = vpop.f32.mrb[0].mxu0
    %v3453 = vadd.f32 %v3349, %v3452
    %v3454 = vpop.f32.mrb[0].mxu0
    %3455 = vmatprep.mubr.f32.mxu0 0.0
    %3456 = vmatmul.mubr.f32.gmra.mrb[0].mxu0 %v3327
    %v3457 = vpop.f32.mrb[0].mxu0
    %v3458 = vadd.f32 %v3354, %v3457
    %v3459 = vpop.f32.mrb[0].mxu0
    %3460 = vmatprep.mubr.f32.mxu0 0.0
    %3461 = vmatmul.mubr.f32.gmra.mrb[0].mxu0 %v3328
    %v3462 = vpop.f32.mrb[0].mxu0
    %v3463 = vadd.f32 %v3359, %v3462
    %v3464 = vpop.f32.mrb[0].mxu0
    %3465 = vmatprep.mubr.f32.mxu0 0.0
    %3466 = vmatmul.mubr.f32.gmra.mrb[0].mxu0 %v3329
    %v3467 = vpop.f32.mrb[0].mxu0
    %v3468 = vadd.f32 %v3364, %v3467
    %v3469 = vpop.f32.mrb[0].mxu0
    %3470 = vmatprep.mubr.f32.mxu0 0.0
    %3471 = vmatmul.mubr.f32.gmra.mrb[0].mxu0 %v3330
    %v3472 = vpop.f32.mrb[0].mxu0
    %v3473 = vadd.f32 %v3369, %v3472
    %v3474 = vpop.f32.mrb[0].mxu0
    %3475 = vmatprep.mubr.f32.mxu0 0.0
    %3476 = vmatmul.mubr.f32.gmra.mrb[0].mxu0 %v3331
    %v3477 = vpop.f32.mrb[0].mxu0
    %v3478 = vadd.f32 %v3374, %v3477
    %v3479 = vpop.f32.mrb[0].mxu0
    %3480 = vmatprep.mubr.f32.mxu0 0.0
    %3481 = vmatmul.mubr.f32.gmra.mrb[0].mxu0 %v3332
    %v3482 = vpop.f32.mrb[0].mxu0
    %v3483 = vadd.f32 %v3379, %v3482
    %v3484 = vpop.f32.mrb[0].mxu0
    %3485 = vdwg.mxu0
    %v3486 = vld [vmem:[%s71] sm:$0xff]
    %v3487 = vld [vmem:[%s71 + $0x8] sm:$0xff]
    %v3488 = vld [vmem:[%s71 + $0x10] sm:$0xff]
    %v3489 = vld [vmem:[%s71 + $0x18] sm:$0xff]
    %v3490 = vld [vmem:[%s71 + $0x20] sm:$0xff]
    %v3491 = vld [vmem:[%s71 + $0x28] sm:$0xff]
    %v3492 = vld [vmem:[%s71 + $0x30] sm:$0xff]
    %v3493 = vld [vmem:[%s71 + $0x38] sm:$0xff]
    %3494 = vmatprep.subr.mxu0 0.0
    %3495 = vmatpush1.msra.mxu0 %v3309
    %3496 = vmatprep.subr.mxu0 0.0
    %3497 = vmatpush1.msra.mxu0 %v3310
    %3498 = vmatprep.subr.mxu0 0.0
    %3499 = vmatpush1.msra.mxu0 %v3311
    %3500 = vmatprep.subr.mxu0 0.0
    %3501 = vmatpush1.msra.mxu0 %v3312
    %3502 = vmatprep.subr.mxu0 0.0
    %3503 = vmatpush1.msra.mxu0 %v3313
    %3504 = vmatprep.subr.mxu0 0.0
    %3505 = vmatpush1.msra.mxu0 %v3314
    %3506 = vmatprep.subr.mxu0 0.0
    %3507 = vmatpush1.msra.mxu0 %v3315
    %3508 = vmatprep.subr.mxu0 0.0
    %3509 = vmatpush1.msra.mxu0 %v3316
    %3510 = vmatprep.subr.mxu0 0.0
    %3511 = vmatpush1.msra.mxu0 %v3317
    %3512 = vmatprep.subr.mxu0 0.0
    %3513 = vmatpush1.msra.mxu0 %v3318
    %3514 = vmatprep.subr.mxu0 0.0
    %3515 = vmatpush1.msra.mxu0 %v3319
    %3516 = vmatprep.subr.mxu0 0.0
    %3517 = vmatpush1.msra.mxu0 %v3320
    %3518 = vmatprep.subr.mxu0 0.0
    %3519 = vmatpush1.msra.mxu0 %v3321
    %3520 = vmatprep.subr.mxu0 0.0
    %3521 = vmatpush1.msra.mxu0 %v3322
    %3522 = vmatprep.subr.mxu0 0.0
    %3523 = vmatpush1.msra.mxu0 %v3323
    %3524 = vmatprep.subr.mxu0 0.0
    %3525 = vmatpush1.msra.mxu0 %v3324
    %3526 = vmatprep.subr.mxu0 0.0
    %3527 = vmatpush1.msra.mxu0 0.0
    %3528 = vmatprep.subr.mxu0 0.0
    %3529 = vmatpush1.msra.mxu0 0.0
    %3530 = vmatprep.subr.mxu0 0.0
    %3531 = vmatpush1.msra.mxu0 0.0
    %3532 = vmatprep.subr.mxu0 0.0
    %3533 = vmatpush1.msra.mxu0 0.0
    %3534 = vmatprep.subr.mxu0 0.0
    %3535 = vmatpush1.msra.mxu0 0.0
    %3536 = vmatprep.subr.mxu0 0.0
    %3537 = vmatpush1.msra.mxu0 0.0
    %3538 = vmatprep.subr.mxu0 0.0
    %3539 = vmatpush1.msra.mxu0 0.0
    %3540 = vmatprep.subr.mxu0 0.0
    %3541 = vmatpush1.msra.mxu0 0.0
    %3542 = vmatprep.subr.mxu0 0.0
    %3543 = vmatpush1.msra.mxu0 0.0
    %3544 = vmatprep.subr.mxu0 0.0
    %3545 = vmatpush1.msra.mxu0 0.0
    %3546 = vmatprep.subr.mxu0 0.0
    %3547 = vmatpush1.msra.mxu0 0.0
    %3548 = vmatprep.subr.mxu0 0.0
    %3549 = vmatpush1.msra.mxu0 0.0
    %3550 = vmatprep.subr.mxu0 0.0
    %3551 = vmatpush1.msra.mxu0 0.0
    %3552 = vmatprep.subr.mxu0 0.0
    %3553 = vmatpush1.msra.mxu0 0.0
    %3554 = vmatprep.subr.mxu0 0.0
    %3555 = vmatpush1.msra.mxu0 0.0
    %3556 = vmatprep.subr.mxu0 0.0
    %3557 = vmatpush1.msra.mxu0 0.0
    %3558 = vmatprep.mubr.f32.mxu0 0.0
    %3559 = vmatmul.mubr.f32.gmra.mrb[0].mxu0 %v3486
    %v3560 = vpop.f32.mrb[0].mxu0
    %v3561 = vadd.f32 0.0, %v3560
    %v3562 = vpop.f32.mrb[0].mxu0
    %3563 = vmatprep.mubr.f32.mxu0 0.0
    %3564 = vmatmul.mubr.f32.gmra.mrb[0].mxu0 %v3487
    %v3565 = vpop.f32.mrb[0].mxu0
    %v3566 = vadd.f32 0.0, %v3565
    %v3567 = vpop.f32.mrb[0].mxu0
    %3568 = vmatprep.mubr.f32.mxu0 0.0
    %3569 = vmatmul.mubr.f32.gmra.mrb[0].mxu0 %v3488
    %v3570 = vpop.f32.mrb[0].mxu0
    %v3571 = vadd.f32 0.0, %v3570
    %v3572 = vpop.f32.mrb[0].mxu0
    %3573 = vmatprep.mubr.f32.mxu0 0.0
    %3574 = vmatmul.mubr.f32.gmra.mrb[0].mxu0 %v3489
    %v3575 = vpop.f32.mrb[0].mxu0
    %v3576 = vadd.f32 0.0, %v3575
    %v3577 = vpop.f32.mrb[0].mxu0
    %3578 = vmatprep.mubr.f32.mxu0 0.0
    %3579 = vmatmul.mubr.f32.gmra.mrb[0].mxu0 %v3490
    %v3580 = vpop.f32.mrb[0].mxu0
    %v3581 = vadd.f32 0.0, %v3580
    %v3582 = vpop.f32.mrb[0].mxu0
    %3583 = vmatprep.mubr.f32.mxu0 0.0
    %3584 = vmatmul.mubr.f32.gmra.mrb[0].mxu0 %v3491
    %v3585 = vpop.f32.mrb[0].mxu0
    %v3586 = vadd.f32 0.0, %v3585
    %v3587 = vpop.f32.mrb[0].mxu0
    %3588 = vmatprep.mubr.f32.mxu0 0.0
    %3589 = vmatmul.mubr.f32.gmra.mrb[0].mxu0 %v3492
    %v3590 = vpop.f32.mrb[0].mxu0
    %v3591 = vadd.f32 0.0, %v3590
    %v3592 = vpop.f32.mrb[0].mxu0
    %3593 = vmatprep.mubr.f32.mxu0 0.0
    %3594 = vmatmul.mubr.f32.gmra.mrb[0].mxu0 %v3493
    %v3595 = vpop.f32.mrb[0].mxu0
    %v3596 = vadd.f32 0.0, %v3595
    %v3597 = vpop.f32.mrb[0].mxu0
    %3598 = vdwg.mxu0
    %v3599 = vmax.f32 %v3448, 0.0
    %v3600 = vmax.f32 %v3453, 0.0
    %v3601 = vmax.f32 %v3458, 0.0
    %v3602 = vmax.f32 %v3463, 0.0
    %v3603 = vmax.f32 %v3468, 0.0
    %v3604 = vmax.f32 %v3473, 0.0
    %v3605 = vmax.f32 %v3478, 0.0
    %v3606 = vmax.f32 %v3483, 0.0
    %v3607 = vadd.f32 %v3599, %v3561
    %v3608 = vadd.f32 %v3600, %v3566
    %v3609 = vadd.f32 %v3601, %v3571
    %v3610 = vadd.f32 %v3602, %v3576
    %v3611 = vadd.f32 %v3603, %v3581
    %v3612 = vadd.f32 %v3604, %v3586
    %v3613 = vadd.f32 %v3605, %v3591
    %v3614 = vadd.f32 %v3606, %v3596
    %v3615 = vld [vmem:[%s73] sm:$0x1]
    %v3616 = vld [vmem:[#allocation3] sm:$0x1]
    %3618 = vset.pattern.permute.xlu0 0
    %3619 = vperm.xlu0 %3618, %v3616
    %v3620 = vpop.permute.xlu0 %3619
    %v3622 = vlaneseq
    %v3623 = vshrl.u32 %v3622, 7
    %v3624 = vsub.s32 0, %v3623
    %v3625 = vrot.slane %v3620, %v3624
    %v3627 = vsel %vm1844, %v3615, 0
    %3629 = vmatprep.subr.mxu0 0.0
    %3630 = vmatpush1.msra.mxu0 %v3607
    %3631 = vmatprep.subr.mxu0 0.0
    %3632 = vmatpush1.msra.mxu0 %v3608
    %3633 = vmatprep.subr.mxu0 0.0
    %3634 = vmatpush1.msra.mxu0 %v3609
    %3635 = vmatprep.subr.mxu0 0.0
    %3636 = vmatpush1.msra.mxu0 %v3610
    %3637 = vmatprep.subr.mxu0 0.0
    %3638 = vmatpush1.msra.mxu0 %v3611
    %3639 = vmatprep.subr.mxu0 0.0
    %3640 = vmatpush1.msra.mxu0 %v3612
    %3641 = vmatprep.subr.mxu0 0.0
    %3642 = vmatpush1.msra.mxu0 %v3613
    %3643 = vmatprep.subr.mxu0 0.0
    %3644 = vmatpush1.msra.mxu0 %v3614
    %3645 = vmatprep.subr.mxu0 0.0
    %3646 = vmatpush1.msra.mxu0 0.0
    %3647 = vmatprep.subr.mxu0 0.0
    %3648 = vmatpush1.msra.mxu0 0.0
    %3649 = vmatprep.subr.mxu0 0.0
    %3650 = vmatpush1.msra.mxu0 0.0
    %3651 = vmatprep.subr.mxu0 0.0
    %3652 = vmatpush1.msra.mxu0 0.0
    %3653 = vmatprep.subr.mxu0 0.0
    %3654 = vmatpush1.msra.mxu0 0.0
    %3655 = vmatprep.subr.mxu0 0.0
    %3656 = vmatpush1.msra.mxu0 0.0
    %3657 = vmatprep.subr.mxu0 0.0
    %3658 = vmatpush1.msra.mxu0 0.0
    %3659 = vmatprep.subr.mxu0 0.0
    %3660 = vmatpush1.msra.mxu0 0.0
    %3661 = vmatprep.subr.mxu0 0.0
    %3662 = vmatpush1.msra.mxu0 0.0
    %3663 = vmatprep.subr.mxu0 0.0
    %3664 = vmatpush1.msra.mxu0 0.0
    %3665 = vmatprep.subr.mxu0 0.0
    %3666 = vmatpush1.msra.mxu0 0.0
    %3667 = vmatprep.subr.mxu0 0.0
    %3668 = vmatpush1.msra.mxu0 0.0
    %3669 = vmatprep.subr.mxu0 0.0
    %3670 = vmatpush1.msra.mxu0 0.0
    %3671 = vmatprep.subr.mxu0 0.0
    %3672 = vmatpush1.msra.mxu0 0.0
    %3673 = vmatprep.subr.mxu0 0.0
    %3674 = vmatpush1.msra.mxu0 0.0
    %3675 = vmatprep.subr.mxu0 0.0
    %3676 = vmatpush1.msra.mxu0 0.0
    %3677 = vmatprep.subr.mxu0 0.0
    %3678 = vmatpush1.msra.mxu0 0.0
    %3679 = vmatprep.subr.mxu0 0.0
    %3680 = vmatpush1.msra.mxu0 0.0
    %3681 = vmatprep.subr.mxu0 0.0
    %3682 = vmatpush1.msra.mxu0 0.0
    %3683 = vmatprep.subr.mxu0 0.0
    %3684 = vmatpush1.msra.mxu0 0.0
    %3685 = vmatprep.subr.mxu0 0.0
    %3686 = vmatpush1.msra.mxu0 0.0
    %3687 = vmatprep.subr.mxu0 0.0
    %3688 = vmatpush1.msra.mxu0 0.0
    %3689 = vmatprep.subr.mxu0 0.0
    %3690 = vmatpush1.msra.mxu0 0.0
    %3691 = vmatprep.subr.mxu0 0.0
    %3692 = vmatpush1.msra.mxu0 0.0
    %3693 = vmatprep.mubr.f32.mxu0 0.0
    %3694 = vmatmul.mubr.f32.gmra.mrb[0].mxu0 %v3627
    %v3695 = vpop.f32.mrb[0].mxu0
    %v3696 = vadd.f32 %v3625, %v3695
    %v3697 = vpop.f32.mrb[0].mxu0
    %3698 = vdwg.mxu0
    %v3699 = vlaneseq
    %v3700 = vshrl.u32 %v3699, 7
    %v3701 = vsub.s32 0, %v3700
    %v3702 = vrot.slane %v3696, %v3701
    %v3703 = vsel %vm174, %v3702, -inf
    %v3704 = vsel %vm1923, %v3703, -inf
    %3705 = vmax.xlane.f32.xlu0 %v3704
    %v3706 = vpop.xlane.xlu0 %3705
    %v3707 = vsel %vm174, %v3706, -inf
    %v3708 = vsel %vm1923, %v3707, -inf
    %v3709 = vrot.slane %v3708, 4
    %v3710 = vmax.f32 %v3708, %v3709
    %v3711 = vrot.slane %v3710, 2
    %v3712 = vmax.f32 %v3710, %v3711
    %v3713 = vrot.slane %v3712, 1
    %v3714 = vmax.f32 %v3712, %v3713
    %v3715 = vsub.f32 %v3696, %v3714
    %v3716 = vmul.f32 %v3715, 1.442695
    %v3717 = vpow.pop %v3716
    %v3718 = vlaneseq
    %v3719 = vshrl.u32 %v3718, 7
    %v3720 = vsub.s32 0, %v3719
    %v3721 = vrot.slane %v3717, %v3720
    %v3722 = vsel %vm174, %v3721, 0.0
    %v3723 = vsel %vm1923, %v3722, 0.0
    %3724 = vadd.xlane.f32.xlu0 %v3723
    %v3725 = vpop.xlane.xlu0 %3724
    %v3726 = vsel %vm174, %v3725, 0.0
    %v3727 = vsel %vm1923, %v3726, 0.0
    %v3728 = vrot.slane %v3727, 4
    %v3729 = vadd.f32 %v3727, %v3728
    %v3730 = vrot.slane %v3729, 2
    %v3731 = vadd.f32 %v3729, %v3730
    %v3732 = vrot.slane %v3731, 1
    %v3733 = vadd.f32 %v3731, %v3732
    %v3734 = vadd.f32 %v3733, 1e-13
    %v3735 = vrcp.pop %v3734
    %v3736 = vmul.f32 %v3717, %v3735
    %v3737 = vadd.f32 %v1957, %v3736
    %v3738 = vmul.f32 %v3737, 0.5
    %vm3739 = vcmask 57344
    %3740 = vst.msk [vmem:[#allocation4] sm:$0x1] %vm3739, %v3738
    // Predicated region
    $region154: #{tpu_custom_call.1} parent=1 // pred_check
      _
    $region155: #{tpu_custom_call.1} parent=1 // pred_check_branch
      %3742 = sbr.rel (0) target = $region157
    $region156: #{tpu_custom_call.1} parent=1 // pred_region
      %s3744 = ssub.s32 16, 16
      %3745 = vsyncadd [#allocation5], %s3744
      %s3747 = sshll.u32 [#allocation4], 4
      %s3748 = int_to_ptr.vmem [resolvable:$true] %s3747
      %3750 = dma.vmem_to_hbm [thread:$0]  %s3748, 16, %s77, [#allocation5]
    $region157: #{tpu_custom_call.1} parent=1 // pred_fallthru
      _
    // Predicated region
    $region158: #{tpu_custom_call.1} parent=1 // pred_check
      _
    $region159: #{tpu_custom_call.1} parent=1 // pred_check_branch
      %3752 = sbr.rel (0) target = $region161
    $region160: #{tpu_custom_call.1} parent=1 // pred_region
      %3753 = dma.done [#allocation5], 16
    $region161: #{tpu_custom_call.1} parent=1 // pred_fallthru
      _
    %3754 = vsyncpa [#allocation5], 1

</llo_original>
